<compile_context>
chip_gen: v5e
topology: v5e:2x2
jax: 0.10.0
libtpu: 0.0.40
codegen_flags: <defaults>
</compile_context>

<pallas_src>
import math

import jax
import jax.numpy as jnp
import numpy as np
from jax.experimental import pallas as pl
from jax.experimental.pallas import tpu as pltpu


# ---------------------------------------------------------------------------
# Positional encoding table (matches PositionalEncoding._get_pos_enc exactly).
# Used only by the pure-JAX reference; the kernel computes it on the fly.
# ---------------------------------------------------------------------------
def make_pos_enc(d_model: int, maxlen: int, min_freq: float = 1e-4) -> jnp.ndarray:
    position = np.arange(maxlen)
    freqs = min_freq ** (2 * (np.arange(d_model) // 2) / d_model)
    pos_enc = position[:, None] * freqs[None]
    pos_enc[:, ::2] = np.cos(pos_enc[:, ::2])
    pos_enc[:, 1::2] = np.sin(pos_enc[:, 1::2])
    return jnp.asarray(pos_enc, dtype=jnp.float32)


def _pos_enc_constants(d_model: int, min_freq: float = 1e-4):
    """(1, D) frequency row and even-lane (cos) mask for in-kernel encoding."""
    freqs = (min_freq ** (2 * (np.arange(d_model) // 2) / d_model)).astype(np.float32)
    even = (np.arange(d_model) % 2 == 0).astype(np.float32)
    return freqs, even


# ---------------------------------------------------------------------------
# Pallas kernel:
#   emb(t) on the fly -> (x+emb) -> lin1 -> GELU -> lin2 -> residual -> LayerNorm
# ---------------------------------------------------------------------------
def _block_kernel(x_ref, t_ref, w1_ref, w2_ref, vec_ref, o_ref):
    d = x_ref.shape[-1]

    b1    = vec_ref[0:1, :]                   # packed (6, D) constants
    b2    = vec_ref[1:2, :]
    gamma = vec_ref[2:3, :]
    beta  = vec_ref[3:4, :]
    freqs = vec_ref[4:5, :]
    even  = vec_ref[5:6, :]                   # 1.0 on even lanes (cos), 0.0 odd (sin)

    # Positional encoding computed in-kernel (EUP): emb[t, k] = cos(t*f_k) on
    # even k, sin(t*f_k) on odd k — same formula as the PyTorch buffer, in f32.
    tpos = t_ref[...].astype(jnp.float32)                     # (tb, 1)
    angle = tpos * freqs                                      # (tb, D)
    emb = jnp.where(even > 0.5, jnp.cos(angle), jnp.sin(angle))

    h = x_ref[...] + emb

    # lin1 + exact (erf-based) GELU, same as PyTorch nn.GELU() default.
    # Matmul inputs are cast to the weight dtype (bf16 by default), f32 accum.
    w1 = w1_ref[...]
    y1 = jnp.dot(h.astype(w1.dtype), w1, preferred_element_type=jnp.float32) + b1
    inv_sqrt2 = jnp.float32(1.0 / math.sqrt(2.0))
    a = 0.5 * y1 * (1.0 + jax.lax.erf(y1 * inv_sqrt2))

    # lin2 + residual (x re-read at point of use to keep vreg pressure low).
    w2 = w2_ref[...]
    y2 = jnp.dot(a.astype(w2.dtype), w2, preferred_element_type=jnp.float32) + b2
    r = x_ref[...] + y2

    # LayerNorm over last dim: concurrent sum / sum-of-squares reductions,
    # biased variance, eps=1e-5, affine params.  (Padded/ragged rows produce
    # finite garbage and are never written back — safe by construction.)
    inv_d = jnp.float32(1.0 / d)
    s1 = jnp.sum(r, axis=-1, keepdims=True)
    s2 = jnp.sum(r * r, axis=-1, keepdims=True)
    mean = s1 * inv_d
    var = jnp.maximum(s2 * inv_d - mean * mean, jnp.float32(0.0))
    inv = jax.lax.rsqrt(var + jnp.float32(1e-5))
    o_ref[...] = ((r - mean) * inv * gamma + beta).astype(o_ref.dtype)


def _pick_batch_tile(B: int) -> int:
    """One big tile for small/medium batches (single-TC v5e/v6e: fewer grid
    steps, bigger MXU M).  Cap at 512 rows so large batches give >= 2 grid
    steps (v7x megacore sharding) while VMEM stays tiny."""
    if B <= 512:
        return B                       # full-extent block: no pad, no 8-div needed
    for tile in range(512, 7, -8):     # prefer a tile that divides B (no ragged tail)
        if B % tile == 0:
            return tile
    return 512                         # ragged tail handled by Pallas boundary masking


def discrete_time_residual_block(x, t_idx, w1_t, b1, w2_t, b2, gamma, beta,
                                 *, min_freq: float = 1e-4,
                                 batch_tile: int | None = None,
                                 mxu_dtype=jnp.bfloat16):
    """x: (B, D) f32, t_idx: (B,) int timesteps. Returns (B, D) f32."""
    B, D = x.shape
    tile = _pick_batch_tile(B) if batch_tile is None else batch_tile
    n_steps = pl.cdiv(B, tile)

    # Explicit MXU precision decision: bf16 weights/activations, f32 accumulation.
    w1m = w1_t.astype(mxu_dtype)
    w2m = w2_t.astype(mxu_dtype)

    # Pack the six (D,) constant rows into one (6, D) operand -> one DMA.
    freqs, even = _pos_enc_constants(D, min_freq)
    vecs = jnp.stack([b1.reshape(D), b2.reshape(D), gamma.reshape(D),
                      beta.reshape(D), jnp.asarray(freqs), jnp.asarray(even)], axis=0)

    t2 = t_idx.reshape(B, 1).astype(jnp.int32)

    row_spec = pl.BlockSpec((tile, D), lambda i: (i, 0))
    t_spec = pl.BlockSpec((tile, 1), lambda i: (i, 0))
    # Constant-index operands: nothing to prefetch, single-buffer them.
    w_spec = pl.BlockSpec((D, D), lambda i: (0, 0), pipeline_mode=pl.Buffered(1))
    vec_spec = pl.BlockSpec((6, D), lambda i: (0, 0), pipeline_mode=pl.Buffered(1))

    # VMEM budget from the tile plan (lane-padded), modest headroom, <= 48 MiB.
    w_item = jnp.dtype(mxu_dtype).itemsize
    Dp = max(D, 128)
    vmem_needed = (2 * D * D * w_item          # single-buffered weights
                   + 8 * Dp * 4                # packed constants (sublane-padded)
                   + 2 * 2 * tile * Dp * 4     # x, out double-buffered
                   + 2 * tile * 128 * 4)       # t block (lane-padded), double-buffered
    vmem_limit = int(min(48 << 20, vmem_needed + (8 << 20)))

    cost = pl.CostEstimate(
        flops=4 * B * D * D,                       # two (tile,D)x(D,D) matmuls
        transcendentals=3 * B * D,                 # erf + cos + sin
        bytes_accessed=2 * B * D * 4 + B * 4 + 2 * D * D * w_item + 6 * D * 4,
    )

    return pl.pallas_call(
        _block_kernel,
        out_shape=jax.ShapeDtypeStruct((B, D), x.dtype),
        grid_spec=pltpu.PrefetchScalarGridSpec(
            num_scalar_prefetch=0,
            grid=(n_steps,),
            in_specs=[row_spec,       # x
                      t_spec,         # t (B,1) int32
                      w_spec,         # W1^T (bf16)
                      w_spec,         # W2^T (bf16)
                      vec_spec],      # packed [b1; b2; gamma; beta; freqs; even]
            out_specs=row_spec,
        ),
        compiler_params=pltpu.CompilerParams(
            dimension_semantics=("parallel",),
            vmem_limit_bytes=vmem_limit),
        cost_estimate=cost,
    )(x, t2, w1m, w2m, vecs)


# ---------------------------------------------------------------------------
# Pure-JAX reference with PyTorch-module semantics (table pos-enc, f32 math).
# ---------------------------------------------------------------------------
def reference(x, emb, w1_t, b1, w2_t, b2, gamma, beta):
    h = x + emb
    y1 = h @ w1_t + b1
    a = 0.5 * y1 * (1.0 + jax.lax.erf(y1 / jnp.sqrt(2.0)))
    y2 = a @ w2_t + b2
    r = x + y2
    mean = jnp.mean(r, axis=-1, keepdims=True)
    var = jnp.mean((r - mean) ** 2, axis=-1, keepdims=True)
    return (r - mean) * jax.lax.rsqrt(var + 1e-5) * gamma + beta


if __name__ == "__main__":
    d_model = 128          # module default; maps to the 128-lane axis
    maxlen = 64
    batch = 128

    key = jax.random.PRNGKey(0)
    kx, kt, kw1, kb1, kw2, kb2 = jax.random.split(key, 6)

    x = jax.random.normal(kx, (batch, d_model), dtype=jnp.float32)
    t_idx = jax.random.randint(kt, (batch,), 0, maxlen, dtype=jnp.int32)

    # nn.Linear-style uniform init; weights stored pre-transposed (in, out).
    bound = 1.0 / math.sqrt(d_model)
    w1_t = jax.random.uniform(kw1, (d_model, d_model), jnp.float32, -bound, bound)
    b1 = jax.random.uniform(kb1, (d_model,), jnp.float32, -bound, bound)
    w2_t = jax.random.uniform(kw2, (d_model, d_model), jnp.float32, -bound, bound)
    b2 = jax.random.uniform(kb2, (d_model,), jnp.float32, -bound, bound)
    gamma = jnp.ones((d_model,), jnp.float32)    # LayerNorm weight init
    beta = jnp.zeros((d_model,), jnp.float32)    # LayerNorm bias init

    # Reference uses the registered-buffer table exactly like PyTorch.
    pos_enc = make_pos_enc(d_model, maxlen)
    emb = pos_enc[t_idx]
    ref = reference(x, emb, w1_t, b1, w2_t, b2, gamma, beta)

    # Default tiling: single 128-row step.
    out = discrete_time_residual_block(x, t_idx, w1_t, b1, w2_t, b2, gamma, beta)
    out = jax.block_until_ready(out)
    # Tolerance reflects the explicit bf16-MXU decision (f32 accumulation).
    np.testing.assert_allclose(np.asarray(out), np.asarray(ref), rtol=3e-2, atol=3e-2)

    # Also exercise the multi-step path (parallel grid axis / megacore sharding).
    out2 = discrete_time_residual_block(x, t_idx, w1_t, b1, w2_t, b2, gamma, beta,
                                        batch_tile=32)
    out2 = jax.block_until_ready(out2)
    np.testing.assert_allclose(np.asarray(out2), np.asarray(ref), rtol=3e-2, atol=3e-2)

    print("KERNEL_OK")
</pallas_src>

<mosaic_0001>
module attributes {stable_mosaic.version = 11 : i64} {
  func.func @_block_kernel(%arg0: i32, %arg1: memref<128x128xf32, #tpu.memory_space<vmem>>, %arg2: memref<128x1xi32, #tpu.memory_space<vmem>>, %arg3: memref<128x128xbf16, #tpu.memory_space<vmem>>, %arg4: memref<128x128xbf16, #tpu.memory_space<vmem>>, %arg5: memref<6x128xf32, #tpu.memory_space<vmem>>, %arg6: memref<128x128xf32, #tpu.memory_space<vmem>>) attributes {dimension_semantics = [#tpu.dimension_semantics<parallel>], iteration_bounds = array<i64: 1>, scalar_prefetch = 0 : i64, scratch_operands = 0 : i64, tpu.core_type = #tpu.core_type<tc>, window_params = [{transform_indices = @transform_0, window_bounds = array<i64: 128, 128>}, {transform_indices = @transform_1, window_bounds = array<i64: 128, 1>}, {pipeline_mode = #tpu.pipeline_mode<synchronous>, transform_indices = @transform_2, window_bounds = array<i64: 128, 128>}, {pipeline_mode = #tpu.pipeline_mode<synchronous>, transform_indices = @transform_3, window_bounds = array<i64: 128, 128>}, {pipeline_mode = #tpu.pipeline_mode<synchronous>, transform_indices = @transform_4, window_bounds = array<i64: 6, 128>}, {transform_indices = @transform_5, window_bounds = array<i64: 128, 128>}]} {
    %c0 = arith.constant 0 : index
    %c0_0 = arith.constant 0 : index
    %0 = vector.load %arg5[%c0, %c0_0] : memref<6x128xf32, #tpu.memory_space<vmem>>, vector<1x128xf32>
    %c1 = arith.constant 1 : index
    %c0_1 = arith.constant 0 : index
    %1 = vector.load %arg5[%c1, %c0_1] : memref<6x128xf32, #tpu.memory_space<vmem>>, vector<1x128xf32>
    %c2 = arith.constant 2 : index
    %c0_2 = arith.constant 0 : index
    %2 = vector.load %arg5[%c2, %c0_2] : memref<6x128xf32, #tpu.memory_space<vmem>>, vector<1x128xf32>
    %c3 = arith.constant 3 : index
    %c0_3 = arith.constant 0 : index
    %3 = vector.load %arg5[%c3, %c0_3] : memref<6x128xf32, #tpu.memory_space<vmem>>, vector<1x128xf32>
    %c4 = arith.constant 4 : index
    %c0_4 = arith.constant 0 : index
    %4 = vector.load %arg5[%c4, %c0_4] : memref<6x128xf32, #tpu.memory_space<vmem>>, vector<1x128xf32>
    %c5 = arith.constant 5 : index
    %c0_5 = arith.constant 0 : index
    %5 = vector.load %arg5[%c5, %c0_5] : memref<6x128xf32, #tpu.memory_space<vmem>>, vector<1x128xf32>
    %c0_6 = arith.constant 0 : index
    %c0_7 = arith.constant 0 : index
    %6 = vector.load %arg2[%c0_6, %c0_7] : memref<128x1xi32, #tpu.memory_space<vmem>>, vector<128x1xi32>
    %7 = arith.sitofp %6 : vector<128x1xi32> to vector<128x1xf32>
    %8 = vector.broadcast %7 : vector<128x1xf32> to vector<128x128xf32>
    %9 = vector.broadcast %4 : vector<1x128xf32> to vector<128x128xf32>
    %10 = arith.mulf %8, %9 : vector<128x128xf32>
    %cst = arith.constant 5.000000e-01 : f32
    %11 = vector.broadcast %cst : f32 to vector<1x128xf32>
    %12 = arith.cmpf ogt, %5, %11 : vector<1x128xf32>
    %13 = math.cos %10 : vector<128x128xf32>
    %14 = math.sin %10 : vector<128x128xf32>
    %15 = vector.shape_cast %12 : vector<1x128xi1> to vector<1x128xi1>
    %16 = vector.broadcast %15 : vector<1x128xi1> to vector<128x128xi1>
    %17 = arith.select %16, %13, %14 : vector<128x128xi1>, vector<128x128xf32>
    %c0_8 = arith.constant 0 : index
    %c0_9 = arith.constant 0 : index
    %18 = vector.load %arg1[%c0_8, %c0_9] : memref<128x128xf32, #tpu.memory_space<vmem>>, vector<128x128xf32>
    %19 = arith.addf %18, %17 : vector<128x128xf32>
    %c0_10 = arith.constant 0 : index
    %c0_11 = arith.constant 0 : index
    %20 = vector.load %arg3[%c0_10, %c0_11] : memref<128x128xbf16, #tpu.memory_space<vmem>>, vector<128x128xbf16>
    %21 = arith.truncf %19 : vector<128x128xf32> to vector<128x128xbf16>
    %cst_12 = arith.constant dense<0.000000e+00> : vector<128x128xf32>
    %22 = tpu.matmul %21, %20, %cst_12 {dimension_numbers = #tpu.dot_dimension_numbers<[1], [0], [0], [1], [0, 0, 1, 1], [], []>} : vector<128x128xbf16>, vector<128x128xbf16>, vector<128x128xf32> -> vector<128x128xf32>
    %23 = vector.broadcast %0 : vector<1x128xf32> to vector<128x128xf32>
    %24 = arith.addf %22, %23 : vector<128x128xf32>
    %cst_13 = arith.constant 5.000000e-01 : f32
    %25 = vector.broadcast %cst_13 : f32 to vector<128x128xf32>
    %26 = arith.mulf %25, %24 : vector<128x128xf32>
    %cst_14 = arith.constant 0.707106769 : f32
    %27 = vector.broadcast %cst_14 : f32 to vector<128x128xf32>
    %28 = arith.mulf %24, %27 : vector<128x128xf32>
    %29 = math.erf %28 : vector<128x128xf32>
    %cst_15 = arith.constant 1.000000e+00 : f32
    %30 = vector.broadcast %cst_15 : f32 to vector<128x128xf32>
    %31 = arith.addf %30, %29 : vector<128x128xf32>
    %32 = arith.mulf %26, %31 : vector<128x128xf32>
    %c0_16 = arith.constant 0 : index
    %c0_17 = arith.constant 0 : index
    %33 = vector.load %arg4[%c0_16, %c0_17] : memref<128x128xbf16, #tpu.memory_space<vmem>>, vector<128x128xbf16>
    %34 = arith.truncf %32 : vector<128x128xf32> to vector<128x128xbf16>
    %cst_18 = arith.constant dense<0.000000e+00> : vector<128x128xf32>
    %35 = tpu.matmul %34, %33, %cst_18 {dimension_numbers = #tpu.dot_dimension_numbers<[1], [0], [0], [1], [0, 0, 1, 1], [], []>} : vector<128x128xbf16>, vector<128x128xbf16>, vector<128x128xf32> -> vector<128x128xf32>
    %36 = vector.broadcast %1 : vector<1x128xf32> to vector<128x128xf32>
    %37 = arith.addf %35, %36 : vector<128x128xf32>
    %c0_19 = arith.constant 0 : index
    %c0_20 = arith.constant 0 : index
    %38 = vector.load %arg1[%c0_19, %c0_20] : memref<128x128xf32, #tpu.memory_space<vmem>>, vector<128x128xf32>
    %39 = arith.addf %38, %37 : vector<128x128xf32>
    %cst_21 = arith.constant dense<0.000000e+00> : vector<128xf32>
    %40 = vector.multi_reduction <add>, %39, %cst_21 [1] : vector<128x128xf32> to vector<128xf32>
    %41 = vector.shape_cast %40 : vector<128xf32> to vector<128x1xf32>
    %42 = arith.mulf %39, %39 : vector<128x128xf32>
    %cst_22 = arith.constant dense<0.000000e+00> : vector<128xf32>
    %43 = vector.multi_reduction <add>, %42, %cst_22 [1] : vector<128x128xf32> to vector<128xf32>
    %44 = vector.shape_cast %43 : vector<128xf32> to vector<128x1xf32>
    %cst_23 = arith.constant 7.812500e-03 : f32
    %45 = vector.broadcast %cst_23 : f32 to vector<128x1xf32>
    %46 = arith.mulf %41, %45 : vector<128x1xf32>
    %cst_24 = arith.constant 7.812500e-03 : f32
    %47 = vector.broadcast %cst_24 : f32 to vector<128x1xf32>
    %48 = arith.mulf %44, %47 : vector<128x1xf32>
    %49 = arith.mulf %46, %46 : vector<128x1xf32>
    %50 = arith.subf %48, %49 : vector<128x1xf32>
    %cst_25 = arith.constant 0.000000e+00 : f32
    %51 = vector.broadcast %cst_25 : f32 to vector<128x1xf32>
    %52 = arith.maximumf %50, %51 : vector<128x1xf32>
    %cst_26 = arith.constant 9.99999974E-6 : f32
    %53 = vector.broadcast %cst_26 : f32 to vector<128x1xf32>
    %54 = arith.addf %52, %53 : vector<128x1xf32>
    %55 = math.rsqrt %54 : vector<128x1xf32>
    %56 = vector.broadcast %46 : vector<128x1xf32> to vector<128x128xf32>
    %57 = arith.subf %39, %56 : vector<128x128xf32>
    %58 = vector.broadcast %55 : vector<128x1xf32> to vector<128x128xf32>
    %59 = arith.mulf %57, %58 : vector<128x128xf32>
    %60 = vector.broadcast %2 : vector<1x128xf32> to vector<128x128xf32>
    %61 = arith.mulf %59, %60 : vector<128x128xf32>
    %62 = vector.broadcast %3 : vector<1x128xf32> to vector<128x128xf32>
    %63 = arith.addf %61, %62 : vector<128x128xf32>
    %c0_27 = arith.constant 0 : index
    %c0_28 = arith.constant 0 : index
    %64 = vector.load %arg6[%c0_27, %c0_28] : memref<128x128xf32, #tpu.memory_space<vmem>>, vector<128x128xf32>
    tpu.vector_store %arg6[%c0_27, %c0_28], %63 {strides = array<i32>} : memref<128x128xf32, #tpu.memory_space<vmem>>, vector<128x128xf32>,
    return
  }
  func.func @transform_0(%arg0: i32) -> (i32, i32) {
    %c0_i32 = arith.constant 0 : i32
    %c0_i32_0 = arith.constant 0 : i32
    return %arg0, %c0_i32 : i32, i32
  }
  func.func @transform_1(%arg0: i32) -> (i32, i32) {
    %c0_i32 = arith.constant 0 : i32
    %c0_i32_0 = arith.constant 0 : i32
    return %arg0, %c0_i32 : i32, i32
  }
  func.func @transform_2(%arg0: i32) -> (i32, i32) {
    %c0_i32 = arith.constant 0 : i32
    %c0_i32_0 = arith.constant 0 : i32
    %c0_i32_1 = arith.constant 0 : i32
    return %c0_i32, %c0_i32_0 : i32, i32
  }
  func.func @transform_3(%arg0: i32) -> (i32, i32) {
    %c0_i32 = arith.constant 0 : i32
    %c0_i32_0 = arith.constant 0 : i32
    %c0_i32_1 = arith.constant 0 : i32
    return %c0_i32, %c0_i32_0 : i32, i32
  }
  func.func @transform_4(%arg0: i32) -> (i32, i32) {
    %c0_i32 = arith.constant 0 : i32
    %c0_i32_0 = arith.constant 0 : i32
    %c0_i32_1 = arith.constant 0 : i32
    return %c0_i32, %c0_i32_0 : i32, i32
  }
  func.func @transform_5(%arg0: i32) -> (i32, i32) {
    %c0_i32 = arith.constant 0 : i32
    %c0_i32_0 = arith.constant 0 : i32
    return %arg0, %c0_i32 : i32, i32
  }
}

</mosaic_0001>

<llo_original>
// kernel: tpu_custom_call.1
$region0: #{tpu_custom_call.1}
  #allocation0 [shape = 'u32[]', space=smem, size = 0x4, offset = 0x4, fixed_abs, tag = 'smem constant byte address 0x4 - core index']
  #allocation1 [shape = 'u32[72,128]{1,0:T(1,128)}', space=vmem, size = 0x9000, scoped, tag = 'internal scratch']
  %s0 = inlined_call_operand.vmem [shape: f32[128,128], index: 0, kind: input, shape index: {}]
  %s1 = inlined_call_operand.vmem [shape: s32[128,1], index: 1, kind: input, shape index: {}]
  %s2 = inlined_call_operand.hbm [shape: bf16[128,128], index: 2, kind: input, shape index: {}]
  %s3 = inlined_call_operand.hbm [shape: bf16[128,128], index: 3, kind: input, shape index: {}]
  %s4 = inlined_call_operand.hbm [shape: f32[6,128], index: 4, kind: input, shape index: {}]
  %s5 = inlined_call_operand.hbm [shape: f32[128,128], index: 5, kind: output, shape index: {}]
  %s6 = sld [smem:[#allocation0]]
  $region42: #{tpu_custom_call.1} parent=0
    _
  %s8 = ssub.s32 1, %s6
  %s9 = scalar_select 0, %s8, %s6
  $region1: #{tpu_custom_call.1} parent=0
    #allocation2 [shape = 'u8[32768]{0}', space=vmem, size = 0x8000, scoped, tag = 'input window, operand 2, single buffered']
    #allocation3 [shape = 's32[1]{0}', space=sflag, size = 0x4, scoped, tag = 'scoped memory for tpu_custom_call.1']
    #allocation4 [shape = 's32[1]{0}', space=sflag, size = 0x4, scoped, tag = 'scoped memory for tpu_custom_call.1']
    #allocation5 [shape = 'u8[32768]{0}', space=vmem, size = 0x8000, scoped, tag = 'input window, operand 3, single buffered']
    #allocation6 [shape = 's32[1]{0}', space=sflag, size = 0x4, scoped, tag = 'scoped memory for tpu_custom_call.1']
    #allocation7 [shape = 'u8[4096]{0}', space=vmem, size = 0x1000, scoped, tag = 'input window, operand 4, single buffered']
    #allocation8 [shape = 'u8[65536]{0}', space=vmem, size = 0x10000, scoped, tag = 'output window, operand 0, single buffered']
    %10 = vsyncpa [#allocation3], 0
    %11 = vsyncpa [#allocation6], 0
    %12 = vsyncpa [#allocation4], 0
    // Predicated region
    $region2: #{tpu_custom_call.1} parent=1 // pred_check
      _
    $region3: #{tpu_custom_call.1} parent=1 // pred_check_branch
      %14 = sbr.rel (0) target = $region5
    $region4: #{tpu_custom_call.1} parent=1 // pred_region
      _
    $region5: #{tpu_custom_call.1} parent=1 // pred_fallthru
      _
    // Predicated region
    $region6: #{tpu_custom_call.1} parent=1 // pred_check
      _
    $region7: #{tpu_custom_call.1} parent=1 // pred_check_branch
      %16 = sbr.rel (0) target = $region9
    $region8: #{tpu_custom_call.1} parent=1 // pred_region
      _
    $region9: #{tpu_custom_call.1} parent=1 // pred_fallthru
      _
    // Predicated region
    $region10: #{tpu_custom_call.1} parent=1 // pred_check
      _
    $region11: #{tpu_custom_call.1} parent=1 // pred_check_branch
      %18 = sbr.rel (0) target = $region13
    $region12: #{tpu_custom_call.1} parent=1 // pred_region
      %20 = vsyncadd [#allocation3], 0
      %s21 = sshll.u32 %s2, 4
      %s22 = int_to_ptr.hbm [resolvable:$true] %s21
      %s23 = sshll.u32 [#allocation2], 4
      %s24 = int_to_ptr.vmem [resolvable:$true] %s23
      %29 = dma.hbm_to_vmem [thread:$0]  %s22, 1024, %s24, [#allocation3], 64, 64, 4
    $region13: #{tpu_custom_call.1} parent=1 // pred_fallthru
      _
    // Predicated region
    $region14: #{tpu_custom_call.1} parent=1 // pred_check
      _
    $region15: #{tpu_custom_call.1} parent=1 // pred_check_branch
      %31 = sbr.rel (0) target = $region17
    $region16: #{tpu_custom_call.1} parent=1 // pred_region
      %33 = vsyncadd [#allocation6], 0
      %s34 = sshll.u32 %s3, 4
      %s35 = int_to_ptr.hbm [resolvable:$true] %s34
      %s36 = sshll.u32 [#allocation5], 4
      %s37 = int_to_ptr.vmem [resolvable:$true] %s36
      %42 = dma.hbm_to_vmem [thread:$0]  %s35, 1024, %s37, [#allocation6], 64, 64, 4
    $region17: #{tpu_custom_call.1} parent=1 // pred_fallthru
      _
    // Predicated region
    $region18: #{tpu_custom_call.1} parent=1 // pred_check
      _
    $region19: #{tpu_custom_call.1} parent=1 // pred_check_branch
      %44 = sbr.rel (0) target = $region21
    $region20: #{tpu_custom_call.1} parent=1 // pred_region
      %46 = vsyncadd [#allocation6], 0
      %s48 = sshll.u32 %s4, 4
      %s49 = int_to_ptr.hbm [resolvable:$true] %s48
      %s50 = sshll.u32 [#allocation7], 4
      %s51 = int_to_ptr.vmem [resolvable:$true] %s50
      %53 = dma.hbm_to_vmem [thread:$0]  %s49, 128, %s51, [#allocation6]
    $region21: #{tpu_custom_call.1} parent=1 // pred_fallthru
      _
    // Predicated region
    $region22: #{tpu_custom_call.1} parent=1 // pred_check
      _
    $region23: #{tpu_custom_call.1} parent=1 // pred_check_branch
      %55 = sbr.rel (0) target = $region25
    $region24: #{tpu_custom_call.1} parent=1 // pred_region
      %57 = dma.done [#allocation3], 1024
    $region25: #{tpu_custom_call.1} parent=1 // pred_fallthru
      _
    // Predicated region
    $region26: #{tpu_custom_call.1} parent=1 // pred_check
      _
    $region27: #{tpu_custom_call.1} parent=1 // pred_check_branch
      %59 = sbr.rel (0) target = $region29
    $region28: #{tpu_custom_call.1} parent=1 // pred_region
      %61 = dma.done [#allocation6], 1024
    $region29: #{tpu_custom_call.1} parent=1 // pred_fallthru
      _
    // Predicated region
    $region30: #{tpu_custom_call.1} parent=1 // pred_check
      _
    $region31: #{tpu_custom_call.1} parent=1 // pred_check_branch
      %63 = sbr.rel (0) target = $region33
    $region32: #{tpu_custom_call.1} parent=1 // pred_region
      %65 = dma.done [#allocation6], 128
    $region33: #{tpu_custom_call.1} parent=1 // pred_fallthru
      _
    %v66 = vld [vmem:[#allocation7] sm:$0x1]
    %v67 = vld [vmem:[#allocation7 + $0x1] sm:$0x1]
    %v68 = vld [vmem:[#allocation7 + $0x2] sm:$0x1]
    %v69 = vld [vmem:[#allocation7 + $0x3] sm:$0x1]
    %v70 = vld [vmem:[#allocation7 + $0x4] sm:$0x1]
    %v71 = vld [vmem:[#allocation7 + $0x5] sm:$0x1]
    %v72 = vld [vmem:[%s1] sm:$0xff]
    %v73 = vld [vmem:[%s1 + $0x8] sm:$0xff]
    %v74 = vld [vmem:[%s1 + $0x10] sm:$0xff]
    %v75 = vld [vmem:[%s1 + $0x18] sm:$0xff]
    %v76 = vld [vmem:[%s1 + $0x20] sm:$0xff]
    %v77 = vld [vmem:[%s1 + $0x28] sm:$0xff]
    %v78 = vld [vmem:[%s1 + $0x30] sm:$0xff]
    %v79 = vld [vmem:[%s1 + $0x38] sm:$0xff]
    %v80 = vld [vmem:[%s1 + $0x40] sm:$0xff]
    %v81 = vld [vmem:[%s1 + $0x48] sm:$0xff]
    %v82 = vld [vmem:[%s1 + $0x50] sm:$0xff]
    %v83 = vld [vmem:[%s1 + $0x58] sm:$0xff]
    %v84 = vld [vmem:[%s1 + $0x60] sm:$0xff]
    %v85 = vld [vmem:[%s1 + $0x68] sm:$0xff]
    %v86 = vld [vmem:[%s1 + $0x70] sm:$0xff]
    %v87 = vld [vmem:[%s1 + $0x78] sm:$0xff]
    %v88 = vcvt.s32.f32 %v72
    %v89 = vcvt.s32.f32 %v73
    %v90 = vcvt.s32.f32 %v74
    %v91 = vcvt.s32.f32 %v75
    %v92 = vcvt.s32.f32 %v76
    %v93 = vcvt.s32.f32 %v77
    %v94 = vcvt.s32.f32 %v78
    %v95 = vcvt.s32.f32 %v79
    %v96 = vcvt.s32.f32 %v80
    %v97 = vcvt.s32.f32 %v81
    %v98 = vcvt.s32.f32 %v82
    %v99 = vcvt.s32.f32 %v83
    %v100 = vcvt.s32.f32 %v84
    %v101 = vcvt.s32.f32 %v85
    %v102 = vcvt.s32.f32 %v86
    %v103 = vcvt.s32.f32 %v87
    %105 = vset.pattern.permute.xlu0 0
    %106 = vperm.xlu0 %105, %v88
    %v107 = vpop.permute.xlu0 %106
    %110 = vset.pattern.permute.xlu0 0
    %111 = vperm.xlu0 %110, %v89
    %v112 = vpop.permute.xlu0 %111
    %115 = vset.pattern.permute.xlu0 0
    %116 = vperm.xlu0 %115, %v90
    %v117 = vpop.permute.xlu0 %116
    %120 = vset.pattern.permute.xlu0 0
    %121 = vperm.xlu0 %120, %v91
    %v122 = vpop.permute.xlu0 %121
    %125 = vset.pattern.permute.xlu0 0
    %126 = vperm.xlu0 %125, %v92
    %v127 = vpop.permute.xlu0 %126
    %130 = vset.pattern.permute.xlu0 0
    %131 = vperm.xlu0 %130, %v93
    %v132 = vpop.permute.xlu0 %131
    %135 = vset.pattern.permute.xlu0 0
    %136 = vperm.xlu0 %135, %v94
    %v137 = vpop.permute.xlu0 %136
    %140 = vset.pattern.permute.xlu0 0
    %141 = vperm.xlu0 %140, %v95
    %v142 = vpop.permute.xlu0 %141
    %145 = vset.pattern.permute.xlu0 0
    %146 = vperm.xlu0 %145, %v96
    %v147 = vpop.permute.xlu0 %146
    %150 = vset.pattern.permute.xlu0 0
    %151 = vperm.xlu0 %150, %v97
    %v152 = vpop.permute.xlu0 %151
    %155 = vset.pattern.permute.xlu0 0
    %156 = vperm.xlu0 %155, %v98
    %v157 = vpop.permute.xlu0 %156
    %160 = vset.pattern.permute.xlu0 0
    %161 = vperm.xlu0 %160, %v99
    %v162 = vpop.permute.xlu0 %161
    %165 = vset.pattern.permute.xlu0 0
    %166 = vperm.xlu0 %165, %v100
    %v167 = vpop.permute.xlu0 %166
    %170 = vset.pattern.permute.xlu0 0
    %171 = vperm.xlu0 %170, %v101
    %v172 = vpop.permute.xlu0 %171
    %175 = vset.pattern.permute.xlu0 0
    %176 = vperm.xlu0 %175, %v102
    %v177 = vpop.permute.xlu0 %176
    %180 = vset.pattern.permute.xlu0 0
    %181 = vperm.xlu0 %180, %v103
    %v182 = vpop.permute.xlu0 %181
    %v184 = vperm.slane %v70, 0
    %v185 = vmul.f32 %v107, %v184
    %v186 = vmul.f32 %v112, %v184
    %v187 = vmul.f32 %v117, %v184
    %v188 = vmul.f32 %v122, %v184
    %v189 = vmul.f32 %v127, %v184
    %v190 = vmul.f32 %v132, %v184
    %v191 = vmul.f32 %v137, %v184
    %v192 = vmul.f32 %v142, %v184
    %v193 = vmul.f32 %v147, %v184
    %v194 = vmul.f32 %v152, %v184
    %v195 = vmul.f32 %v157, %v184
    %v196 = vmul.f32 %v162, %v184
    %v197 = vmul.f32 %v167, %v184
    %v198 = vmul.f32 %v172, %v184
    %v199 = vmul.f32 %v177, %v184
    %v200 = vmul.f32 %v182, %v184
    %vm201 = vcmp.gt.f32.partialorder %v71, 0.5
    %v202 = vand.u32 2147483647, %v185
    %vm203 = vcmp.le.f32.partialorder %v202, 0.7853982
    %vm204 = vcmp.lt.s32.totalorder %v185, 0
    %v205 = vand.u32 %v185, 2139095040
    %v206 = vshrl.u32 %v205, 23
    %v207 = vsub.s32 %v206, 127
    %v208 = vand.u32 2147483647, %v185
    %v209 = vand.u32 %v208, 8388607
    %v210 = vor.u32 %v209, 8388608
    %v211 = vsub.s32 0, %v210
    %v212 = vadd.s32 %v207, 1
    %vm213 = vcmp.gt.s32.totalorder %v212, 0
    %v214 = vsel %vm213, %v212, 0
    %v215 = vshrl.u32 %v214, 5
    %v216 = vand.u32 %v214, 31
    %v217 = vsub.s32 32, %v216
    %v218 = vshrl.u32 683565275, %v217
    %v219 = vshll.u32 683565275, %v216
    %v220 = vshrl.u32 2475754826, %v217
    %v221 = vor.u32 %v219, %v220
    %v222 = vshll.u32 2475754826, %v216
    %v223 = vshrl.u32 2131351028, %v217
    %v224 = vor.u32 %v222, %v223
    %v225 = vshll.u32 2131351028, %v216
    %v226 = vshrl.u32 2102212464, %v217
    %v227 = vor.u32 %v225, %v226
    %v228 = vshll.u32 2102212464, %v216
    %v229 = vshrl.u32 920167782, %v217
    %v230 = vor.u32 %v228, %v229
    %v231 = vshll.u32 920167782, %v216
    %v232 = vshrl.u32 1326507024, %v217
    %v233 = vor.u32 %v231, %v232
    %vm234 = vcmp.lt.s32.totalorder %v215, 1
    %vm235 = vcmp.lt.s32.totalorder %v215, 2
    %vm236 = vcmp.lt.s32.totalorder %v215, 3
    %vm237 = vcmp.lt.s32.totalorder %v215, 4
    %v238 = vsel %vm234, %v218, %v221
    %v239 = vsel %vm237, %v227, 2102212464
    %v240 = vsel %vm236, %v224, %v239
    %v241 = vsel %vm235, %v238, %v240
    %v242 = vsel %vm234, %v221, %v224
    %v243 = vsel %vm237, %v230, 920167782
    %v244 = vsel %vm236, %v227, %v243
    %v245 = vsel %vm235, %v242, %v244
    %v246 = vsel %vm234, %v224, %v227
    %v247 = vsel %vm237, %v233, 1326507024
    %v248 = vsel %vm236, %v230, %v247
    %v249 = vsel %vm235, %v246, %v248
    %v250 = vshll.u32 %v210, 8
    %v251 = vand.u32 %v250, 65535
    %v252 = vshrl.u32 %v250, 16
    %v253 = vand.u32 %v249, 65535
    %v254 = vshrl.u32 %v249, 16
    %v255 = vmul.u32 %v251, %v253
    %v256 = vmul.u32 %v251, %v254
    %v257 = vmul.u32 %v252, %v253
    %v258 = vmul.u32 %v252, %v254
    %v259 = vshll.u32 %v256, 16
    %v260 = vshrl.u32 %v256, 16
    %v261 = vshll.u32 %v257, 16
    %v262 = vshrl.u32 %v257, 16
    %vm263 = vc.u32 %v255, %v259
    %v264 = vsel %vm263, 1, 0
    %v265 = vadd.s32 %v255, %v259
    %v266 = vadd.s32 %v258, %v264
    %vm267 = vc.u32 %v265, %v261
    %v268 = vsel %vm267, 1, 0
    %v269 = vadd.s32 %v265, %v261
    %v270 = vadd.s32 %v266, %v268
    %v271 = vadd.s32 %v270, %v260
    %v272 = vadd.s32 %v271, %v262
    %v273 = vand.u32 %v250, 65535
    %v274 = vshrl.u32 %v250, 16
    %v275 = vand.u32 %v245, 65535
    %v276 = vshrl.u32 %v245, 16
    %v277 = vmul.u32 %v273, %v275
    %v278 = vmul.u32 %v273, %v276
    %v279 = vmul.u32 %v274, %v275
    %v280 = vmul.u32 %v274, %v276
    %v281 = vshll.u32 %v278, 16
    %v282 = vshrl.u32 %v278, 16
    %v283 = vshll.u32 %v279, 16
    %v284 = vshrl.u32 %v279, 16
    %vm285 = vc.u32 %v277, %v281
    %v286 = vsel %vm285, 1, 0
    %v287 = vadd.s32 %v277, %v281
    %v288 = vadd.s32 %v280, %v286
    %vm289 = vc.u32 %v287, %v283
    %v290 = vsel %vm289, 1, 0
    %v291 = vadd.s32 %v287, %v283
    %v292 = vadd.s32 %v288, %v290
    %v293 = vadd.s32 %v292, %v282
    %v294 = vadd.s32 %v293, %v284
    %v295 = vmul.u32 %v250, %v241
    %v296 = vadd.s32 %v272, %v291
    %vm297 = vc.u32 %v272, %v291
    %v298 = vadd.s32 %v294, 1
    %v299 = vsel %vm297, %v298, %v294
    %v300 = vadd.s32 %v295, %v299
    %v301 = vadd.s32 %v300, 536870912
    %v302 = vshrl.u32 %v301, 30
    %v303 = vshll.u32 %v302, 30
    %v304 = vsub.s32 %v300, %v303
    %vm305 = vcmp.lt.s32.totalorder %v304, 0
    %v306 = vsub.s32 0, %v304
    %v307 = vsel %vm305, %v306, %v304
    %v308 = vclz %v307
    %v309 = vsub.s32 %v308, 2
    %vm310 = vcmp.gt.s32.totalorder 0, %v309
    %v311 = vsel %vm310, 0, %v309
    %v312 = vsub.s32 32, %v311
    %v313 = vshll.u32 %v304, %v311
    %v314 = vshrl.u32 %v296, %v312
    %v315 = vor.u32 %v313, %v314
    %v316 = vsub.s32 4294967266, %v311
    %v317 = vadd.s32 %v316, 127
    %v318 = vshll.u32 %v317, 23
    %v319 = vor.u32 4788187, %v318
    %v320 = vand.u32 2147483647, %v319
    %v322 = vcvt.s32.f32 %v315
    %v323 = vmul.f32 %v322, %v320
    %v324 = vxor.u32 %v323, 2147483648
    %v325 = vsel %vm204, %v324, %v323
    %v326 = vsub.s32 4, %v302
    %v327 = vsel %vm204, %v326, %v302
    %v328 = vsel %vm203, %v185, %v325
    %v329 = vsel %vm203, 0, %v327
    %v330 = vmul.f32 %v328, %v328
    %v331 = vmul.f32 %v330, -0.001358992
    %v332 = vadd.f32 %v331, 0.041655596
    %v333 = vmul.f32 %v330, %v332
    %v334 = vadd.f32 %v333, -0.4999988
    %v335 = vmul.f32 %v330, %v334
    %v336 = vadd.f32 1.0, %v335
    %v337 = vmul.f32 %v328, %v328
    %v338 = vmul.f32 %v337, -0.00019511016
    %v339 = vadd.f32 %v338, 0.008332121
    %v340 = vmul.f32 %v337, %v339
    %v341 = vadd.f32 %v340, -0.16666654
    %v342 = vmul.f32 %v337, %v341
    %v343 = vadd.f32 %v342, 1.0
    %v344 = vmul.f32 %v343, %v328
    %vm345 = vweird.f32 %v185
    %v346 = vand.u32 %v329, 3
    %vm347 = vcmp.lt.s32.totalorder %v346, 2
    %vm348 = vcmp.eq.s32.totalorder %v346, 0
    %v349 = vxor.u32 %v344, 2147483648
    %v350 = vsel %vm348, %v336, %v349
    %vm351 = vcmp.eq.s32.totalorder %v346, 2
    %v352 = vxor.u32 %v336, 2147483648
    %v353 = vsel %vm351, %v352, %v344
    %v354 = vsel %vm347, %v350, %v353
    %v355 = vsel %vm345, nan, %v354
    %v356 = vand.u32 2147483647, %v186
    %vm357 = vcmp.le.f32.partialorder %v356, 0.7853982
    %vm358 = vcmp.lt.s32.totalorder %v186, 0
    %v359 = vand.u32 %v186, 2139095040
    %v360 = vshrl.u32 %v359, 23
    %v361 = vsub.s32 %v360, 127
    %v362 = vand.u32 2147483647, %v186
    %v363 = vand.u32 %v362, 8388607
    %v364 = vor.u32 %v363, 8388608
    %v365 = vsub.s32 0, %v364
    %v366 = vadd.s32 %v361, 1
    %vm367 = vcmp.gt.s32.totalorder %v366, 0
    %v368 = vsel %vm367, %v366, 0
    %v369 = vshrl.u32 %v368, 5
    %v370 = vand.u32 %v368, 31
    %v371 = vsub.s32 32, %v370
    %v372 = vshrl.u32 683565275, %v371
    %v373 = vshll.u32 683565275, %v370
    %v374 = vshrl.u32 2475754826, %v371
    %v375 = vor.u32 %v373, %v374
    %v376 = vshll.u32 2475754826, %v370
    %v377 = vshrl.u32 2131351028, %v371
    %v378 = vor.u32 %v376, %v377
    %v379 = vshll.u32 2131351028, %v370
    %v380 = vshrl.u32 2102212464, %v371
    %v381 = vor.u32 %v379, %v380
    %v382 = vshll.u32 2102212464, %v370
    %v383 = vshrl.u32 920167782, %v371
    %v384 = vor.u32 %v382, %v383
    %v385 = vshll.u32 920167782, %v370
    %v386 = vshrl.u32 1326507024, %v371
    %v387 = vor.u32 %v385, %v386
    %vm388 = vcmp.lt.s32.totalorder %v369, 1
    %vm389 = vcmp.lt.s32.totalorder %v369, 2
    %vm390 = vcmp.lt.s32.totalorder %v369, 3
    %vm391 = vcmp.lt.s32.totalorder %v369, 4
    %v392 = vsel %vm388, %v372, %v375
    %v393 = vsel %vm391, %v381, 2102212464
    %v394 = vsel %vm390, %v378, %v393
    %v395 = vsel %vm389, %v392, %v394
    %v396 = vsel %vm388, %v375, %v378
    %v397 = vsel %vm391, %v384, 920167782
    %v398 = vsel %vm390, %v381, %v397
    %v399 = vsel %vm389, %v396, %v398
    %v400 = vsel %vm388, %v378, %v381
    %v401 = vsel %vm391, %v387, 1326507024
    %v402 = vsel %vm390, %v384, %v401
    %v403 = vsel %vm389, %v400, %v402
    %v404 = vshll.u32 %v364, 8
    %v405 = vand.u32 %v404, 65535
    %v406 = vshrl.u32 %v404, 16
    %v407 = vand.u32 %v403, 65535
    %v408 = vshrl.u32 %v403, 16
    %v409 = vmul.u32 %v405, %v407
    %v410 = vmul.u32 %v405, %v408
    %v411 = vmul.u32 %v406, %v407
    %v412 = vmul.u32 %v406, %v408
    %v413 = vshll.u32 %v410, 16
    %v414 = vshrl.u32 %v410, 16
    %v415 = vshll.u32 %v411, 16
    %v416 = vshrl.u32 %v411, 16
    %vm417 = vc.u32 %v409, %v413
    %v418 = vsel %vm417, 1, 0
    %v419 = vadd.s32 %v409, %v413
    %v420 = vadd.s32 %v412, %v418
    %vm421 = vc.u32 %v419, %v415
    %v422 = vsel %vm421, 1, 0
    %v423 = vadd.s32 %v419, %v415
    %v424 = vadd.s32 %v420, %v422
    %v425 = vadd.s32 %v424, %v414
    %v426 = vadd.s32 %v425, %v416
    %v427 = vand.u32 %v404, 65535
    %v428 = vshrl.u32 %v404, 16
    %v429 = vand.u32 %v399, 65535
    %v430 = vshrl.u32 %v399, 16
    %v431 = vmul.u32 %v427, %v429
    %v432 = vmul.u32 %v427, %v430
    %v433 = vmul.u32 %v428, %v429
    %v434 = vmul.u32 %v428, %v430
    %v435 = vshll.u32 %v432, 16
    %v436 = vshrl.u32 %v432, 16
    %v437 = vshll.u32 %v433, 16
    %v438 = vshrl.u32 %v433, 16
    %vm439 = vc.u32 %v431, %v435
    %v440 = vsel %vm439, 1, 0
    %v441 = vadd.s32 %v431, %v435
    %v442 = vadd.s32 %v434, %v440
    %vm443 = vc.u32 %v441, %v437
    %v444 = vsel %vm443, 1, 0
    %v445 = vadd.s32 %v441, %v437
    %v446 = vadd.s32 %v442, %v444
    %v447 = vadd.s32 %v446, %v436
    %v448 = vadd.s32 %v447, %v438
    %v449 = vmul.u32 %v404, %v395
    %v450 = vadd.s32 %v426, %v445
    %vm451 = vc.u32 %v426, %v445
    %v452 = vadd.s32 %v448, 1
    %v453 = vsel %vm451, %v452, %v448
    %v454 = vadd.s32 %v449, %v453
    %v455 = vadd.s32 %v454, 536870912
    %v456 = vshrl.u32 %v455, 30
    %v457 = vshll.u32 %v456, 30
    %v458 = vsub.s32 %v454, %v457
    %vm459 = vcmp.lt.s32.totalorder %v458, 0
    %v460 = vsub.s32 0, %v458
    %v461 = vsel %vm459, %v460, %v458
    %v462 = vclz %v461
    %v463 = vsub.s32 %v462, 2
    %vm464 = vcmp.gt.s32.totalorder 0, %v463
    %v465 = vsel %vm464, 0, %v463
    %v466 = vsub.s32 32, %v465
    %v467 = vshll.u32 %v458, %v465
    %v468 = vshrl.u32 %v450, %v466
    %v469 = vor.u32 %v467, %v468
    %v470 = vsub.s32 4294967266, %v465
    %v471 = vadd.s32 %v470, 127
    %v472 = vshll.u32 %v471, 23
    %v473 = vor.u32 4788187, %v472
    %v474 = vand.u32 2147483647, %v473
    %v476 = vcvt.s32.f32 %v469
    %v477 = vmul.f32 %v476, %v474
    %v478 = vxor.u32 %v477, 2147483648
    %v479 = vsel %vm358, %v478, %v477
    %v480 = vsub.s32 4, %v456
    %v481 = vsel %vm358, %v480, %v456
    %v482 = vsel %vm357, %v186, %v479
    %v483 = vsel %vm357, 0, %v481
    %v484 = vmul.f32 %v482, %v482
    %v485 = vmul.f32 %v484, -0.001358992
    %v486 = vadd.f32 %v485, 0.041655596
    %v487 = vmul.f32 %v484, %v486
    %v488 = vadd.f32 %v487, -0.4999988
    %v489 = vmul.f32 %v484, %v488
    %v490 = vadd.f32 1.0, %v489
    %v491 = vmul.f32 %v482, %v482
    %v492 = vmul.f32 %v491, -0.00019511016
    %v493 = vadd.f32 %v492, 0.008332121
    %v494 = vmul.f32 %v491, %v493
    %v495 = vadd.f32 %v494, -0.16666654
    %v496 = vmul.f32 %v491, %v495
    %v497 = vadd.f32 %v496, 1.0
    %v498 = vmul.f32 %v497, %v482
    %vm499 = vweird.f32 %v186
    %v500 = vand.u32 %v483, 3
    %vm501 = vcmp.lt.s32.totalorder %v500, 2
    %vm502 = vcmp.eq.s32.totalorder %v500, 0
    %v503 = vxor.u32 %v498, 2147483648
    %v504 = vsel %vm502, %v490, %v503
    %vm505 = vcmp.eq.s32.totalorder %v500, 2
    %v506 = vxor.u32 %v490, 2147483648
    %v507 = vsel %vm505, %v506, %v498
    %v508 = vsel %vm501, %v504, %v507
    %v509 = vsel %vm499, nan, %v508
    %v510 = vand.u32 2147483647, %v187
    %vm511 = vcmp.le.f32.partialorder %v510, 0.7853982
    %vm512 = vcmp.lt.s32.totalorder %v187, 0
    %v513 = vand.u32 %v187, 2139095040
    %v514 = vshrl.u32 %v513, 23
    %v515 = vsub.s32 %v514, 127
    %v516 = vand.u32 2147483647, %v187
    %v517 = vand.u32 %v516, 8388607
    %v518 = vor.u32 %v517, 8388608
    %v519 = vsub.s32 0, %v518
    %v520 = vadd.s32 %v515, 1
    %vm521 = vcmp.gt.s32.totalorder %v520, 0
    %v522 = vsel %vm521, %v520, 0
    %v523 = vshrl.u32 %v522, 5
    %v524 = vand.u32 %v522, 31
    %v525 = vsub.s32 32, %v524
    %v526 = vshrl.u32 683565275, %v525
    %v527 = vshll.u32 683565275, %v524
    %v528 = vshrl.u32 2475754826, %v525
    %v529 = vor.u32 %v527, %v528
    %v530 = vshll.u32 2475754826, %v524
    %v531 = vshrl.u32 2131351028, %v525
    %v532 = vor.u32 %v530, %v531
    %v533 = vshll.u32 2131351028, %v524
    %v534 = vshrl.u32 2102212464, %v525
    %v535 = vor.u32 %v533, %v534
    %v536 = vshll.u32 2102212464, %v524
    %v537 = vshrl.u32 920167782, %v525
    %v538 = vor.u32 %v536, %v537
    %v539 = vshll.u32 920167782, %v524
    %v540 = vshrl.u32 1326507024, %v525
    %v541 = vor.u32 %v539, %v540
    %vm542 = vcmp.lt.s32.totalorder %v523, 1
    %vm543 = vcmp.lt.s32.totalorder %v523, 2
    %vm544 = vcmp.lt.s32.totalorder %v523, 3
    %vm545 = vcmp.lt.s32.totalorder %v523, 4
    %v546 = vsel %vm542, %v526, %v529
    %v547 = vsel %vm545, %v535, 2102212464
    %v548 = vsel %vm544, %v532, %v547
    %v549 = vsel %vm543, %v546, %v548
    %v550 = vsel %vm542, %v529, %v532
    %v551 = vsel %vm545, %v538, 920167782
    %v552 = vsel %vm544, %v535, %v551
    %v553 = vsel %vm543, %v550, %v552
    %v554 = vsel %vm542, %v532, %v535
    %v555 = vsel %vm545, %v541, 1326507024
    %v556 = vsel %vm544, %v538, %v555
    %v557 = vsel %vm543, %v554, %v556
    %v558 = vshll.u32 %v518, 8
    %v559 = vand.u32 %v558, 65535
    %v560 = vshrl.u32 %v558, 16
    %v561 = vand.u32 %v557, 65535
    %v562 = vshrl.u32 %v557, 16
    %v563 = vmul.u32 %v559, %v561
    %v564 = vmul.u32 %v559, %v562
    %v565 = vmul.u32 %v560, %v561
    %v566 = vmul.u32 %v560, %v562
    %v567 = vshll.u32 %v564, 16
    %v568 = vshrl.u32 %v564, 16
    %v569 = vshll.u32 %v565, 16
    %v570 = vshrl.u32 %v565, 16
    %vm571 = vc.u32 %v563, %v567
    %v572 = vsel %vm571, 1, 0
    %v573 = vadd.s32 %v563, %v567
    %v574 = vadd.s32 %v566, %v572
    %vm575 = vc.u32 %v573, %v569
    %v576 = vsel %vm575, 1, 0
    %v577 = vadd.s32 %v573, %v569
    %v578 = vadd.s32 %v574, %v576
    %v579 = vadd.s32 %v578, %v568
    %v580 = vadd.s32 %v579, %v570
    %v581 = vand.u32 %v558, 65535
    %v582 = vshrl.u32 %v558, 16
    %v583 = vand.u32 %v553, 65535
    %v584 = vshrl.u32 %v553, 16
    %v585 = vmul.u32 %v581, %v583
    %v586 = vmul.u32 %v581, %v584
    %v587 = vmul.u32 %v582, %v583
    %v588 = vmul.u32 %v582, %v584
    %v589 = vshll.u32 %v586, 16
    %v590 = vshrl.u32 %v586, 16
    %v591 = vshll.u32 %v587, 16
    %v592 = vshrl.u32 %v587, 16
    %vm593 = vc.u32 %v585, %v589
    %v594 = vsel %vm593, 1, 0
    %v595 = vadd.s32 %v585, %v589
    %v596 = vadd.s32 %v588, %v594
    %vm597 = vc.u32 %v595, %v591
    %v598 = vsel %vm597, 1, 0
    %v599 = vadd.s32 %v595, %v591
    %v600 = vadd.s32 %v596, %v598
    %v601 = vadd.s32 %v600, %v590
    %v602 = vadd.s32 %v601, %v592
    %v603 = vmul.u32 %v558, %v549
    %v604 = vadd.s32 %v580, %v599
    %vm605 = vc.u32 %v580, %v599
    %v606 = vadd.s32 %v602, 1
    %v607 = vsel %vm605, %v606, %v602
    %v608 = vadd.s32 %v603, %v607
    %v609 = vadd.s32 %v608, 536870912
    %v610 = vshrl.u32 %v609, 30
    %v611 = vshll.u32 %v610, 30
    %v612 = vsub.s32 %v608, %v611
    %vm613 = vcmp.lt.s32.totalorder %v612, 0
    %v614 = vsub.s32 0, %v612
    %v615 = vsel %vm613, %v614, %v612
    %v616 = vclz %v615
    %v617 = vsub.s32 %v616, 2
    %vm618 = vcmp.gt.s32.totalorder 0, %v617
    %v619 = vsel %vm618, 0, %v617
    %v620 = vsub.s32 32, %v619
    %v621 = vshll.u32 %v612, %v619
    %v622 = vshrl.u32 %v604, %v620
    %v623 = vor.u32 %v621, %v622
    %v624 = vsub.s32 4294967266, %v619
    %v625 = vadd.s32 %v624, 127
    %v626 = vshll.u32 %v625, 23
    %v627 = vor.u32 4788187, %v626
    %v628 = vand.u32 2147483647, %v627
    %v630 = vcvt.s32.f32 %v623
    %v631 = vmul.f32 %v630, %v628
    %v632 = vxor.u32 %v631, 2147483648
    %v633 = vsel %vm512, %v632, %v631
    %v634 = vsub.s32 4, %v610
    %v635 = vsel %vm512, %v634, %v610
    %v636 = vsel %vm511, %v187, %v633
    %v637 = vsel %vm511, 0, %v635
    %v638 = vmul.f32 %v636, %v636
    %v639 = vmul.f32 %v638, -0.001358992
    %v640 = vadd.f32 %v639, 0.041655596
    %v641 = vmul.f32 %v638, %v640
    %v642 = vadd.f32 %v641, -0.4999988
    %v643 = vmul.f32 %v638, %v642
    %v644 = vadd.f32 1.0, %v643
    %v645 = vmul.f32 %v636, %v636
    %v646 = vmul.f32 %v645, -0.00019511016
    %v647 = vadd.f32 %v646, 0.008332121
    %v648 = vmul.f32 %v645, %v647
    %v649 = vadd.f32 %v648, -0.16666654
    %v650 = vmul.f32 %v645, %v649
    %v651 = vadd.f32 %v650, 1.0
    %v652 = vmul.f32 %v651, %v636
    %vm653 = vweird.f32 %v187
    %v654 = vand.u32 %v637, 3
    %vm655 = vcmp.lt.s32.totalorder %v654, 2
    %vm656 = vcmp.eq.s32.totalorder %v654, 0
    %v657 = vxor.u32 %v652, 2147483648
    %v658 = vsel %vm656, %v644, %v657
    %vm659 = vcmp.eq.s32.totalorder %v654, 2
    %v660 = vxor.u32 %v644, 2147483648
    %v661 = vsel %vm659, %v660, %v652
    %v662 = vsel %vm655, %v658, %v661
    %v663 = vsel %vm653, nan, %v662
    %v664 = vand.u32 2147483647, %v188
    %vm665 = vcmp.le.f32.partialorder %v664, 0.7853982
    %vm666 = vcmp.lt.s32.totalorder %v188, 0
    %v667 = vand.u32 %v188, 2139095040
    %v668 = vshrl.u32 %v667, 23
    %v669 = vsub.s32 %v668, 127
    %v670 = vand.u32 2147483647, %v188
    %v671 = vand.u32 %v670, 8388607
    %v672 = vor.u32 %v671, 8388608
    %v673 = vsub.s32 0, %v672
    %v674 = vadd.s32 %v669, 1
    %vm675 = vcmp.gt.s32.totalorder %v674, 0
    %v676 = vsel %vm675, %v674, 0
    %v677 = vshrl.u32 %v676, 5
    %v678 = vand.u32 %v676, 31
    %v679 = vsub.s32 32, %v678
    %v680 = vshrl.u32 683565275, %v679
    %v681 = vshll.u32 683565275, %v678
    %v682 = vshrl.u32 2475754826, %v679
    %v683 = vor.u32 %v681, %v682
    %v684 = vshll.u32 2475754826, %v678
    %v685 = vshrl.u32 2131351028, %v679
    %v686 = vor.u32 %v684, %v685
    %v687 = vshll.u32 2131351028, %v678
    %v688 = vshrl.u32 2102212464, %v679
    %v689 = vor.u32 %v687, %v688
    %v690 = vshll.u32 2102212464, %v678
    %v691 = vshrl.u32 920167782, %v679
    %v692 = vor.u32 %v690, %v691
    %v693 = vshll.u32 920167782, %v678
    %v694 = vshrl.u32 1326507024, %v679
    %v695 = vor.u32 %v693, %v694
    %vm696 = vcmp.lt.s32.totalorder %v677, 1
    %vm697 = vcmp.lt.s32.totalorder %v677, 2
    %vm698 = vcmp.lt.s32.totalorder %v677, 3
    %vm699 = vcmp.lt.s32.totalorder %v677, 4
    %v700 = vsel %vm696, %v680, %v683
    %v701 = vsel %vm699, %v689, 2102212464
    %v702 = vsel %vm698, %v686, %v701
    %v703 = vsel %vm697, %v700, %v702
    %v704 = vsel %vm696, %v683, %v686
    %v705 = vsel %vm699, %v692, 920167782
    %v706 = vsel %vm698, %v689, %v705
    %v707 = vsel %vm697, %v704, %v706
    %v708 = vsel %vm696, %v686, %v689
    %v709 = vsel %vm699, %v695, 1326507024
    %v710 = vsel %vm698, %v692, %v709
    %v711 = vsel %vm697, %v708, %v710
    %v712 = vshll.u32 %v672, 8
    %v713 = vand.u32 %v712, 65535
    %v714 = vshrl.u32 %v712, 16
    %v715 = vand.u32 %v711, 65535
    %v716 = vshrl.u32 %v711, 16
    %v717 = vmul.u32 %v713, %v715
    %v718 = vmul.u32 %v713, %v716
    %v719 = vmul.u32 %v714, %v715
    %v720 = vmul.u32 %v714, %v716
    %v721 = vshll.u32 %v718, 16
    %v722 = vshrl.u32 %v718, 16
    %v723 = vshll.u32 %v719, 16
    %v724 = vshrl.u32 %v719, 16
    %vm725 = vc.u32 %v717, %v721
    %v726 = vsel %vm725, 1, 0
    %v727 = vadd.s32 %v717, %v721
    %v728 = vadd.s32 %v720, %v726
    %vm729 = vc.u32 %v727, %v723
    %v730 = vsel %vm729, 1, 0
    %v731 = vadd.s32 %v727, %v723
    %v732 = vadd.s32 %v728, %v730
    %v733 = vadd.s32 %v732, %v722
    %v734 = vadd.s32 %v733, %v724
    %v735 = vand.u32 %v712, 65535
    %v736 = vshrl.u32 %v712, 16
    %v737 = vand.u32 %v707, 65535
    %v738 = vshrl.u32 %v707, 16
    %v739 = vmul.u32 %v735, %v737
    %v740 = vmul.u32 %v735, %v738
    %v741 = vmul.u32 %v736, %v737
    %v742 = vmul.u32 %v736, %v738
    %v743 = vshll.u32 %v740, 16
    %v744 = vshrl.u32 %v740, 16
    %v745 = vshll.u32 %v741, 16
    %v746 = vshrl.u32 %v741, 16
    %vm747 = vc.u32 %v739, %v743
    %v748 = vsel %vm747, 1, 0
    %v749 = vadd.s32 %v739, %v743
    %v750 = vadd.s32 %v742, %v748
    %vm751 = vc.u32 %v749, %v745
    %v752 = vsel %vm751, 1, 0
    %v753 = vadd.s32 %v749, %v745
    %v754 = vadd.s32 %v750, %v752
    %v755 = vadd.s32 %v754, %v744
    %v756 = vadd.s32 %v755, %v746
    %v757 = vmul.u32 %v712, %v703
    %v758 = vadd.s32 %v734, %v753
    %vm759 = vc.u32 %v734, %v753
    %v760 = vadd.s32 %v756, 1
    %v761 = vsel %vm759, %v760, %v756
    %v762 = vadd.s32 %v757, %v761
    %v763 = vadd.s32 %v762, 536870912
    %v764 = vshrl.u32 %v763, 30
    %v765 = vshll.u32 %v764, 30
    %v766 = vsub.s32 %v762, %v765
    %vm767 = vcmp.lt.s32.totalorder %v766, 0
    %v768 = vsub.s32 0, %v766
    %v769 = vsel %vm767, %v768, %v766
    %v770 = vclz %v769
    %v771 = vsub.s32 %v770, 2
    %vm772 = vcmp.gt.s32.totalorder 0, %v771
    %v773 = vsel %vm772, 0, %v771
    %v774 = vsub.s32 32, %v773
    %v775 = vshll.u32 %v766, %v773
    %v776 = vshrl.u32 %v758, %v774
    %v777 = vor.u32 %v775, %v776
    %v778 = vsub.s32 4294967266, %v773
    %v779 = vadd.s32 %v778, 127
    %v780 = vshll.u32 %v779, 23
    %v781 = vor.u32 4788187, %v780
    %v782 = vand.u32 2147483647, %v781
    %v784 = vcvt.s32.f32 %v777
    %v785 = vmul.f32 %v784, %v782
    %v786 = vxor.u32 %v785, 2147483648
    %v787 = vsel %vm666, %v786, %v785
    %v788 = vsub.s32 4, %v764
    %v789 = vsel %vm666, %v788, %v764
    %v790 = vsel %vm665, %v188, %v787
    %v791 = vsel %vm665, 0, %v789
    %v792 = vmul.f32 %v790, %v790
    %v793 = vmul.f32 %v792, -0.001358992
    %v794 = vadd.f32 %v793, 0.041655596
    %v795 = vmul.f32 %v792, %v794
    %v796 = vadd.f32 %v795, -0.4999988
    %v797 = vmul.f32 %v792, %v796
    %v798 = vadd.f32 1.0, %v797
    %v799 = vmul.f32 %v790, %v790
    %v800 = vmul.f32 %v799, -0.00019511016
    %v801 = vadd.f32 %v800, 0.008332121
    %v802 = vmul.f32 %v799, %v801
    %v803 = vadd.f32 %v802, -0.16666654
    %v804 = vmul.f32 %v799, %v803
    %v805 = vadd.f32 %v804, 1.0
    %v806 = vmul.f32 %v805, %v790
    %vm807 = vweird.f32 %v188
    %v808 = vand.u32 %v791, 3
    %vm809 = vcmp.lt.s32.totalorder %v808, 2
    %vm810 = vcmp.eq.s32.totalorder %v808, 0
    %v811 = vxor.u32 %v806, 2147483648
    %v812 = vsel %vm810, %v798, %v811
    %vm813 = vcmp.eq.s32.totalorder %v808, 2
    %v814 = vxor.u32 %v798, 2147483648
    %v815 = vsel %vm813, %v814, %v806
    %v816 = vsel %vm809, %v812, %v815
    %v817 = vsel %vm807, nan, %v816
    %v818 = vand.u32 2147483647, %v189
    %vm819 = vcmp.le.f32.partialorder %v818, 0.7853982
    %vm820 = vcmp.lt.s32.totalorder %v189, 0
    %v821 = vand.u32 %v189, 2139095040
    %v822 = vshrl.u32 %v821, 23
    %v823 = vsub.s32 %v822, 127
    %v824 = vand.u32 2147483647, %v189
    %v825 = vand.u32 %v824, 8388607
    %v826 = vor.u32 %v825, 8388608
    %v827 = vsub.s32 0, %v826
    %v828 = vadd.s32 %v823, 1
    %vm829 = vcmp.gt.s32.totalorder %v828, 0
    %v830 = vsel %vm829, %v828, 0
    %v831 = vshrl.u32 %v830, 5
    %v832 = vand.u32 %v830, 31
    %v833 = vsub.s32 32, %v832
    %v834 = vshrl.u32 683565275, %v833
    %v835 = vshll.u32 683565275, %v832
    %v836 = vshrl.u32 2475754826, %v833
    %v837 = vor.u32 %v835, %v836
    %v838 = vshll.u32 2475754826, %v832
    %v839 = vshrl.u32 2131351028, %v833
    %v840 = vor.u32 %v838, %v839
    %v841 = vshll.u32 2131351028, %v832
    %v842 = vshrl.u32 2102212464, %v833
    %v843 = vor.u32 %v841, %v842
    %v844 = vshll.u32 2102212464, %v832
    %v845 = vshrl.u32 920167782, %v833
    %v846 = vor.u32 %v844, %v845
    %v847 = vshll.u32 920167782, %v832
    %v848 = vshrl.u32 1326507024, %v833
    %v849 = vor.u32 %v847, %v848
    %vm850 = vcmp.lt.s32.totalorder %v831, 1
    %vm851 = vcmp.lt.s32.totalorder %v831, 2
    %vm852 = vcmp.lt.s32.totalorder %v831, 3
    %vm853 = vcmp.lt.s32.totalorder %v831, 4
    %v854 = vsel %vm850, %v834, %v837
    %v855 = vsel %vm853, %v843, 2102212464
    %v856 = vsel %vm852, %v840, %v855
    %v857 = vsel %vm851, %v854, %v856
    %v858 = vsel %vm850, %v837, %v840
    %v859 = vsel %vm853, %v846, 920167782
    %v860 = vsel %vm852, %v843, %v859
    %v861 = vsel %vm851, %v858, %v860
    %v862 = vsel %vm850, %v840, %v843
    %v863 = vsel %vm853, %v849, 1326507024
    %v864 = vsel %vm852, %v846, %v863
    %v865 = vsel %vm851, %v862, %v864
    %v866 = vshll.u32 %v826, 8
    %v867 = vand.u32 %v866, 65535
    %v868 = vshrl.u32 %v866, 16
    %v869 = vand.u32 %v865, 65535
    %v870 = vshrl.u32 %v865, 16
    %v871 = vmul.u32 %v867, %v869
    %v872 = vmul.u32 %v867, %v870
    %v873 = vmul.u32 %v868, %v869
    %v874 = vmul.u32 %v868, %v870
    %v875 = vshll.u32 %v872, 16
    %v876 = vshrl.u32 %v872, 16
    %v877 = vshll.u32 %v873, 16
    %v878 = vshrl.u32 %v873, 16
    %vm879 = vc.u32 %v871, %v875
    %v880 = vsel %vm879, 1, 0
    %v881 = vadd.s32 %v871, %v875
    %v882 = vadd.s32 %v874, %v880
    %vm883 = vc.u32 %v881, %v877
    %v884 = vsel %vm883, 1, 0
    %v885 = vadd.s32 %v881, %v877
    %v886 = vadd.s32 %v882, %v884
    %v887 = vadd.s32 %v886, %v876
    %v888 = vadd.s32 %v887, %v878
    %v889 = vand.u32 %v866, 65535
    %v890 = vshrl.u32 %v866, 16
    %v891 = vand.u32 %v861, 65535
    %v892 = vshrl.u32 %v861, 16
    %v893 = vmul.u32 %v889, %v891
    %v894 = vmul.u32 %v889, %v892
    %v895 = vmul.u32 %v890, %v891
    %v896 = vmul.u32 %v890, %v892
    %v897 = vshll.u32 %v894, 16
    %v898 = vshrl.u32 %v894, 16
    %v899 = vshll.u32 %v895, 16
    %v900 = vshrl.u32 %v895, 16
    %vm901 = vc.u32 %v893, %v897
    %v902 = vsel %vm901, 1, 0
    %v903 = vadd.s32 %v893, %v897
    %v904 = vadd.s32 %v896, %v902
    %vm905 = vc.u32 %v903, %v899
    %v906 = vsel %vm905, 1, 0
    %v907 = vadd.s32 %v903, %v899
    %v908 = vadd.s32 %v904, %v906
    %v909 = vadd.s32 %v908, %v898
    %v910 = vadd.s32 %v909, %v900
    %v911 = vmul.u32 %v866, %v857
    %v912 = vadd.s32 %v888, %v907
    %vm913 = vc.u32 %v888, %v907
    %v914 = vadd.s32 %v910, 1
    %v915 = vsel %vm913, %v914, %v910
    %v916 = vadd.s32 %v911, %v915
    %v917 = vadd.s32 %v916, 536870912
    %v918 = vshrl.u32 %v917, 30
    %v919 = vshll.u32 %v918, 30
    %v920 = vsub.s32 %v916, %v919
    %vm921 = vcmp.lt.s32.totalorder %v920, 0
    %v922 = vsub.s32 0, %v920
    %v923 = vsel %vm921, %v922, %v920
    %v924 = vclz %v923
    %v925 = vsub.s32 %v924, 2
    %vm926 = vcmp.gt.s32.totalorder 0, %v925
    %v927 = vsel %vm926, 0, %v925
    %v928 = vsub.s32 32, %v927
    %v929 = vshll.u32 %v920, %v927
    %v930 = vshrl.u32 %v912, %v928
    %v931 = vor.u32 %v929, %v930
    %v932 = vsub.s32 4294967266, %v927
    %v933 = vadd.s32 %v932, 127
    %v934 = vshll.u32 %v933, 23
    %v935 = vor.u32 4788187, %v934
    %v936 = vand.u32 2147483647, %v935
    %v938 = vcvt.s32.f32 %v931
    %v939 = vmul.f32 %v938, %v936
    %v940 = vxor.u32 %v939, 2147483648
    %v941 = vsel %vm820, %v940, %v939
    %v942 = vsub.s32 4, %v918
    %v943 = vsel %vm820, %v942, %v918
    %v944 = vsel %vm819, %v189, %v941
    %v945 = vsel %vm819, 0, %v943
    %v946 = vmul.f32 %v944, %v944
    %v947 = vmul.f32 %v946, -0.001358992
    %v948 = vadd.f32 %v947, 0.041655596
    %v949 = vmul.f32 %v946, %v948
    %v950 = vadd.f32 %v949, -0.4999988
    %v951 = vmul.f32 %v946, %v950
    %v952 = vadd.f32 1.0, %v951
    %v953 = vmul.f32 %v944, %v944
    %v954 = vmul.f32 %v953, -0.00019511016
    %v955 = vadd.f32 %v954, 0.008332121
    %v956 = vmul.f32 %v953, %v955
    %v957 = vadd.f32 %v956, -0.16666654
    %v958 = vmul.f32 %v953, %v957
    %v959 = vadd.f32 %v958, 1.0
    %v960 = vmul.f32 %v959, %v944
    %vm961 = vweird.f32 %v189
    %v962 = vand.u32 %v945, 3
    %vm963 = vcmp.lt.s32.totalorder %v962, 2
    %vm964 = vcmp.eq.s32.totalorder %v962, 0
    %v965 = vxor.u32 %v960, 2147483648
    %v966 = vsel %vm964, %v952, %v965
    %vm967 = vcmp.eq.s32.totalorder %v962, 2
    %v968 = vxor.u32 %v952, 2147483648
    %v969 = vsel %vm967, %v968, %v960
    %v970 = vsel %vm963, %v966, %v969
    %v971 = vsel %vm961, nan, %v970
    %v972 = vand.u32 2147483647, %v190
    %vm973 = vcmp.le.f32.partialorder %v972, 0.7853982
    %vm974 = vcmp.lt.s32.totalorder %v190, 0
    %v975 = vand.u32 %v190, 2139095040
    %v976 = vshrl.u32 %v975, 23
    %v977 = vsub.s32 %v976, 127
    %v978 = vand.u32 2147483647, %v190
    %v979 = vand.u32 %v978, 8388607
    %v980 = vor.u32 %v979, 8388608
    %v981 = vsub.s32 0, %v980
    %v982 = vadd.s32 %v977, 1
    %vm983 = vcmp.gt.s32.totalorder %v982, 0
    %v984 = vsel %vm983, %v982, 0
    %v985 = vshrl.u32 %v984, 5
    %v986 = vand.u32 %v984, 31
    %v987 = vsub.s32 32, %v986
    %v988 = vshrl.u32 683565275, %v987
    %v989 = vshll.u32 683565275, %v986
    %v990 = vshrl.u32 2475754826, %v987
    %v991 = vor.u32 %v989, %v990
    %v992 = vshll.u32 2475754826, %v986
    %v993 = vshrl.u32 2131351028, %v987
    %v994 = vor.u32 %v992, %v993
    %v995 = vshll.u32 2131351028, %v986
    %v996 = vshrl.u32 2102212464, %v987
    %v997 = vor.u32 %v995, %v996
    %v998 = vshll.u32 2102212464, %v986
    %v999 = vshrl.u32 920167782, %v987
    %v1000 = vor.u32 %v998, %v999
    %v1001 = vshll.u32 920167782, %v986
    %v1002 = vshrl.u32 1326507024, %v987
    %v1003 = vor.u32 %v1001, %v1002
    %vm1004 = vcmp.lt.s32.totalorder %v985, 1
    %vm1005 = vcmp.lt.s32.totalorder %v985, 2
    %vm1006 = vcmp.lt.s32.totalorder %v985, 3
    %vm1007 = vcmp.lt.s32.totalorder %v985, 4
    %v1008 = vsel %vm1004, %v988, %v991
    %v1009 = vsel %vm1007, %v997, 2102212464
    %v1010 = vsel %vm1006, %v994, %v1009
    %v1011 = vsel %vm1005, %v1008, %v1010
    %v1012 = vsel %vm1004, %v991, %v994
    %v1013 = vsel %vm1007, %v1000, 920167782
    %v1014 = vsel %vm1006, %v997, %v1013
    %v1015 = vsel %vm1005, %v1012, %v1014
    %v1016 = vsel %vm1004, %v994, %v997
    %v1017 = vsel %vm1007, %v1003, 1326507024
    %v1018 = vsel %vm1006, %v1000, %v1017
    %v1019 = vsel %vm1005, %v1016, %v1018
    %v1020 = vshll.u32 %v980, 8
    %v1021 = vand.u32 %v1020, 65535
    %v1022 = vshrl.u32 %v1020, 16
    %v1023 = vand.u32 %v1019, 65535
    %v1024 = vshrl.u32 %v1019, 16
    %v1025 = vmul.u32 %v1021, %v1023
    %v1026 = vmul.u32 %v1021, %v1024
    %v1027 = vmul.u32 %v1022, %v1023
    %v1028 = vmul.u32 %v1022, %v1024
    %v1029 = vshll.u32 %v1026, 16
    %v1030 = vshrl.u32 %v1026, 16
    %v1031 = vshll.u32 %v1027, 16
    %v1032 = vshrl.u32 %v1027, 16
    %vm1033 = vc.u32 %v1025, %v1029
    %v1034 = vsel %vm1033, 1, 0
    %v1035 = vadd.s32 %v1025, %v1029
    %v1036 = vadd.s32 %v1028, %v1034
    %vm1037 = vc.u32 %v1035, %v1031
    %v1038 = vsel %vm1037, 1, 0
    %v1039 = vadd.s32 %v1035, %v1031
    %v1040 = vadd.s32 %v1036, %v1038
    %v1041 = vadd.s32 %v1040, %v1030
    %v1042 = vadd.s32 %v1041, %v1032
    %v1043 = vand.u32 %v1020, 65535
    %v1044 = vshrl.u32 %v1020, 16
    %v1045 = vand.u32 %v1015, 65535
    %v1046 = vshrl.u32 %v1015, 16
    %v1047 = vmul.u32 %v1043, %v1045
    %v1048 = vmul.u32 %v1043, %v1046
    %v1049 = vmul.u32 %v1044, %v1045
    %v1050 = vmul.u32 %v1044, %v1046
    %v1051 = vshll.u32 %v1048, 16
    %v1052 = vshrl.u32 %v1048, 16
    %v1053 = vshll.u32 %v1049, 16
    %v1054 = vshrl.u32 %v1049, 16
    %vm1055 = vc.u32 %v1047, %v1051
    %v1056 = vsel %vm1055, 1, 0
    %v1057 = vadd.s32 %v1047, %v1051
    %v1058 = vadd.s32 %v1050, %v1056
    %vm1059 = vc.u32 %v1057, %v1053
    %v1060 = vsel %vm1059, 1, 0
    %v1061 = vadd.s32 %v1057, %v1053
    %v1062 = vadd.s32 %v1058, %v1060
    %v1063 = vadd.s32 %v1062, %v1052
    %v1064 = vadd.s32 %v1063, %v1054
    %v1065 = vmul.u32 %v1020, %v1011
    %v1066 = vadd.s32 %v1042, %v1061
    %vm1067 = vc.u32 %v1042, %v1061
    %v1068 = vadd.s32 %v1064, 1
    %v1069 = vsel %vm1067, %v1068, %v1064
    %v1070 = vadd.s32 %v1065, %v1069
    %v1071 = vadd.s32 %v1070, 536870912
    %v1072 = vshrl.u32 %v1071, 30
    %v1073 = vshll.u32 %v1072, 30
    %v1074 = vsub.s32 %v1070, %v1073
    %vm1075 = vcmp.lt.s32.totalorder %v1074, 0
    %v1076 = vsub.s32 0, %v1074
    %v1077 = vsel %vm1075, %v1076, %v1074
    %v1078 = vclz %v1077
    %v1079 = vsub.s32 %v1078, 2
    %vm1080 = vcmp.gt.s32.totalorder 0, %v1079
    %v1081 = vsel %vm1080, 0, %v1079
    %v1082 = vsub.s32 32, %v1081
    %v1083 = vshll.u32 %v1074, %v1081
    %v1084 = vshrl.u32 %v1066, %v1082
    %v1085 = vor.u32 %v1083, %v1084
    %v1086 = vsub.s32 4294967266, %v1081
    %v1087 = vadd.s32 %v1086, 127
    %v1088 = vshll.u32 %v1087, 23
    %v1089 = vor.u32 4788187, %v1088
    %v1090 = vand.u32 2147483647, %v1089
    %v1092 = vcvt.s32.f32 %v1085
    %v1093 = vmul.f32 %v1092, %v1090
    %v1094 = vxor.u32 %v1093, 2147483648
    %v1095 = vsel %vm974, %v1094, %v1093
    %v1096 = vsub.s32 4, %v1072
    %v1097 = vsel %vm974, %v1096, %v1072
    %v1098 = vsel %vm973, %v190, %v1095
    %v1099 = vsel %vm973, 0, %v1097
    %v1100 = vmul.f32 %v1098, %v1098
    %v1101 = vmul.f32 %v1100, -0.001358992
    %v1102 = vadd.f32 %v1101, 0.041655596
    %v1103 = vmul.f32 %v1100, %v1102
    %v1104 = vadd.f32 %v1103, -0.4999988
    %v1105 = vmul.f32 %v1100, %v1104
    %v1106 = vadd.f32 1.0, %v1105
    %v1107 = vmul.f32 %v1098, %v1098
    %v1108 = vmul.f32 %v1107, -0.00019511016
    %v1109 = vadd.f32 %v1108, 0.008332121
    %v1110 = vmul.f32 %v1107, %v1109
    %v1111 = vadd.f32 %v1110, -0.16666654
    %v1112 = vmul.f32 %v1107, %v1111
    %v1113 = vadd.f32 %v1112, 1.0
    %v1114 = vmul.f32 %v1113, %v1098
    %vm1115 = vweird.f32 %v190
    %v1116 = vand.u32 %v1099, 3
    %vm1117 = vcmp.lt.s32.totalorder %v1116, 2
    %vm1118 = vcmp.eq.s32.totalorder %v1116, 0
    %v1119 = vxor.u32 %v1114, 2147483648
    %v1120 = vsel %vm1118, %v1106, %v1119
    %vm1121 = vcmp.eq.s32.totalorder %v1116, 2
    %v1122 = vxor.u32 %v1106, 2147483648
    %v1123 = vsel %vm1121, %v1122, %v1114
    %v1124 = vsel %vm1117, %v1120, %v1123
    %v1125 = vsel %vm1115, nan, %v1124
    %v1126 = vand.u32 2147483647, %v191
    %vm1127 = vcmp.le.f32.partialorder %v1126, 0.7853982
    %vm1128 = vcmp.lt.s32.totalorder %v191, 0
    %v1129 = vand.u32 %v191, 2139095040
    %v1130 = vshrl.u32 %v1129, 23
    %v1131 = vsub.s32 %v1130, 127
    %v1132 = vand.u32 2147483647, %v191
    %v1133 = vand.u32 %v1132, 8388607
    %v1134 = vor.u32 %v1133, 8388608
    %v1135 = vsub.s32 0, %v1134
    %v1136 = vadd.s32 %v1131, 1
    %vm1137 = vcmp.gt.s32.totalorder %v1136, 0
    %v1138 = vsel %vm1137, %v1136, 0
    %v1139 = vshrl.u32 %v1138, 5
    %v1140 = vand.u32 %v1138, 31
    %v1141 = vsub.s32 32, %v1140
    %v1142 = vshrl.u32 683565275, %v1141
    %v1143 = vshll.u32 683565275, %v1140
    %v1144 = vshrl.u32 2475754826, %v1141
    %v1145 = vor.u32 %v1143, %v1144
    %v1146 = vshll.u32 2475754826, %v1140
    %v1147 = vshrl.u32 2131351028, %v1141
    %v1148 = vor.u32 %v1146, %v1147
    %v1149 = vshll.u32 2131351028, %v1140
    %v1150 = vshrl.u32 2102212464, %v1141
    %v1151 = vor.u32 %v1149, %v1150
    %v1152 = vshll.u32 2102212464, %v1140
    %v1153 = vshrl.u32 920167782, %v1141
    %v1154 = vor.u32 %v1152, %v1153
    %v1155 = vshll.u32 920167782, %v1140
    %v1156 = vshrl.u32 1326507024, %v1141
    %v1157 = vor.u32 %v1155, %v1156
    %vm1158 = vcmp.lt.s32.totalorder %v1139, 1
    %vm1159 = vcmp.lt.s32.totalorder %v1139, 2
    %vm1160 = vcmp.lt.s32.totalorder %v1139, 3
    %vm1161 = vcmp.lt.s32.totalorder %v1139, 4
    %v1162 = vsel %vm1158, %v1142, %v1145
    %v1163 = vsel %vm1161, %v1151, 2102212464
    %v1164 = vsel %vm1160, %v1148, %v1163
    %v1165 = vsel %vm1159, %v1162, %v1164
    %v1166 = vsel %vm1158, %v1145, %v1148
    %v1167 = vsel %vm1161, %v1154, 920167782
    %v1168 = vsel %vm1160, %v1151, %v1167
    %v1169 = vsel %vm1159, %v1166, %v1168
    %v1170 = vsel %vm1158, %v1148, %v1151
    %v1171 = vsel %vm1161, %v1157, 1326507024
    %v1172 = vsel %vm1160, %v1154, %v1171
    %v1173 = vsel %vm1159, %v1170, %v1172
    %v1174 = vshll.u32 %v1134, 8
    %v1175 = vand.u32 %v1174, 65535
    %v1176 = vshrl.u32 %v1174, 16
    %v1177 = vand.u32 %v1173, 65535
    %v1178 = vshrl.u32 %v1173, 16
    %v1179 = vmul.u32 %v1175, %v1177
    %v1180 = vmul.u32 %v1175, %v1178
    %v1181 = vmul.u32 %v1176, %v1177
    %v1182 = vmul.u32 %v1176, %v1178
    %v1183 = vshll.u32 %v1180, 16
    %v1184 = vshrl.u32 %v1180, 16
    %v1185 = vshll.u32 %v1181, 16
    %v1186 = vshrl.u32 %v1181, 16
    %vm1187 = vc.u32 %v1179, %v1183
    %v1188 = vsel %vm1187, 1, 0
    %v1189 = vadd.s32 %v1179, %v1183
    %v1190 = vadd.s32 %v1182, %v1188
    %vm1191 = vc.u32 %v1189, %v1185
    %v1192 = vsel %vm1191, 1, 0
    %v1193 = vadd.s32 %v1189, %v1185
    %v1194 = vadd.s32 %v1190, %v1192
    %v1195 = vadd.s32 %v1194, %v1184
    %v1196 = vadd.s32 %v1195, %v1186
    %v1197 = vand.u32 %v1174, 65535
    %v1198 = vshrl.u32 %v1174, 16
    %v1199 = vand.u32 %v1169, 65535
    %v1200 = vshrl.u32 %v1169, 16
    %v1201 = vmul.u32 %v1197, %v1199
    %v1202 = vmul.u32 %v1197, %v1200
    %v1203 = vmul.u32 %v1198, %v1199
    %v1204 = vmul.u32 %v1198, %v1200
    %v1205 = vshll.u32 %v1202, 16
    %v1206 = vshrl.u32 %v1202, 16
    %v1207 = vshll.u32 %v1203, 16
    %v1208 = vshrl.u32 %v1203, 16
    %vm1209 = vc.u32 %v1201, %v1205
    %v1210 = vsel %vm1209, 1, 0
    %v1211 = vadd.s32 %v1201, %v1205
    %v1212 = vadd.s32 %v1204, %v1210
    %vm1213 = vc.u32 %v1211, %v1207
    %v1214 = vsel %vm1213, 1, 0
    %v1215 = vadd.s32 %v1211, %v1207
    %v1216 = vadd.s32 %v1212, %v1214
    %v1217 = vadd.s32 %v1216, %v1206
    %v1218 = vadd.s32 %v1217, %v1208
    %v1219 = vmul.u32 %v1174, %v1165
    %v1220 = vadd.s32 %v1196, %v1215
    %vm1221 = vc.u32 %v1196, %v1215
    %v1222 = vadd.s32 %v1218, 1
    %v1223 = vsel %vm1221, %v1222, %v1218
    %v1224 = vadd.s32 %v1219, %v1223
    %v1225 = vadd.s32 %v1224, 536870912
    %v1226 = vshrl.u32 %v1225, 30
    %v1227 = vshll.u32 %v1226, 30
    %v1228 = vsub.s32 %v1224, %v1227
    %vm1229 = vcmp.lt.s32.totalorder %v1228, 0
    %v1230 = vsub.s32 0, %v1228
    %v1231 = vsel %vm1229, %v1230, %v1228
    %v1232 = vclz %v1231
    %v1233 = vsub.s32 %v1232, 2
    %vm1234 = vcmp.gt.s32.totalorder 0, %v1233
    %v1235 = vsel %vm1234, 0, %v1233
    %v1236 = vsub.s32 32, %v1235
    %v1237 = vshll.u32 %v1228, %v1235
    %v1238 = vshrl.u32 %v1220, %v1236
    %v1239 = vor.u32 %v1237, %v1238
    %v1240 = vsub.s32 4294967266, %v1235
    %v1241 = vadd.s32 %v1240, 127
    %v1242 = vshll.u32 %v1241, 23
    %v1243 = vor.u32 4788187, %v1242
    %v1244 = vand.u32 2147483647, %v1243
    %v1246 = vcvt.s32.f32 %v1239
    %v1247 = vmul.f32 %v1246, %v1244
    %v1248 = vxor.u32 %v1247, 2147483648
    %v1249 = vsel %vm1128, %v1248, %v1247
    %v1250 = vsub.s32 4, %v1226
    %v1251 = vsel %vm1128, %v1250, %v1226
    %v1252 = vsel %vm1127, %v191, %v1249
    %v1253 = vsel %vm1127, 0, %v1251
    %v1254 = vmul.f32 %v1252, %v1252
    %v1255 = vmul.f32 %v1254, -0.001358992
    %v1256 = vadd.f32 %v1255, 0.041655596
    %v1257 = vmul.f32 %v1254, %v1256
    %v1258 = vadd.f32 %v1257, -0.4999988
    %v1259 = vmul.f32 %v1254, %v1258
    %v1260 = vadd.f32 1.0, %v1259
    %v1261 = vmul.f32 %v1252, %v1252
    %v1262 = vmul.f32 %v1261, -0.00019511016
    %v1263 = vadd.f32 %v1262, 0.008332121
    %v1264 = vmul.f32 %v1261, %v1263
    %v1265 = vadd.f32 %v1264, -0.16666654
    %v1266 = vmul.f32 %v1261, %v1265
    %v1267 = vadd.f32 %v1266, 1.0
    %v1268 = vmul.f32 %v1267, %v1252
    %vm1269 = vweird.f32 %v191
    %v1270 = vand.u32 %v1253, 3
    %vm1271 = vcmp.lt.s32.totalorder %v1270, 2
    %vm1272 = vcmp.eq.s32.totalorder %v1270, 0
    %v1273 = vxor.u32 %v1268, 2147483648
    %v1274 = vsel %vm1272, %v1260, %v1273
    %vm1275 = vcmp.eq.s32.totalorder %v1270, 2
    %v1276 = vxor.u32 %v1260, 2147483648
    %v1277 = vsel %vm1275, %v1276, %v1268
    %v1278 = vsel %vm1271, %v1274, %v1277
    %v1279 = vsel %vm1269, nan, %v1278
    %v1280 = vand.u32 2147483647, %v192
    %vm1281 = vcmp.le.f32.partialorder %v1280, 0.7853982
    %vm1282 = vcmp.lt.s32.totalorder %v192, 0
    %v1283 = vand.u32 %v192, 2139095040
    %v1284 = vshrl.u32 %v1283, 23
    %v1285 = vsub.s32 %v1284, 127
    %v1286 = vand.u32 2147483647, %v192
    %v1287 = vand.u32 %v1286, 8388607
    %v1288 = vor.u32 %v1287, 8388608
    %v1289 = vsub.s32 0, %v1288
    %v1290 = vadd.s32 %v1285, 1
    %vm1291 = vcmp.gt.s32.totalorder %v1290, 0
    %v1292 = vsel %vm1291, %v1290, 0
    %v1293 = vshrl.u32 %v1292, 5
    %v1294 = vand.u32 %v1292, 31
    %v1295 = vsub.s32 32, %v1294
    %v1296 = vshrl.u32 683565275, %v1295
    %v1297 = vshll.u32 683565275, %v1294
    %v1298 = vshrl.u32 2475754826, %v1295
    %v1299 = vor.u32 %v1297, %v1298
    %v1300 = vshll.u32 2475754826, %v1294
    %v1301 = vshrl.u32 2131351028, %v1295
    %v1302 = vor.u32 %v1300, %v1301
    %v1303 = vshll.u32 2131351028, %v1294
    %v1304 = vshrl.u32 2102212464, %v1295
    %v1305 = vor.u32 %v1303, %v1304
    %v1306 = vshll.u32 2102212464, %v1294
    %v1307 = vshrl.u32 920167782, %v1295
    %v1308 = vor.u32 %v1306, %v1307
    %v1309 = vshll.u32 920167782, %v1294
    %v1310 = vshrl.u32 1326507024, %v1295
    %v1311 = vor.u32 %v1309, %v1310
    %vm1312 = vcmp.lt.s32.totalorder %v1293, 1
    %vm1313 = vcmp.lt.s32.totalorder %v1293, 2
    %vm1314 = vcmp.lt.s32.totalorder %v1293, 3
    %vm1315 = vcmp.lt.s32.totalorder %v1293, 4
    %v1316 = vsel %vm1312, %v1296, %v1299
    %v1317 = vsel %vm1315, %v1305, 2102212464
    %v1318 = vsel %vm1314, %v1302, %v1317
    %v1319 = vsel %vm1313, %v1316, %v1318
    %v1320 = vsel %vm1312, %v1299, %v1302
    %v1321 = vsel %vm1315, %v1308, 920167782
    %v1322 = vsel %vm1314, %v1305, %v1321
    %v1323 = vsel %vm1313, %v1320, %v1322
    %v1324 = vsel %vm1312, %v1302, %v1305
    %v1325 = vsel %vm1315, %v1311, 1326507024
    %v1326 = vsel %vm1314, %v1308, %v1325
    %v1327 = vsel %vm1313, %v1324, %v1326
    %v1328 = vshll.u32 %v1288, 8
    %v1329 = vand.u32 %v1328, 65535
    %v1330 = vshrl.u32 %v1328, 16
    %v1331 = vand.u32 %v1327, 65535
    %v1332 = vshrl.u32 %v1327, 16
    %v1333 = vmul.u32 %v1329, %v1331
    %v1334 = vmul.u32 %v1329, %v1332
    %v1335 = vmul.u32 %v1330, %v1331
    %v1336 = vmul.u32 %v1330, %v1332
    %v1337 = vshll.u32 %v1334, 16
    %v1338 = vshrl.u32 %v1334, 16
    %v1339 = vshll.u32 %v1335, 16
    %v1340 = vshrl.u32 %v1335, 16
    %vm1341 = vc.u32 %v1333, %v1337
    %v1342 = vsel %vm1341, 1, 0
    %v1343 = vadd.s32 %v1333, %v1337
    %v1344 = vadd.s32 %v1336, %v1342
    %vm1345 = vc.u32 %v1343, %v1339
    %v1346 = vsel %vm1345, 1, 0
    %v1347 = vadd.s32 %v1343, %v1339
    %v1348 = vadd.s32 %v1344, %v1346
    %v1349 = vadd.s32 %v1348, %v1338
    %v1350 = vadd.s32 %v1349, %v1340
    %v1351 = vand.u32 %v1328, 65535
    %v1352 = vshrl.u32 %v1328, 16
    %v1353 = vand.u32 %v1323, 65535
    %v1354 = vshrl.u32 %v1323, 16
    %v1355 = vmul.u32 %v1351, %v1353
    %v1356 = vmul.u32 %v1351, %v1354
    %v1357 = vmul.u32 %v1352, %v1353
    %v1358 = vmul.u32 %v1352, %v1354
    %v1359 = vshll.u32 %v1356, 16
    %v1360 = vshrl.u32 %v1356, 16
    %v1361 = vshll.u32 %v1357, 16
    %v1362 = vshrl.u32 %v1357, 16
    %vm1363 = vc.u32 %v1355, %v1359
    %v1364 = vsel %vm1363, 1, 0
    %v1365 = vadd.s32 %v1355, %v1359
    %v1366 = vadd.s32 %v1358, %v1364
    %vm1367 = vc.u32 %v1365, %v1361
    %v1368 = vsel %vm1367, 1, 0
    %v1369 = vadd.s32 %v1365, %v1361
    %v1370 = vadd.s32 %v1366, %v1368
    %v1371 = vadd.s32 %v1370, %v1360
    %v1372 = vadd.s32 %v1371, %v1362
    %v1373 = vmul.u32 %v1328, %v1319
    %v1374 = vadd.s32 %v1350, %v1369
    %vm1375 = vc.u32 %v1350, %v1369
    %v1376 = vadd.s32 %v1372, 1
    %v1377 = vsel %vm1375, %v1376, %v1372
    %v1378 = vadd.s32 %v1373, %v1377
    %v1379 = vadd.s32 %v1378, 536870912
    %v1380 = vshrl.u32 %v1379, 30
    %v1381 = vshll.u32 %v1380, 30
    %v1382 = vsub.s32 %v1378, %v1381
    %vm1383 = vcmp.lt.s32.totalorder %v1382, 0
    %v1384 = vsub.s32 0, %v1382
    %v1385 = vsel %vm1383, %v1384, %v1382
    %v1386 = vclz %v1385
    %v1387 = vsub.s32 %v1386, 2
    %vm1388 = vcmp.gt.s32.totalorder 0, %v1387
    %v1389 = vsel %vm1388, 0, %v1387
    %v1390 = vsub.s32 32, %v1389
    %v1391 = vshll.u32 %v1382, %v1389
    %v1392 = vshrl.u32 %v1374, %v1390
    %v1393 = vor.u32 %v1391, %v1392
    %v1394 = vsub.s32 4294967266, %v1389
    %v1395 = vadd.s32 %v1394, 127
    %v1396 = vshll.u32 %v1395, 23
    %v1397 = vor.u32 4788187, %v1396
    %v1398 = vand.u32 2147483647, %v1397
    %v1400 = vcvt.s32.f32 %v1393
    %v1401 = vmul.f32 %v1400, %v1398
    %v1402 = vxor.u32 %v1401, 2147483648
    %v1403 = vsel %vm1282, %v1402, %v1401
    %v1404 = vsub.s32 4, %v1380
    %v1405 = vsel %vm1282, %v1404, %v1380
    %v1406 = vsel %vm1281, %v192, %v1403
    %v1407 = vsel %vm1281, 0, %v1405
    %v1408 = vmul.f32 %v1406, %v1406
    %v1409 = vmul.f32 %v1408, -0.001358992
    %v1410 = vadd.f32 %v1409, 0.041655596
    %v1411 = vmul.f32 %v1408, %v1410
    %v1412 = vadd.f32 %v1411, -0.4999988
    %v1413 = vmul.f32 %v1408, %v1412
    %v1414 = vadd.f32 1.0, %v1413
    %v1415 = vmul.f32 %v1406, %v1406
    %v1416 = vmul.f32 %v1415, -0.00019511016
    %v1417 = vadd.f32 %v1416, 0.008332121
    %v1418 = vmul.f32 %v1415, %v1417
    %v1419 = vadd.f32 %v1418, -0.16666654
    %v1420 = vmul.f32 %v1415, %v1419
    %v1421 = vadd.f32 %v1420, 1.0
    %v1422 = vmul.f32 %v1421, %v1406
    %vm1423 = vweird.f32 %v192
    %v1424 = vand.u32 %v1407, 3
    %vm1425 = vcmp.lt.s32.totalorder %v1424, 2
    %vm1426 = vcmp.eq.s32.totalorder %v1424, 0
    %v1427 = vxor.u32 %v1422, 2147483648
    %v1428 = vsel %vm1426, %v1414, %v1427
    %vm1429 = vcmp.eq.s32.totalorder %v1424, 2
    %v1430 = vxor.u32 %v1414, 2147483648
    %v1431 = vsel %vm1429, %v1430, %v1422
    %v1432 = vsel %vm1425, %v1428, %v1431
    %v1433 = vsel %vm1423, nan, %v1432
    %v1434 = vand.u32 2147483647, %v193
    %vm1435 = vcmp.le.f32.partialorder %v1434, 0.7853982
    %vm1436 = vcmp.lt.s32.totalorder %v193, 0
    %v1437 = vand.u32 %v193, 2139095040
    %v1438 = vshrl.u32 %v1437, 23
    %v1439 = vsub.s32 %v1438, 127
    %v1440 = vand.u32 2147483647, %v193
    %v1441 = vand.u32 %v1440, 8388607
    %v1442 = vor.u32 %v1441, 8388608
    %v1443 = vsub.s32 0, %v1442
    %v1444 = vadd.s32 %v1439, 1
    %vm1445 = vcmp.gt.s32.totalorder %v1444, 0
    %v1446 = vsel %vm1445, %v1444, 0
    %v1447 = vshrl.u32 %v1446, 5
    %v1448 = vand.u32 %v1446, 31
    %v1449 = vsub.s32 32, %v1448
    %v1450 = vshrl.u32 683565275, %v1449
    %v1451 = vshll.u32 683565275, %v1448
    %v1452 = vshrl.u32 2475754826, %v1449
    %v1453 = vor.u32 %v1451, %v1452
    %v1454 = vshll.u32 2475754826, %v1448
    %v1455 = vshrl.u32 2131351028, %v1449
    %v1456 = vor.u32 %v1454, %v1455
    %v1457 = vshll.u32 2131351028, %v1448
    %v1458 = vshrl.u32 2102212464, %v1449
    %v1459 = vor.u32 %v1457, %v1458
    %v1460 = vshll.u32 2102212464, %v1448
    %v1461 = vshrl.u32 920167782, %v1449
    %v1462 = vor.u32 %v1460, %v1461
    %v1463 = vshll.u32 920167782, %v1448
    %v1464 = vshrl.u32 1326507024, %v1449
    %v1465 = vor.u32 %v1463, %v1464
    %vm1466 = vcmp.lt.s32.totalorder %v1447, 1
    %vm1467 = vcmp.lt.s32.totalorder %v1447, 2
    %vm1468 = vcmp.lt.s32.totalorder %v1447, 3
    %vm1469 = vcmp.lt.s32.totalorder %v1447, 4
    %v1470 = vsel %vm1466, %v1450, %v1453
    %v1471 = vsel %vm1469, %v1459, 2102212464
    %v1472 = vsel %vm1468, %v1456, %v1471
    %v1473 = vsel %vm1467, %v1470, %v1472
    %v1474 = vsel %vm1466, %v1453, %v1456
    %v1475 = vsel %vm1469, %v1462, 920167782
    %v1476 = vsel %vm1468, %v1459, %v1475
    %v1477 = vsel %vm1467, %v1474, %v1476
    %v1478 = vsel %vm1466, %v1456, %v1459
    %v1479 = vsel %vm1469, %v1465, 1326507024
    %v1480 = vsel %vm1468, %v1462, %v1479
    %v1481 = vsel %vm1467, %v1478, %v1480
    %v1482 = vshll.u32 %v1442, 8
    %v1483 = vand.u32 %v1482, 65535
    %v1484 = vshrl.u32 %v1482, 16
    %v1485 = vand.u32 %v1481, 65535
    %v1486 = vshrl.u32 %v1481, 16
    %v1487 = vmul.u32 %v1483, %v1485
    %v1488 = vmul.u32 %v1483, %v1486
    %v1489 = vmul.u32 %v1484, %v1485
    %v1490 = vmul.u32 %v1484, %v1486
    %v1491 = vshll.u32 %v1488, 16
    %v1492 = vshrl.u32 %v1488, 16
    %v1493 = vshll.u32 %v1489, 16
    %v1494 = vshrl.u32 %v1489, 16
    %vm1495 = vc.u32 %v1487, %v1491
    %v1496 = vsel %vm1495, 1, 0
    %v1497 = vadd.s32 %v1487, %v1491
    %v1498 = vadd.s32 %v1490, %v1496
    %vm1499 = vc.u32 %v1497, %v1493
    %v1500 = vsel %vm1499, 1, 0
    %v1501 = vadd.s32 %v1497, %v1493
    %v1502 = vadd.s32 %v1498, %v1500
    %v1503 = vadd.s32 %v1502, %v1492
    %v1504 = vadd.s32 %v1503, %v1494
    %v1505 = vand.u32 %v1482, 65535
    %v1506 = vshrl.u32 %v1482, 16
    %v1507 = vand.u32 %v1477, 65535
    %v1508 = vshrl.u32 %v1477, 16
    %v1509 = vmul.u32 %v1505, %v1507
    %v1510 = vmul.u32 %v1505, %v1508
    %v1511 = vmul.u32 %v1506, %v1507
    %v1512 = vmul.u32 %v1506, %v1508
    %v1513 = vshll.u32 %v1510, 16
    %v1514 = vshrl.u32 %v1510, 16
    %v1515 = vshll.u32 %v1511, 16
    %v1516 = vshrl.u32 %v1511, 16
    %vm1517 = vc.u32 %v1509, %v1513
    %v1518 = vsel %vm1517, 1, 0
    %v1519 = vadd.s32 %v1509, %v1513
    %v1520 = vadd.s32 %v1512, %v1518
    %vm1521 = vc.u32 %v1519, %v1515
    %v1522 = vsel %vm1521, 1, 0
    %v1523 = vadd.s32 %v1519, %v1515
    %v1524 = vadd.s32 %v1520, %v1522
    %v1525 = vadd.s32 %v1524, %v1514
    %v1526 = vadd.s32 %v1525, %v1516
    %v1527 = vmul.u32 %v1482, %v1473
    %v1528 = vadd.s32 %v1504, %v1523
    %vm1529 = vc.u32 %v1504, %v1523
    %v1530 = vadd.s32 %v1526, 1
    %v1531 = vsel %vm1529, %v1530, %v1526
    %v1532 = vadd.s32 %v1527, %v1531
    %v1533 = vadd.s32 %v1532, 536870912
    %v1534 = vshrl.u32 %v1533, 30
    %v1535 = vshll.u32 %v1534, 30
    %v1536 = vsub.s32 %v1532, %v1535
    %vm1537 = vcmp.lt.s32.totalorder %v1536, 0
    %v1538 = vsub.s32 0, %v1536
    %v1539 = vsel %vm1537, %v1538, %v1536
    %v1540 = vclz %v1539
    %v1541 = vsub.s32 %v1540, 2
    %vm1542 = vcmp.gt.s32.totalorder 0, %v1541
    %v1543 = vsel %vm1542, 0, %v1541
    %v1544 = vsub.s32 32, %v1543
    %v1545 = vshll.u32 %v1536, %v1543
    %v1546 = vshrl.u32 %v1528, %v1544
    %v1547 = vor.u32 %v1545, %v1546
    %v1548 = vsub.s32 4294967266, %v1543
    %v1549 = vadd.s32 %v1548, 127
    %v1550 = vshll.u32 %v1549, 23
    %v1551 = vor.u32 4788187, %v1550
    %v1552 = vand.u32 2147483647, %v1551
    %v1554 = vcvt.s32.f32 %v1547
    %v1555 = vmul.f32 %v1554, %v1552
    %v1556 = vxor.u32 %v1555, 2147483648
    %v1557 = vsel %vm1436, %v1556, %v1555
    %v1558 = vsub.s32 4, %v1534
    %v1559 = vsel %vm1436, %v1558, %v1534
    %v1560 = vsel %vm1435, %v193, %v1557
    %v1561 = vsel %vm1435, 0, %v1559
    %v1562 = vmul.f32 %v1560, %v1560
    %v1563 = vmul.f32 %v1562, -0.001358992
    %v1564 = vadd.f32 %v1563, 0.041655596
    %v1565 = vmul.f32 %v1562, %v1564
    %v1566 = vadd.f32 %v1565, -0.4999988
    %v1567 = vmul.f32 %v1562, %v1566
    %v1568 = vadd.f32 1.0, %v1567
    %v1569 = vmul.f32 %v1560, %v1560
    %v1570 = vmul.f32 %v1569, -0.00019511016
    %v1571 = vadd.f32 %v1570, 0.008332121
    %v1572 = vmul.f32 %v1569, %v1571
    %v1573 = vadd.f32 %v1572, -0.16666654
    %v1574 = vmul.f32 %v1569, %v1573
    %v1575 = vadd.f32 %v1574, 1.0
    %v1576 = vmul.f32 %v1575, %v1560
    %vm1577 = vweird.f32 %v193
    %v1578 = vand.u32 %v1561, 3
    %vm1579 = vcmp.lt.s32.totalorder %v1578, 2
    %vm1580 = vcmp.eq.s32.totalorder %v1578, 0
    %v1581 = vxor.u32 %v1576, 2147483648
    %v1582 = vsel %vm1580, %v1568, %v1581
    %vm1583 = vcmp.eq.s32.totalorder %v1578, 2
    %v1584 = vxor.u32 %v1568, 2147483648
    %v1585 = vsel %vm1583, %v1584, %v1576
    %v1586 = vsel %vm1579, %v1582, %v1585
    %v1587 = vsel %vm1577, nan, %v1586
    %v1588 = vand.u32 2147483647, %v194
    %vm1589 = vcmp.le.f32.partialorder %v1588, 0.7853982
    %vm1590 = vcmp.lt.s32.totalorder %v194, 0
    %v1591 = vand.u32 %v194, 2139095040
    %v1592 = vshrl.u32 %v1591, 23
    %v1593 = vsub.s32 %v1592, 127
    %v1594 = vand.u32 2147483647, %v194
    %v1595 = vand.u32 %v1594, 8388607
    %v1596 = vor.u32 %v1595, 8388608
    %v1597 = vsub.s32 0, %v1596
    %v1598 = vadd.s32 %v1593, 1
    %vm1599 = vcmp.gt.s32.totalorder %v1598, 0
    %v1600 = vsel %vm1599, %v1598, 0
    %v1601 = vshrl.u32 %v1600, 5
    %v1602 = vand.u32 %v1600, 31
    %v1603 = vsub.s32 32, %v1602
    %v1604 = vshrl.u32 683565275, %v1603
    %v1605 = vshll.u32 683565275, %v1602
    %v1606 = vshrl.u32 2475754826, %v1603
    %v1607 = vor.u32 %v1605, %v1606
    %v1608 = vshll.u32 2475754826, %v1602
    %v1609 = vshrl.u32 2131351028, %v1603
    %v1610 = vor.u32 %v1608, %v1609
    %v1611 = vshll.u32 2131351028, %v1602
    %v1612 = vshrl.u32 2102212464, %v1603
    %v1613 = vor.u32 %v1611, %v1612
    %v1614 = vshll.u32 2102212464, %v1602
    %v1615 = vshrl.u32 920167782, %v1603
    %v1616 = vor.u32 %v1614, %v1615
    %v1617 = vshll.u32 920167782, %v1602
    %v1618 = vshrl.u32 1326507024, %v1603
    %v1619 = vor.u32 %v1617, %v1618
    %vm1620 = vcmp.lt.s32.totalorder %v1601, 1
    %vm1621 = vcmp.lt.s32.totalorder %v1601, 2
    %vm1622 = vcmp.lt.s32.totalorder %v1601, 3
    %vm1623 = vcmp.lt.s32.totalorder %v1601, 4
    %v1624 = vsel %vm1620, %v1604, %v1607
    %v1625 = vsel %vm1623, %v1613, 2102212464
    %v1626 = vsel %vm1622, %v1610, %v1625
    %v1627 = vsel %vm1621, %v1624, %v1626
    %v1628 = vsel %vm1620, %v1607, %v1610
    %v1629 = vsel %vm1623, %v1616, 920167782
    %v1630 = vsel %vm1622, %v1613, %v1629
    %v1631 = vsel %vm1621, %v1628, %v1630
    %v1632 = vsel %vm1620, %v1610, %v1613
    %v1633 = vsel %vm1623, %v1619, 1326507024
    %v1634 = vsel %vm1622, %v1616, %v1633
    %v1635 = vsel %vm1621, %v1632, %v1634
    %v1636 = vshll.u32 %v1596, 8
    %v1637 = vand.u32 %v1636, 65535
    %v1638 = vshrl.u32 %v1636, 16
    %v1639 = vand.u32 %v1635, 65535
    %v1640 = vshrl.u32 %v1635, 16
    %v1641 = vmul.u32 %v1637, %v1639
    %v1642 = vmul.u32 %v1637, %v1640
    %v1643 = vmul.u32 %v1638, %v1639
    %v1644 = vmul.u32 %v1638, %v1640
    %v1645 = vshll.u32 %v1642, 16
    %v1646 = vshrl.u32 %v1642, 16
    %v1647 = vshll.u32 %v1643, 16
    %v1648 = vshrl.u32 %v1643, 16
    %vm1649 = vc.u32 %v1641, %v1645
    %v1650 = vsel %vm1649, 1, 0
    %v1651 = vadd.s32 %v1641, %v1645
    %v1652 = vadd.s32 %v1644, %v1650
    %vm1653 = vc.u32 %v1651, %v1647
    %v1654 = vsel %vm1653, 1, 0
    %v1655 = vadd.s32 %v1651, %v1647
    %v1656 = vadd.s32 %v1652, %v1654
    %v1657 = vadd.s32 %v1656, %v1646
    %v1658 = vadd.s32 %v1657, %v1648
    %v1659 = vand.u32 %v1636, 65535
    %v1660 = vshrl.u32 %v1636, 16
    %v1661 = vand.u32 %v1631, 65535
    %v1662 = vshrl.u32 %v1631, 16
    %v1663 = vmul.u32 %v1659, %v1661
    %v1664 = vmul.u32 %v1659, %v1662
    %v1665 = vmul.u32 %v1660, %v1661
    %v1666 = vmul.u32 %v1660, %v1662
    %v1667 = vshll.u32 %v1664, 16
    %v1668 = vshrl.u32 %v1664, 16
    %v1669 = vshll.u32 %v1665, 16
    %v1670 = vshrl.u32 %v1665, 16
    %vm1671 = vc.u32 %v1663, %v1667
    %v1672 = vsel %vm1671, 1, 0
    %v1673 = vadd.s32 %v1663, %v1667
    %v1674 = vadd.s32 %v1666, %v1672
    %vm1675 = vc.u32 %v1673, %v1669
    %v1676 = vsel %vm1675, 1, 0
    %v1677 = vadd.s32 %v1673, %v1669
    %v1678 = vadd.s32 %v1674, %v1676
    %v1679 = vadd.s32 %v1678, %v1668
    %v1680 = vadd.s32 %v1679, %v1670
    %v1681 = vmul.u32 %v1636, %v1627
    %v1682 = vadd.s32 %v1658, %v1677
    %vm1683 = vc.u32 %v1658, %v1677
    %v1684 = vadd.s32 %v1680, 1
    %v1685 = vsel %vm1683, %v1684, %v1680
    %v1686 = vadd.s32 %v1681, %v1685
    %v1687 = vadd.s32 %v1686, 536870912
    %v1688 = vshrl.u32 %v1687, 30
    %v1689 = vshll.u32 %v1688, 30
    %v1690 = vsub.s32 %v1686, %v1689
    %vm1691 = vcmp.lt.s32.totalorder %v1690, 0
    %v1692 = vsub.s32 0, %v1690
    %v1693 = vsel %vm1691, %v1692, %v1690
    %v1694 = vclz %v1693
    %v1695 = vsub.s32 %v1694, 2
    %vm1696 = vcmp.gt.s32.totalorder 0, %v1695
    %v1697 = vsel %vm1696, 0, %v1695
    %v1698 = vsub.s32 32, %v1697
    %v1699 = vshll.u32 %v1690, %v1697
    %v1700 = vshrl.u32 %v1682, %v1698
    %v1701 = vor.u32 %v1699, %v1700
    %v1702 = vsub.s32 4294967266, %v1697
    %v1703 = vadd.s32 %v1702, 127
    %v1704 = vshll.u32 %v1703, 23
    %v1705 = vor.u32 4788187, %v1704
    %v1706 = vand.u32 2147483647, %v1705
    %v1708 = vcvt.s32.f32 %v1701
    %v1709 = vmul.f32 %v1708, %v1706
    %v1710 = vxor.u32 %v1709, 2147483648
    %v1711 = vsel %vm1590, %v1710, %v1709
    %v1712 = vsub.s32 4, %v1688
    %v1713 = vsel %vm1590, %v1712, %v1688
    %v1714 = vsel %vm1589, %v194, %v1711
    %v1715 = vsel %vm1589, 0, %v1713
    %v1716 = vmul.f32 %v1714, %v1714
    %v1717 = vmul.f32 %v1716, -0.001358992
    %v1718 = vadd.f32 %v1717, 0.041655596
    %v1719 = vmul.f32 %v1716, %v1718
    %v1720 = vadd.f32 %v1719, -0.4999988
    %v1721 = vmul.f32 %v1716, %v1720
    %v1722 = vadd.f32 1.0, %v1721
    %v1723 = vmul.f32 %v1714, %v1714
    %v1724 = vmul.f32 %v1723, -0.00019511016
    %v1725 = vadd.f32 %v1724, 0.008332121
    %v1726 = vmul.f32 %v1723, %v1725
    %v1727 = vadd.f32 %v1726, -0.16666654
    %v1728 = vmul.f32 %v1723, %v1727
    %v1729 = vadd.f32 %v1728, 1.0
    %v1730 = vmul.f32 %v1729, %v1714
    %vm1731 = vweird.f32 %v194
    %v1732 = vand.u32 %v1715, 3
    %vm1733 = vcmp.lt.s32.totalorder %v1732, 2
    %vm1734 = vcmp.eq.s32.totalorder %v1732, 0
    %v1735 = vxor.u32 %v1730, 2147483648
    %v1736 = vsel %vm1734, %v1722, %v1735
    %vm1737 = vcmp.eq.s32.totalorder %v1732, 2
    %v1738 = vxor.u32 %v1722, 2147483648
    %v1739 = vsel %vm1737, %v1738, %v1730
    %v1740 = vsel %vm1733, %v1736, %v1739
    %v1741 = vsel %vm1731, nan, %v1740
    %v1742 = vand.u32 2147483647, %v195
    %vm1743 = vcmp.le.f32.partialorder %v1742, 0.7853982
    %vm1744 = vcmp.lt.s32.totalorder %v195, 0
    %v1745 = vand.u32 %v195, 2139095040
    %v1746 = vshrl.u32 %v1745, 23
    %v1747 = vsub.s32 %v1746, 127
    %v1748 = vand.u32 2147483647, %v195
    %v1749 = vand.u32 %v1748, 8388607
    %v1750 = vor.u32 %v1749, 8388608
    %v1751 = vsub.s32 0, %v1750
    %v1752 = vadd.s32 %v1747, 1
    %vm1753 = vcmp.gt.s32.totalorder %v1752, 0
    %v1754 = vsel %vm1753, %v1752, 0
    %v1755 = vshrl.u32 %v1754, 5
    %v1756 = vand.u32 %v1754, 31
    %v1757 = vsub.s32 32, %v1756
    %v1758 = vshrl.u32 683565275, %v1757
    %v1759 = vshll.u32 683565275, %v1756
    %v1760 = vshrl.u32 2475754826, %v1757
    %v1761 = vor.u32 %v1759, %v1760
    %v1762 = vshll.u32 2475754826, %v1756
    %v1763 = vshrl.u32 2131351028, %v1757
    %v1764 = vor.u32 %v1762, %v1763
    %v1765 = vshll.u32 2131351028, %v1756
    %v1766 = vshrl.u32 2102212464, %v1757
    %v1767 = vor.u32 %v1765, %v1766
    %v1768 = vshll.u32 2102212464, %v1756
    %v1769 = vshrl.u32 920167782, %v1757
    %v1770 = vor.u32 %v1768, %v1769
    %v1771 = vshll.u32 920167782, %v1756
    %v1772 = vshrl.u32 1326507024, %v1757
    %v1773 = vor.u32 %v1771, %v1772
    %vm1774 = vcmp.lt.s32.totalorder %v1755, 1
    %vm1775 = vcmp.lt.s32.totalorder %v1755, 2
    %vm1776 = vcmp.lt.s32.totalorder %v1755, 3
    %vm1777 = vcmp.lt.s32.totalorder %v1755, 4
    %v1778 = vsel %vm1774, %v1758, %v1761
    %v1779 = vsel %vm1777, %v1767, 2102212464
    %v1780 = vsel %vm1776, %v1764, %v1779
    %v1781 = vsel %vm1775, %v1778, %v1780
    %v1782 = vsel %vm1774, %v1761, %v1764
    %v1783 = vsel %vm1777, %v1770, 920167782
    %v1784 = vsel %vm1776, %v1767, %v1783
    %v1785 = vsel %vm1775, %v1782, %v1784
    %v1786 = vsel %vm1774, %v1764, %v1767
    %v1787 = vsel %vm1777, %v1773, 1326507024
    %v1788 = vsel %vm1776, %v1770, %v1787
    %v1789 = vsel %vm1775, %v1786, %v1788
    %v1790 = vshll.u32 %v1750, 8
    %v1791 = vand.u32 %v1790, 65535
    %v1792 = vshrl.u32 %v1790, 16
    %v1793 = vand.u32 %v1789, 65535
    %v1794 = vshrl.u32 %v1789, 16
    %v1795 = vmul.u32 %v1791, %v1793
    %v1796 = vmul.u32 %v1791, %v1794
    %v1797 = vmul.u32 %v1792, %v1793
    %v1798 = vmul.u32 %v1792, %v1794
    %v1799 = vshll.u32 %v1796, 16
    %v1800 = vshrl.u32 %v1796, 16
    %v1801 = vshll.u32 %v1797, 16
    %v1802 = vshrl.u32 %v1797, 16
    %vm1803 = vc.u32 %v1795, %v1799
    %v1804 = vsel %vm1803, 1, 0
    %v1805 = vadd.s32 %v1795, %v1799
    %v1806 = vadd.s32 %v1798, %v1804
    %vm1807 = vc.u32 %v1805, %v1801
    %v1808 = vsel %vm1807, 1, 0
    %v1809 = vadd.s32 %v1805, %v1801
    %v1810 = vadd.s32 %v1806, %v1808
    %v1811 = vadd.s32 %v1810, %v1800
    %v1812 = vadd.s32 %v1811, %v1802
    %v1813 = vand.u32 %v1790, 65535
    %v1814 = vshrl.u32 %v1790, 16
    %v1815 = vand.u32 %v1785, 65535
    %v1816 = vshrl.u32 %v1785, 16
    %v1817 = vmul.u32 %v1813, %v1815
    %v1818 = vmul.u32 %v1813, %v1816
    %v1819 = vmul.u32 %v1814, %v1815
    %v1820 = vmul.u32 %v1814, %v1816
    %v1821 = vshll.u32 %v1818, 16
    %v1822 = vshrl.u32 %v1818, 16
    %v1823 = vshll.u32 %v1819, 16
    %v1824 = vshrl.u32 %v1819, 16
    %vm1825 = vc.u32 %v1817, %v1821
    %v1826 = vsel %vm1825, 1, 0
    %v1827 = vadd.s32 %v1817, %v1821
    %v1828 = vadd.s32 %v1820, %v1826
    %vm1829 = vc.u32 %v1827, %v1823
    %v1830 = vsel %vm1829, 1, 0
    %v1831 = vadd.s32 %v1827, %v1823
    %v1832 = vadd.s32 %v1828, %v1830
    %v1833 = vadd.s32 %v1832, %v1822
    %v1834 = vadd.s32 %v1833, %v1824
    %v1835 = vmul.u32 %v1790, %v1781
    %v1836 = vadd.s32 %v1812, %v1831
    %vm1837 = vc.u32 %v1812, %v1831
    %v1838 = vadd.s32 %v1834, 1
    %v1839 = vsel %vm1837, %v1838, %v1834
    %v1840 = vadd.s32 %v1835, %v1839
    %v1841 = vadd.s32 %v1840, 536870912
    %v1842 = vshrl.u32 %v1841, 30
    %v1843 = vshll.u32 %v1842, 30
    %v1844 = vsub.s32 %v1840, %v1843
    %vm1845 = vcmp.lt.s32.totalorder %v1844, 0
    %v1846 = vsub.s32 0, %v1844
    %v1847 = vsel %vm1845, %v1846, %v1844
    %v1848 = vclz %v1847
    %v1849 = vsub.s32 %v1848, 2
    %vm1850 = vcmp.gt.s32.totalorder 0, %v1849
    %v1851 = vsel %vm1850, 0, %v1849
    %v1852 = vsub.s32 32, %v1851
    %v1853 = vshll.u32 %v1844, %v1851
    %v1854 = vshrl.u32 %v1836, %v1852
    %v1855 = vor.u32 %v1853, %v1854
    %v1856 = vsub.s32 4294967266, %v1851
    %v1857 = vadd.s32 %v1856, 127
    %v1858 = vshll.u32 %v1857, 23
    %v1859 = vor.u32 4788187, %v1858
    %v1860 = vand.u32 2147483647, %v1859
    %v1862 = vcvt.s32.f32 %v1855
    %v1863 = vmul.f32 %v1862, %v1860
    %v1864 = vxor.u32 %v1863, 2147483648
    %v1865 = vsel %vm1744, %v1864, %v1863
    %v1866 = vsub.s32 4, %v1842
    %v1867 = vsel %vm1744, %v1866, %v1842
    %v1868 = vsel %vm1743, %v195, %v1865
    %v1869 = vsel %vm1743, 0, %v1867
    %v1870 = vmul.f32 %v1868, %v1868
    %v1871 = vmul.f32 %v1870, -0.001358992
    %v1872 = vadd.f32 %v1871, 0.041655596
    %v1873 = vmul.f32 %v1870, %v1872
    %v1874 = vadd.f32 %v1873, -0.4999988
    %v1875 = vmul.f32 %v1870, %v1874
    %v1876 = vadd.f32 1.0, %v1875
    %v1877 = vmul.f32 %v1868, %v1868
    %v1878 = vmul.f32 %v1877, -0.00019511016
    %v1879 = vadd.f32 %v1878, 0.008332121
    %v1880 = vmul.f32 %v1877, %v1879
    %v1881 = vadd.f32 %v1880, -0.16666654
    %v1882 = vmul.f32 %v1877, %v1881
    %v1883 = vadd.f32 %v1882, 1.0
    %v1884 = vmul.f32 %v1883, %v1868
    %vm1885 = vweird.f32 %v195
    %v1886 = vand.u32 %v1869, 3
    %vm1887 = vcmp.lt.s32.totalorder %v1886, 2
    %vm1888 = vcmp.eq.s32.totalorder %v1886, 0
    %v1889 = vxor.u32 %v1884, 2147483648
    %v1890 = vsel %vm1888, %v1876, %v1889
    %vm1891 = vcmp.eq.s32.totalorder %v1886, 2
    %v1892 = vxor.u32 %v1876, 2147483648
    %v1893 = vsel %vm1891, %v1892, %v1884
    %v1894 = vsel %vm1887, %v1890, %v1893
    %v1895 = vsel %vm1885, nan, %v1894
    %v1896 = vand.u32 2147483647, %v196
    %vm1897 = vcmp.le.f32.partialorder %v1896, 0.7853982
    %vm1898 = vcmp.lt.s32.totalorder %v196, 0
    %v1899 = vand.u32 %v196, 2139095040
    %v1900 = vshrl.u32 %v1899, 23
    %v1901 = vsub.s32 %v1900, 127
    %v1902 = vand.u32 2147483647, %v196
    %v1903 = vand.u32 %v1902, 8388607
    %v1904 = vor.u32 %v1903, 8388608
    %v1905 = vsub.s32 0, %v1904
    %v1906 = vadd.s32 %v1901, 1
    %vm1907 = vcmp.gt.s32.totalorder %v1906, 0
    %v1908 = vsel %vm1907, %v1906, 0
    %v1909 = vshrl.u32 %v1908, 5
    %v1910 = vand.u32 %v1908, 31
    %v1911 = vsub.s32 32, %v1910
    %v1912 = vshrl.u32 683565275, %v1911
    %v1913 = vshll.u32 683565275, %v1910
    %v1914 = vshrl.u32 2475754826, %v1911
    %v1915 = vor.u32 %v1913, %v1914
    %v1916 = vshll.u32 2475754826, %v1910
    %v1917 = vshrl.u32 2131351028, %v1911
    %v1918 = vor.u32 %v1916, %v1917
    %v1919 = vshll.u32 2131351028, %v1910
    %v1920 = vshrl.u32 2102212464, %v1911
    %v1921 = vor.u32 %v1919, %v1920
    %v1922 = vshll.u32 2102212464, %v1910
    %v1923 = vshrl.u32 920167782, %v1911
    %v1924 = vor.u32 %v1922, %v1923
    %v1925 = vshll.u32 920167782, %v1910
    %v1926 = vshrl.u32 1326507024, %v1911
    %v1927 = vor.u32 %v1925, %v1926
    %vm1928 = vcmp.lt.s32.totalorder %v1909, 1
    %vm1929 = vcmp.lt.s32.totalorder %v1909, 2
    %vm1930 = vcmp.lt.s32.totalorder %v1909, 3
    %vm1931 = vcmp.lt.s32.totalorder %v1909, 4
    %v1932 = vsel %vm1928, %v1912, %v1915
    %v1933 = vsel %vm1931, %v1921, 2102212464
    %v1934 = vsel %vm1930, %v1918, %v1933
    %v1935 = vsel %vm1929, %v1932, %v1934
    %v1936 = vsel %vm1928, %v1915, %v1918
    %v1937 = vsel %vm1931, %v1924, 920167782
    %v1938 = vsel %vm1930, %v1921, %v1937
    %v1939 = vsel %vm1929, %v1936, %v1938
    %v1940 = vsel %vm1928, %v1918, %v1921
    %v1941 = vsel %vm1931, %v1927, 1326507024
    %v1942 = vsel %vm1930, %v1924, %v1941
    %v1943 = vsel %vm1929, %v1940, %v1942
    %v1944 = vshll.u32 %v1904, 8
    %v1945 = vand.u32 %v1944, 65535
    %v1946 = vshrl.u32 %v1944, 16
    %v1947 = vand.u32 %v1943, 65535
    %v1948 = vshrl.u32 %v1943, 16
    %v1949 = vmul.u32 %v1945, %v1947
    %v1950 = vmul.u32 %v1945, %v1948
    %v1951 = vmul.u32 %v1946, %v1947
    %v1952 = vmul.u32 %v1946, %v1948
    %v1953 = vshll.u32 %v1950, 16
    %v1954 = vshrl.u32 %v1950, 16
    %v1955 = vshll.u32 %v1951, 16
    %v1956 = vshrl.u32 %v1951, 16
    %vm1957 = vc.u32 %v1949, %v1953
    %v1958 = vsel %vm1957, 1, 0
    %v1959 = vadd.s32 %v1949, %v1953
    %v1960 = vadd.s32 %v1952, %v1958
    %vm1961 = vc.u32 %v1959, %v1955
    %v1962 = vsel %vm1961, 1, 0
    %v1963 = vadd.s32 %v1959, %v1955
    %v1964 = vadd.s32 %v1960, %v1962
    %v1965 = vadd.s32 %v1964, %v1954
    %v1966 = vadd.s32 %v1965, %v1956
    %v1967 = vand.u32 %v1944, 65535
    %v1968 = vshrl.u32 %v1944, 16
    %v1969 = vand.u32 %v1939, 65535
    %v1970 = vshrl.u32 %v1939, 16
    %v1971 = vmul.u32 %v1967, %v1969
    %v1972 = vmul.u32 %v1967, %v1970
    %v1973 = vmul.u32 %v1968, %v1969
    %v1974 = vmul.u32 %v1968, %v1970
    %v1975 = vshll.u32 %v1972, 16
    %v1976 = vshrl.u32 %v1972, 16
    %v1977 = vshll.u32 %v1973, 16
    %v1978 = vshrl.u32 %v1973, 16
    %vm1979 = vc.u32 %v1971, %v1975
    %v1980 = vsel %vm1979, 1, 0
    %v1981 = vadd.s32 %v1971, %v1975
    %v1982 = vadd.s32 %v1974, %v1980
    %vm1983 = vc.u32 %v1981, %v1977
    %v1984 = vsel %vm1983, 1, 0
    %v1985 = vadd.s32 %v1981, %v1977
    %v1986 = vadd.s32 %v1982, %v1984
    %v1987 = vadd.s32 %v1986, %v1976
    %v1988 = vadd.s32 %v1987, %v1978
    %v1989 = vmul.u32 %v1944, %v1935
    %v1990 = vadd.s32 %v1966, %v1985
    %vm1991 = vc.u32 %v1966, %v1985
    %v1992 = vadd.s32 %v1988, 1
    %v1993 = vsel %vm1991, %v1992, %v1988
    %v1994 = vadd.s32 %v1989, %v1993
    %v1995 = vadd.s32 %v1994, 536870912
    %v1996 = vshrl.u32 %v1995, 30
    %v1997 = vshll.u32 %v1996, 30
    %v1998 = vsub.s32 %v1994, %v1997
    %vm1999 = vcmp.lt.s32.totalorder %v1998, 0
    %v2000 = vsub.s32 0, %v1998
    %v2001 = vsel %vm1999, %v2000, %v1998
    %v2002 = vclz %v2001
    %v2003 = vsub.s32 %v2002, 2
    %vm2004 = vcmp.gt.s32.totalorder 0, %v2003
    %v2005 = vsel %vm2004, 0, %v2003
    %v2006 = vsub.s32 32, %v2005
    %v2007 = vshll.u32 %v1998, %v2005
    %v2008 = vshrl.u32 %v1990, %v2006
    %v2009 = vor.u32 %v2007, %v2008
    %v2010 = vsub.s32 4294967266, %v2005
    %v2011 = vadd.s32 %v2010, 127
    %v2012 = vshll.u32 %v2011, 23
    %v2013 = vor.u32 4788187, %v2012
    %v2014 = vand.u32 2147483647, %v2013
    %v2016 = vcvt.s32.f32 %v2009
    %v2017 = vmul.f32 %v2016, %v2014
    %v2018 = vxor.u32 %v2017, 2147483648
    %v2019 = vsel %vm1898, %v2018, %v2017
    %v2020 = vsub.s32 4, %v1996
    %v2021 = vsel %vm1898, %v2020, %v1996
    %v2022 = vsel %vm1897, %v196, %v2019
    %v2023 = vsel %vm1897, 0, %v2021
    %v2024 = vmul.f32 %v2022, %v2022
    %v2025 = vmul.f32 %v2024, -0.001358992
    %v2026 = vadd.f32 %v2025, 0.041655596
    %v2027 = vmul.f32 %v2024, %v2026
    %v2028 = vadd.f32 %v2027, -0.4999988
    %v2029 = vmul.f32 %v2024, %v2028
    %v2030 = vadd.f32 1.0, %v2029
    %v2031 = vmul.f32 %v2022, %v2022
    %v2032 = vmul.f32 %v2031, -0.00019511016
    %v2033 = vadd.f32 %v2032, 0.008332121
    %v2034 = vmul.f32 %v2031, %v2033
    %v2035 = vadd.f32 %v2034, -0.16666654
    %v2036 = vmul.f32 %v2031, %v2035
    %v2037 = vadd.f32 %v2036, 1.0
    %v2038 = vmul.f32 %v2037, %v2022
    %vm2039 = vweird.f32 %v196
    %v2040 = vand.u32 %v2023, 3
    %vm2041 = vcmp.lt.s32.totalorder %v2040, 2
    %vm2042 = vcmp.eq.s32.totalorder %v2040, 0
    %v2043 = vxor.u32 %v2038, 2147483648
    %v2044 = vsel %vm2042, %v2030, %v2043
    %vm2045 = vcmp.eq.s32.totalorder %v2040, 2
    %v2046 = vxor.u32 %v2030, 2147483648
    %v2047 = vsel %vm2045, %v2046, %v2038
    %v2048 = vsel %vm2041, %v2044, %v2047
    %v2049 = vsel %vm2039, nan, %v2048
    %v2050 = vand.u32 2147483647, %v197
    %vm2051 = vcmp.le.f32.partialorder %v2050, 0.7853982
    %vm2052 = vcmp.lt.s32.totalorder %v197, 0
    %v2053 = vand.u32 %v197, 2139095040
    %v2054 = vshrl.u32 %v2053, 23
    %v2055 = vsub.s32 %v2054, 127
    %v2056 = vand.u32 2147483647, %v197
    %v2057 = vand.u32 %v2056, 8388607
    %v2058 = vor.u32 %v2057, 8388608
    %v2059 = vsub.s32 0, %v2058
    %v2060 = vadd.s32 %v2055, 1
    %vm2061 = vcmp.gt.s32.totalorder %v2060, 0
    %v2062 = vsel %vm2061, %v2060, 0
    %v2063 = vshrl.u32 %v2062, 5
    %v2064 = vand.u32 %v2062, 31
    %v2065 = vsub.s32 32, %v2064
    %v2066 = vshrl.u32 683565275, %v2065
    %v2067 = vshll.u32 683565275, %v2064
    %v2068 = vshrl.u32 2475754826, %v2065
    %v2069 = vor.u32 %v2067, %v2068
    %v2070 = vshll.u32 2475754826, %v2064
    %v2071 = vshrl.u32 2131351028, %v2065
    %v2072 = vor.u32 %v2070, %v2071
    %v2073 = vshll.u32 2131351028, %v2064
    %v2074 = vshrl.u32 2102212464, %v2065
    %v2075 = vor.u32 %v2073, %v2074
    %v2076 = vshll.u32 2102212464, %v2064
    %v2077 = vshrl.u32 920167782, %v2065
    %v2078 = vor.u32 %v2076, %v2077
    %v2079 = vshll.u32 920167782, %v2064
    %v2080 = vshrl.u32 1326507024, %v2065
    %v2081 = vor.u32 %v2079, %v2080
    %vm2082 = vcmp.lt.s32.totalorder %v2063, 1
    %vm2083 = vcmp.lt.s32.totalorder %v2063, 2
    %vm2084 = vcmp.lt.s32.totalorder %v2063, 3
    %vm2085 = vcmp.lt.s32.totalorder %v2063, 4
    %v2086 = vsel %vm2082, %v2066, %v2069
    %v2087 = vsel %vm2085, %v2075, 2102212464
    %v2088 = vsel %vm2084, %v2072, %v2087
    %v2089 = vsel %vm2083, %v2086, %v2088
    %v2090 = vsel %vm2082, %v2069, %v2072
    %v2091 = vsel %vm2085, %v2078, 920167782
    %v2092 = vsel %vm2084, %v2075, %v2091
    %v2093 = vsel %vm2083, %v2090, %v2092
    %v2094 = vsel %vm2082, %v2072, %v2075
    %v2095 = vsel %vm2085, %v2081, 1326507024
    %v2096 = vsel %vm2084, %v2078, %v2095
    %v2097 = vsel %vm2083, %v2094, %v2096
    %v2098 = vshll.u32 %v2058, 8
    %v2099 = vand.u32 %v2098, 65535
    %v2100 = vshrl.u32 %v2098, 16
    %v2101 = vand.u32 %v2097, 65535
    %v2102 = vshrl.u32 %v2097, 16
    %v2103 = vmul.u32 %v2099, %v2101
    %v2104 = vmul.u32 %v2099, %v2102
    %v2105 = vmul.u32 %v2100, %v2101
    %v2106 = vmul.u32 %v2100, %v2102
    %v2107 = vshll.u32 %v2104, 16
    %v2108 = vshrl.u32 %v2104, 16
    %v2109 = vshll.u32 %v2105, 16
    %v2110 = vshrl.u32 %v2105, 16
    %vm2111 = vc.u32 %v2103, %v2107
    %v2112 = vsel %vm2111, 1, 0
    %v2113 = vadd.s32 %v2103, %v2107
    %v2114 = vadd.s32 %v2106, %v2112
    %vm2115 = vc.u32 %v2113, %v2109
    %v2116 = vsel %vm2115, 1, 0
    %v2117 = vadd.s32 %v2113, %v2109
    %v2118 = vadd.s32 %v2114, %v2116
    %v2119 = vadd.s32 %v2118, %v2108
    %v2120 = vadd.s32 %v2119, %v2110
    %v2121 = vand.u32 %v2098, 65535
    %v2122 = vshrl.u32 %v2098, 16
    %v2123 = vand.u32 %v2093, 65535
    %v2124 = vshrl.u32 %v2093, 16
    %v2125 = vmul.u32 %v2121, %v2123
    %v2126 = vmul.u32 %v2121, %v2124
    %v2127 = vmul.u32 %v2122, %v2123
    %v2128 = vmul.u32 %v2122, %v2124
    %v2129 = vshll.u32 %v2126, 16
    %v2130 = vshrl.u32 %v2126, 16
    %v2131 = vshll.u32 %v2127, 16
    %v2132 = vshrl.u32 %v2127, 16
    %vm2133 = vc.u32 %v2125, %v2129
    %v2134 = vsel %vm2133, 1, 0
    %v2135 = vadd.s32 %v2125, %v2129
    %v2136 = vadd.s32 %v2128, %v2134
    %vm2137 = vc.u32 %v2135, %v2131
    %v2138 = vsel %vm2137, 1, 0
    %v2139 = vadd.s32 %v2135, %v2131
    %v2140 = vadd.s32 %v2136, %v2138
    %v2141 = vadd.s32 %v2140, %v2130
    %v2142 = vadd.s32 %v2141, %v2132
    %v2143 = vmul.u32 %v2098, %v2089
    %v2144 = vadd.s32 %v2120, %v2139
    %vm2145 = vc.u32 %v2120, %v2139
    %v2146 = vadd.s32 %v2142, 1
    %v2147 = vsel %vm2145, %v2146, %v2142
    %v2148 = vadd.s32 %v2143, %v2147
    %v2149 = vadd.s32 %v2148, 536870912
    %v2150 = vshrl.u32 %v2149, 30
    %v2151 = vshll.u32 %v2150, 30
    %v2152 = vsub.s32 %v2148, %v2151
    %vm2153 = vcmp.lt.s32.totalorder %v2152, 0
    %v2154 = vsub.s32 0, %v2152
    %v2155 = vsel %vm2153, %v2154, %v2152
    %v2156 = vclz %v2155
    %v2157 = vsub.s32 %v2156, 2
    %vm2158 = vcmp.gt.s32.totalorder 0, %v2157
    %v2159 = vsel %vm2158, 0, %v2157
    %v2160 = vsub.s32 32, %v2159
    %v2161 = vshll.u32 %v2152, %v2159
    %v2162 = vshrl.u32 %v2144, %v2160
    %v2163 = vor.u32 %v2161, %v2162
    %v2164 = vsub.s32 4294967266, %v2159
    %v2165 = vadd.s32 %v2164, 127
    %v2166 = vshll.u32 %v2165, 23
    %v2167 = vor.u32 4788187, %v2166
    %v2168 = vand.u32 2147483647, %v2167
    %v2170 = vcvt.s32.f32 %v2163
    %v2171 = vmul.f32 %v2170, %v2168
    %v2172 = vxor.u32 %v2171, 2147483648
    %v2173 = vsel %vm2052, %v2172, %v2171
    %v2174 = vsub.s32 4, %v2150
    %v2175 = vsel %vm2052, %v2174, %v2150
    %v2176 = vsel %vm2051, %v197, %v2173
    %v2177 = vsel %vm2051, 0, %v2175
    %v2178 = vmul.f32 %v2176, %v2176
    %v2179 = vmul.f32 %v2178, -0.001358992
    %v2180 = vadd.f32 %v2179, 0.041655596
    %v2181 = vmul.f32 %v2178, %v2180
    %v2182 = vadd.f32 %v2181, -0.4999988
    %v2183 = vmul.f32 %v2178, %v2182
    %v2184 = vadd.f32 1.0, %v2183
    %v2185 = vmul.f32 %v2176, %v2176
    %v2186 = vmul.f32 %v2185, -0.00019511016
    %v2187 = vadd.f32 %v2186, 0.008332121
    %v2188 = vmul.f32 %v2185, %v2187
    %v2189 = vadd.f32 %v2188, -0.16666654
    %v2190 = vmul.f32 %v2185, %v2189
    %v2191 = vadd.f32 %v2190, 1.0
    %v2192 = vmul.f32 %v2191, %v2176
    %vm2193 = vweird.f32 %v197
    %v2194 = vand.u32 %v2177, 3
    %vm2195 = vcmp.lt.s32.totalorder %v2194, 2
    %vm2196 = vcmp.eq.s32.totalorder %v2194, 0
    %v2197 = vxor.u32 %v2192, 2147483648
    %v2198 = vsel %vm2196, %v2184, %v2197
    %vm2199 = vcmp.eq.s32.totalorder %v2194, 2
    %v2200 = vxor.u32 %v2184, 2147483648
    %v2201 = vsel %vm2199, %v2200, %v2192
    %v2202 = vsel %vm2195, %v2198, %v2201
    %v2203 = vsel %vm2193, nan, %v2202
    %v2204 = vand.u32 2147483647, %v198
    %vm2205 = vcmp.le.f32.partialorder %v2204, 0.7853982
    %vm2206 = vcmp.lt.s32.totalorder %v198, 0
    %v2207 = vand.u32 %v198, 2139095040
    %v2208 = vshrl.u32 %v2207, 23
    %v2209 = vsub.s32 %v2208, 127
    %v2210 = vand.u32 2147483647, %v198
    %v2211 = vand.u32 %v2210, 8388607
    %v2212 = vor.u32 %v2211, 8388608
    %v2213 = vsub.s32 0, %v2212
    %v2214 = vadd.s32 %v2209, 1
    %vm2215 = vcmp.gt.s32.totalorder %v2214, 0
    %v2216 = vsel %vm2215, %v2214, 0
    %v2217 = vshrl.u32 %v2216, 5
    %v2218 = vand.u32 %v2216, 31
    %v2219 = vsub.s32 32, %v2218
    %v2220 = vshrl.u32 683565275, %v2219
    %v2221 = vshll.u32 683565275, %v2218
    %v2222 = vshrl.u32 2475754826, %v2219
    %v2223 = vor.u32 %v2221, %v2222
    %v2224 = vshll.u32 2475754826, %v2218
    %v2225 = vshrl.u32 2131351028, %v2219
    %v2226 = vor.u32 %v2224, %v2225
    %v2227 = vshll.u32 2131351028, %v2218
    %v2228 = vshrl.u32 2102212464, %v2219
    %v2229 = vor.u32 %v2227, %v2228
    %v2230 = vshll.u32 2102212464, %v2218
    %v2231 = vshrl.u32 920167782, %v2219
    %v2232 = vor.u32 %v2230, %v2231
    %v2233 = vshll.u32 920167782, %v2218
    %v2234 = vshrl.u32 1326507024, %v2219
    %v2235 = vor.u32 %v2233, %v2234
    %vm2236 = vcmp.lt.s32.totalorder %v2217, 1
    %vm2237 = vcmp.lt.s32.totalorder %v2217, 2
    %vm2238 = vcmp.lt.s32.totalorder %v2217, 3
    %vm2239 = vcmp.lt.s32.totalorder %v2217, 4
    %v2240 = vsel %vm2236, %v2220, %v2223
    %v2241 = vsel %vm2239, %v2229, 2102212464
    %v2242 = vsel %vm2238, %v2226, %v2241
    %v2243 = vsel %vm2237, %v2240, %v2242
    %v2244 = vsel %vm2236, %v2223, %v2226
    %v2245 = vsel %vm2239, %v2232, 920167782
    %v2246 = vsel %vm2238, %v2229, %v2245
    %v2247 = vsel %vm2237, %v2244, %v2246
    %v2248 = vsel %vm2236, %v2226, %v2229
    %v2249 = vsel %vm2239, %v2235, 1326507024
    %v2250 = vsel %vm2238, %v2232, %v2249
    %v2251 = vsel %vm2237, %v2248, %v2250
    %v2252 = vshll.u32 %v2212, 8
    %v2253 = vand.u32 %v2252, 65535
    %v2254 = vshrl.u32 %v2252, 16
    %v2255 = vand.u32 %v2251, 65535
    %v2256 = vshrl.u32 %v2251, 16
    %v2257 = vmul.u32 %v2253, %v2255
    %v2258 = vmul.u32 %v2253, %v2256
    %v2259 = vmul.u32 %v2254, %v2255
    %v2260 = vmul.u32 %v2254, %v2256
    %v2261 = vshll.u32 %v2258, 16
    %v2262 = vshrl.u32 %v2258, 16
    %v2263 = vshll.u32 %v2259, 16
    %v2264 = vshrl.u32 %v2259, 16
    %vm2265 = vc.u32 %v2257, %v2261
    %v2266 = vsel %vm2265, 1, 0
    %v2267 = vadd.s32 %v2257, %v2261
    %v2268 = vadd.s32 %v2260, %v2266
    %vm2269 = vc.u32 %v2267, %v2263
    %v2270 = vsel %vm2269, 1, 0
    %v2271 = vadd.s32 %v2267, %v2263
    %v2272 = vadd.s32 %v2268, %v2270
    %v2273 = vadd.s32 %v2272, %v2262
    %v2274 = vadd.s32 %v2273, %v2264
    %v2275 = vand.u32 %v2252, 65535
    %v2276 = vshrl.u32 %v2252, 16
    %v2277 = vand.u32 %v2247, 65535
    %v2278 = vshrl.u32 %v2247, 16
    %v2279 = vmul.u32 %v2275, %v2277
    %v2280 = vmul.u32 %v2275, %v2278
    %v2281 = vmul.u32 %v2276, %v2277
    %v2282 = vmul.u32 %v2276, %v2278
    %v2283 = vshll.u32 %v2280, 16
    %v2284 = vshrl.u32 %v2280, 16
    %v2285 = vshll.u32 %v2281, 16
    %v2286 = vshrl.u32 %v2281, 16
    %vm2287 = vc.u32 %v2279, %v2283
    %v2288 = vsel %vm2287, 1, 0
    %v2289 = vadd.s32 %v2279, %v2283
    %v2290 = vadd.s32 %v2282, %v2288
    %vm2291 = vc.u32 %v2289, %v2285
    %v2292 = vsel %vm2291, 1, 0
    %v2293 = vadd.s32 %v2289, %v2285
    %v2294 = vadd.s32 %v2290, %v2292
    %v2295 = vadd.s32 %v2294, %v2284
    %v2296 = vadd.s32 %v2295, %v2286
    %v2297 = vmul.u32 %v2252, %v2243
    %v2298 = vadd.s32 %v2274, %v2293
    %vm2299 = vc.u32 %v2274, %v2293
    %v2300 = vadd.s32 %v2296, 1
    %v2301 = vsel %vm2299, %v2300, %v2296
    %v2302 = vadd.s32 %v2297, %v2301
    %v2303 = vadd.s32 %v2302, 536870912
    %v2304 = vshrl.u32 %v2303, 30
    %v2305 = vshll.u32 %v2304, 30
    %v2306 = vsub.s32 %v2302, %v2305
    %vm2307 = vcmp.lt.s32.totalorder %v2306, 0
    %v2308 = vsub.s32 0, %v2306
    %v2309 = vsel %vm2307, %v2308, %v2306
    %v2310 = vclz %v2309
    %v2311 = vsub.s32 %v2310, 2
    %vm2312 = vcmp.gt.s32.totalorder 0, %v2311
    %v2313 = vsel %vm2312, 0, %v2311
    %v2314 = vsub.s32 32, %v2313
    %v2315 = vshll.u32 %v2306, %v2313
    %v2316 = vshrl.u32 %v2298, %v2314
    %v2317 = vor.u32 %v2315, %v2316
    %v2318 = vsub.s32 4294967266, %v2313
    %v2319 = vadd.s32 %v2318, 127
    %v2320 = vshll.u32 %v2319, 23
    %v2321 = vor.u32 4788187, %v2320
    %v2322 = vand.u32 2147483647, %v2321
    %v2324 = vcvt.s32.f32 %v2317
    %v2325 = vmul.f32 %v2324, %v2322
    %v2326 = vxor.u32 %v2325, 2147483648
    %v2327 = vsel %vm2206, %v2326, %v2325
    %v2328 = vsub.s32 4, %v2304
    %v2329 = vsel %vm2206, %v2328, %v2304
    %v2330 = vsel %vm2205, %v198, %v2327
    %v2331 = vsel %vm2205, 0, %v2329
    %v2332 = vmul.f32 %v2330, %v2330
    %v2333 = vmul.f32 %v2332, -0.001358992
    %v2334 = vadd.f32 %v2333, 0.041655596
    %v2335 = vmul.f32 %v2332, %v2334
    %v2336 = vadd.f32 %v2335, -0.4999988
    %v2337 = vmul.f32 %v2332, %v2336
    %v2338 = vadd.f32 1.0, %v2337
    %v2339 = vmul.f32 %v2330, %v2330
    %v2340 = vmul.f32 %v2339, -0.00019511016
    %v2341 = vadd.f32 %v2340, 0.008332121
    %v2342 = vmul.f32 %v2339, %v2341
    %v2343 = vadd.f32 %v2342, -0.16666654
    %v2344 = vmul.f32 %v2339, %v2343
    %v2345 = vadd.f32 %v2344, 1.0
    %v2346 = vmul.f32 %v2345, %v2330
    %vm2347 = vweird.f32 %v198
    %v2348 = vand.u32 %v2331, 3
    %vm2349 = vcmp.lt.s32.totalorder %v2348, 2
    %vm2350 = vcmp.eq.s32.totalorder %v2348, 0
    %v2351 = vxor.u32 %v2346, 2147483648
    %v2352 = vsel %vm2350, %v2338, %v2351
    %vm2353 = vcmp.eq.s32.totalorder %v2348, 2
    %v2354 = vxor.u32 %v2338, 2147483648
    %v2355 = vsel %vm2353, %v2354, %v2346
    %v2356 = vsel %vm2349, %v2352, %v2355
    %v2357 = vsel %vm2347, nan, %v2356
    %v2358 = vand.u32 2147483647, %v199
    %vm2359 = vcmp.le.f32.partialorder %v2358, 0.7853982
    %vm2360 = vcmp.lt.s32.totalorder %v199, 0
    %v2361 = vand.u32 %v199, 2139095040
    %v2362 = vshrl.u32 %v2361, 23
    %v2363 = vsub.s32 %v2362, 127
    %v2364 = vand.u32 2147483647, %v199
    %v2365 = vand.u32 %v2364, 8388607
    %v2366 = vor.u32 %v2365, 8388608
    %v2367 = vsub.s32 0, %v2366
    %v2368 = vadd.s32 %v2363, 1
    %vm2369 = vcmp.gt.s32.totalorder %v2368, 0
    %v2370 = vsel %vm2369, %v2368, 0
    %v2371 = vshrl.u32 %v2370, 5
    %v2372 = vand.u32 %v2370, 31
    %v2373 = vsub.s32 32, %v2372
    %v2374 = vshrl.u32 683565275, %v2373
    %v2375 = vshll.u32 683565275, %v2372
    %v2376 = vshrl.u32 2475754826, %v2373
    %v2377 = vor.u32 %v2375, %v2376
    %v2378 = vshll.u32 2475754826, %v2372
    %v2379 = vshrl.u32 2131351028, %v2373
    %v2380 = vor.u32 %v2378, %v2379
    %v2381 = vshll.u32 2131351028, %v2372
    %v2382 = vshrl.u32 2102212464, %v2373
    %v2383 = vor.u32 %v2381, %v2382
    %v2384 = vshll.u32 2102212464, %v2372
    %v2385 = vshrl.u32 920167782, %v2373
    %v2386 = vor.u32 %v2384, %v2385
    %v2387 = vshll.u32 920167782, %v2372
    %v2388 = vshrl.u32 1326507024, %v2373
    %v2389 = vor.u32 %v2387, %v2388
    %vm2390 = vcmp.lt.s32.totalorder %v2371, 1
    %vm2391 = vcmp.lt.s32.totalorder %v2371, 2
    %vm2392 = vcmp.lt.s32.totalorder %v2371, 3
    %vm2393 = vcmp.lt.s32.totalorder %v2371, 4
    %v2394 = vsel %vm2390, %v2374, %v2377
    %v2395 = vsel %vm2393, %v2383, 2102212464
    %v2396 = vsel %vm2392, %v2380, %v2395
    %v2397 = vsel %vm2391, %v2394, %v2396
    %v2398 = vsel %vm2390, %v2377, %v2380
    %v2399 = vsel %vm2393, %v2386, 920167782
    %v2400 = vsel %vm2392, %v2383, %v2399
    %v2401 = vsel %vm2391, %v2398, %v2400
    %v2402 = vsel %vm2390, %v2380, %v2383
    %v2403 = vsel %vm2393, %v2389, 1326507024
    %v2404 = vsel %vm2392, %v2386, %v2403
    %v2405 = vsel %vm2391, %v2402, %v2404
    %v2406 = vshll.u32 %v2366, 8
    %v2407 = vand.u32 %v2406, 65535
    %v2408 = vshrl.u32 %v2406, 16
    %v2409 = vand.u32 %v2405, 65535
    %v2410 = vshrl.u32 %v2405, 16
    %v2411 = vmul.u32 %v2407, %v2409
    %v2412 = vmul.u32 %v2407, %v2410
    %v2413 = vmul.u32 %v2408, %v2409
    %v2414 = vmul.u32 %v2408, %v2410
    %v2415 = vshll.u32 %v2412, 16
    %v2416 = vshrl.u32 %v2412, 16
    %v2417 = vshll.u32 %v2413, 16
    %v2418 = vshrl.u32 %v2413, 16
    %vm2419 = vc.u32 %v2411, %v2415
    %v2420 = vsel %vm2419, 1, 0
    %v2421 = vadd.s32 %v2411, %v2415
    %v2422 = vadd.s32 %v2414, %v2420
    %vm2423 = vc.u32 %v2421, %v2417
    %v2424 = vsel %vm2423, 1, 0
    %v2425 = vadd.s32 %v2421, %v2417
    %v2426 = vadd.s32 %v2422, %v2424
    %v2427 = vadd.s32 %v2426, %v2416
    %v2428 = vadd.s32 %v2427, %v2418
    %v2429 = vand.u32 %v2406, 65535
    %v2430 = vshrl.u32 %v2406, 16
    %v2431 = vand.u32 %v2401, 65535
    %v2432 = vshrl.u32 %v2401, 16
    %v2433 = vmul.u32 %v2429, %v2431
    %v2434 = vmul.u32 %v2429, %v2432
    %v2435 = vmul.u32 %v2430, %v2431
    %v2436 = vmul.u32 %v2430, %v2432
    %v2437 = vshll.u32 %v2434, 16
    %v2438 = vshrl.u32 %v2434, 16
    %v2439 = vshll.u32 %v2435, 16
    %v2440 = vshrl.u32 %v2435, 16
    %vm2441 = vc.u32 %v2433, %v2437
    %v2442 = vsel %vm2441, 1, 0
    %v2443 = vadd.s32 %v2433, %v2437
    %v2444 = vadd.s32 %v2436, %v2442
    %vm2445 = vc.u32 %v2443, %v2439
    %v2446 = vsel %vm2445, 1, 0
    %v2447 = vadd.s32 %v2443, %v2439
    %v2448 = vadd.s32 %v2444, %v2446
    %v2449 = vadd.s32 %v2448, %v2438
    %v2450 = vadd.s32 %v2449, %v2440
    %v2451 = vmul.u32 %v2406, %v2397
    %v2452 = vadd.s32 %v2428, %v2447
    %vm2453 = vc.u32 %v2428, %v2447
    %v2454 = vadd.s32 %v2450, 1
    %v2455 = vsel %vm2453, %v2454, %v2450
    %v2456 = vadd.s32 %v2451, %v2455
    %v2457 = vadd.s32 %v2456, 536870912
    %v2458 = vshrl.u32 %v2457, 30
    %v2459 = vshll.u32 %v2458, 30
    %v2460 = vsub.s32 %v2456, %v2459
    %vm2461 = vcmp.lt.s32.totalorder %v2460, 0
    %v2462 = vsub.s32 0, %v2460
    %v2463 = vsel %vm2461, %v2462, %v2460
    %v2464 = vclz %v2463
    %v2465 = vsub.s32 %v2464, 2
    %vm2466 = vcmp.gt.s32.totalorder 0, %v2465
    %v2467 = vsel %vm2466, 0, %v2465
    %v2468 = vsub.s32 32, %v2467
    %v2469 = vshll.u32 %v2460, %v2467
    %v2470 = vshrl.u32 %v2452, %v2468
    %v2471 = vor.u32 %v2469, %v2470
    %v2472 = vsub.s32 4294967266, %v2467
    %v2473 = vadd.s32 %v2472, 127
    %v2474 = vshll.u32 %v2473, 23
    %v2475 = vor.u32 4788187, %v2474
    %v2476 = vand.u32 2147483647, %v2475
    %v2478 = vcvt.s32.f32 %v2471
    %v2479 = vmul.f32 %v2478, %v2476
    %v2480 = vxor.u32 %v2479, 2147483648
    %v2481 = vsel %vm2360, %v2480, %v2479
    %v2482 = vsub.s32 4, %v2458
    %v2483 = vsel %vm2360, %v2482, %v2458
    %v2484 = vsel %vm2359, %v199, %v2481
    %v2485 = vsel %vm2359, 0, %v2483
    %v2486 = vmul.f32 %v2484, %v2484
    %v2487 = vmul.f32 %v2486, -0.001358992
    %v2488 = vadd.f32 %v2487, 0.041655596
    %v2489 = vmul.f32 %v2486, %v2488
    %v2490 = vadd.f32 %v2489, -0.4999988
    %v2491 = vmul.f32 %v2486, %v2490
    %v2492 = vadd.f32 1.0, %v2491
    %v2493 = vmul.f32 %v2484, %v2484
    %v2494 = vmul.f32 %v2493, -0.00019511016
    %v2495 = vadd.f32 %v2494, 0.008332121
    %v2496 = vmul.f32 %v2493, %v2495
    %v2497 = vadd.f32 %v2496, -0.16666654
    %v2498 = vmul.f32 %v2493, %v2497
    %v2499 = vadd.f32 %v2498, 1.0
    %v2500 = vmul.f32 %v2499, %v2484
    %vm2501 = vweird.f32 %v199
    %v2502 = vand.u32 %v2485, 3
    %vm2503 = vcmp.lt.s32.totalorder %v2502, 2
    %vm2504 = vcmp.eq.s32.totalorder %v2502, 0
    %v2505 = vxor.u32 %v2500, 2147483648
    %v2506 = vsel %vm2504, %v2492, %v2505
    %vm2507 = vcmp.eq.s32.totalorder %v2502, 2
    %v2508 = vxor.u32 %v2492, 2147483648
    %v2509 = vsel %vm2507, %v2508, %v2500
    %v2510 = vsel %vm2503, %v2506, %v2509
    %v2511 = vsel %vm2501, nan, %v2510
    %v2512 = vand.u32 2147483647, %v200
    %vm2513 = vcmp.le.f32.partialorder %v2512, 0.7853982
    %vm2514 = vcmp.lt.s32.totalorder %v200, 0
    %v2515 = vand.u32 %v200, 2139095040
    %v2516 = vshrl.u32 %v2515, 23
    %v2517 = vsub.s32 %v2516, 127
    %v2518 = vand.u32 2147483647, %v200
    %v2519 = vand.u32 %v2518, 8388607
    %v2520 = vor.u32 %v2519, 8388608
    %v2521 = vsub.s32 0, %v2520
    %v2522 = vadd.s32 %v2517, 1
    %vm2523 = vcmp.gt.s32.totalorder %v2522, 0
    %v2524 = vsel %vm2523, %v2522, 0
    %v2525 = vshrl.u32 %v2524, 5
    %v2526 = vand.u32 %v2524, 31
    %v2527 = vsub.s32 32, %v2526
    %v2528 = vshrl.u32 683565275, %v2527
    %v2529 = vshll.u32 683565275, %v2526
    %v2530 = vshrl.u32 2475754826, %v2527
    %v2531 = vor.u32 %v2529, %v2530
    %v2532 = vshll.u32 2475754826, %v2526
    %v2533 = vshrl.u32 2131351028, %v2527
    %v2534 = vor.u32 %v2532, %v2533
    %v2535 = vshll.u32 2131351028, %v2526
    %v2536 = vshrl.u32 2102212464, %v2527
    %v2537 = vor.u32 %v2535, %v2536
    %v2538 = vshll.u32 2102212464, %v2526
    %v2539 = vshrl.u32 920167782, %v2527
    %v2540 = vor.u32 %v2538, %v2539
    %v2541 = vshll.u32 920167782, %v2526
    %v2542 = vshrl.u32 1326507024, %v2527
    %v2543 = vor.u32 %v2541, %v2542
    %vm2544 = vcmp.lt.s32.totalorder %v2525, 1
    %vm2545 = vcmp.lt.s32.totalorder %v2525, 2
    %vm2546 = vcmp.lt.s32.totalorder %v2525, 3
    %vm2547 = vcmp.lt.s32.totalorder %v2525, 4
    %v2548 = vsel %vm2544, %v2528, %v2531
    %v2549 = vsel %vm2547, %v2537, 2102212464
    %v2550 = vsel %vm2546, %v2534, %v2549
    %v2551 = vsel %vm2545, %v2548, %v2550
    %v2552 = vsel %vm2544, %v2531, %v2534
    %v2553 = vsel %vm2547, %v2540, 920167782
    %v2554 = vsel %vm2546, %v2537, %v2553
    %v2555 = vsel %vm2545, %v2552, %v2554
    %v2556 = vsel %vm2544, %v2534, %v2537
    %v2557 = vsel %vm2547, %v2543, 1326507024
    %v2558 = vsel %vm2546, %v2540, %v2557
    %v2559 = vsel %vm2545, %v2556, %v2558
    %v2560 = vshll.u32 %v2520, 8
    %v2561 = vand.u32 %v2560, 65535
    %v2562 = vshrl.u32 %v2560, 16
    %v2563 = vand.u32 %v2559, 65535
    %v2564 = vshrl.u32 %v2559, 16
    %v2565 = vmul.u32 %v2561, %v2563
    %v2566 = vmul.u32 %v2561, %v2564
    %v2567 = vmul.u32 %v2562, %v2563
    %v2568 = vmul.u32 %v2562, %v2564
    %v2569 = vshll.u32 %v2566, 16
    %v2570 = vshrl.u32 %v2566, 16
    %v2571 = vshll.u32 %v2567, 16
    %v2572 = vshrl.u32 %v2567, 16
    %vm2573 = vc.u32 %v2565, %v2569
    %v2574 = vsel %vm2573, 1, 0
    %v2575 = vadd.s32 %v2565, %v2569
    %v2576 = vadd.s32 %v2568, %v2574
    %vm2577 = vc.u32 %v2575, %v2571
    %v2578 = vsel %vm2577, 1, 0
    %v2579 = vadd.s32 %v2575, %v2571
    %v2580 = vadd.s32 %v2576, %v2578
    %v2581 = vadd.s32 %v2580, %v2570
    %v2582 = vadd.s32 %v2581, %v2572
    %v2583 = vand.u32 %v2560, 65535
    %v2584 = vshrl.u32 %v2560, 16
    %v2585 = vand.u32 %v2555, 65535
    %v2586 = vshrl.u32 %v2555, 16
    %v2587 = vmul.u32 %v2583, %v2585
    %v2588 = vmul.u32 %v2583, %v2586
    %v2589 = vmul.u32 %v2584, %v2585
    %v2590 = vmul.u32 %v2584, %v2586
    %v2591 = vshll.u32 %v2588, 16
    %v2592 = vshrl.u32 %v2588, 16
    %v2593 = vshll.u32 %v2589, 16
    %v2594 = vshrl.u32 %v2589, 16
    %vm2595 = vc.u32 %v2587, %v2591
    %v2596 = vsel %vm2595, 1, 0
    %v2597 = vadd.s32 %v2587, %v2591
    %v2598 = vadd.s32 %v2590, %v2596
    %vm2599 = vc.u32 %v2597, %v2593
    %v2600 = vsel %vm2599, 1, 0
    %v2601 = vadd.s32 %v2597, %v2593
    %v2602 = vadd.s32 %v2598, %v2600
    %v2603 = vadd.s32 %v2602, %v2592
    %v2604 = vadd.s32 %v2603, %v2594
    %v2605 = vmul.u32 %v2560, %v2551
    %v2606 = vadd.s32 %v2582, %v2601
    %vm2607 = vc.u32 %v2582, %v2601
    %v2608 = vadd.s32 %v2604, 1
    %v2609 = vsel %vm2607, %v2608, %v2604
    %v2610 = vadd.s32 %v2605, %v2609
    %v2611 = vadd.s32 %v2610, 536870912
    %v2612 = vshrl.u32 %v2611, 30
    %v2613 = vshll.u32 %v2612, 30
    %v2614 = vsub.s32 %v2610, %v2613
    %vm2615 = vcmp.lt.s32.totalorder %v2614, 0
    %v2616 = vsub.s32 0, %v2614
    %v2617 = vsel %vm2615, %v2616, %v2614
    %v2618 = vclz %v2617
    %v2619 = vsub.s32 %v2618, 2
    %vm2620 = vcmp.gt.s32.totalorder 0, %v2619
    %v2621 = vsel %vm2620, 0, %v2619
    %v2622 = vsub.s32 32, %v2621
    %v2623 = vshll.u32 %v2614, %v2621
    %v2624 = vshrl.u32 %v2606, %v2622
    %v2625 = vor.u32 %v2623, %v2624
    %v2626 = vsub.s32 4294967266, %v2621
    %v2627 = vadd.s32 %v2626, 127
    %v2628 = vshll.u32 %v2627, 23
    %v2629 = vor.u32 4788187, %v2628
    %v2630 = vand.u32 2147483647, %v2629
    %v2632 = vcvt.s32.f32 %v2625
    %v2633 = vmul.f32 %v2632, %v2630
    %v2634 = vxor.u32 %v2633, 2147483648
    %v2635 = vsel %vm2514, %v2634, %v2633
    %v2636 = vsub.s32 4, %v2612
    %v2637 = vsel %vm2514, %v2636, %v2612
    %v2638 = vsel %vm2513, %v200, %v2635
    %v2639 = vsel %vm2513, 0, %v2637
    %v2640 = vmul.f32 %v2638, %v2638
    %v2641 = vmul.f32 %v2640, -0.001358992
    %v2642 = vadd.f32 %v2641, 0.041655596
    %v2643 = vmul.f32 %v2640, %v2642
    %v2644 = vadd.f32 %v2643, -0.4999988
    %v2645 = vmul.f32 %v2640, %v2644
    %v2646 = vadd.f32 1.0, %v2645
    %v2647 = vmul.f32 %v2638, %v2638
    %v2648 = vmul.f32 %v2647, -0.00019511016
    %v2649 = vadd.f32 %v2648, 0.008332121
    %v2650 = vmul.f32 %v2647, %v2649
    %v2651 = vadd.f32 %v2650, -0.16666654
    %v2652 = vmul.f32 %v2647, %v2651
    %v2653 = vadd.f32 %v2652, 1.0
    %v2654 = vmul.f32 %v2653, %v2638
    %vm2655 = vweird.f32 %v200
    %v2656 = vand.u32 %v2639, 3
    %vm2657 = vcmp.lt.s32.totalorder %v2656, 2
    %vm2658 = vcmp.eq.s32.totalorder %v2656, 0
    %v2659 = vxor.u32 %v2654, 2147483648
    %v2660 = vsel %vm2658, %v2646, %v2659
    %vm2661 = vcmp.eq.s32.totalorder %v2656, 2
    %v2662 = vxor.u32 %v2646, 2147483648
    %v2663 = vsel %vm2661, %v2662, %v2654
    %v2664 = vsel %vm2657, %v2660, %v2663
    %v2665 = vsel %vm2655, nan, %v2664
    %v2666 = vand.u32 2147483647, %v185
    %vm2667 = vcmp.le.f32.partialorder %v2666, 0.7853982
    %vm2668 = vcmp.lt.s32.totalorder %v185, 0
    %v2669 = vand.u32 %v185, 2139095040
    %v2670 = vshrl.u32 %v2669, 23
    %v2671 = vsub.s32 %v2670, 127
    %v2672 = vand.u32 2147483647, %v185
    %v2673 = vand.u32 %v2672, 8388607
    %v2674 = vor.u32 %v2673, 8388608
    %v2675 = vsub.s32 0, %v2674
    %v2676 = vadd.s32 %v2671, 1
    %vm2677 = vcmp.gt.s32.totalorder %v2676, 0
    %v2678 = vsel %vm2677, %v2676, 0
    %v2679 = vshrl.u32 %v2678, 5
    %v2680 = vand.u32 %v2678, 31
    %v2681 = vsub.s32 32, %v2680
    %v2682 = vshrl.u32 683565275, %v2681
    %v2683 = vshll.u32 683565275, %v2680
    %v2684 = vshrl.u32 2475754826, %v2681
    %v2685 = vor.u32 %v2683, %v2684
    %v2686 = vshll.u32 2475754826, %v2680
    %v2687 = vshrl.u32 2131351028, %v2681
    %v2688 = vor.u32 %v2686, %v2687
    %v2689 = vshll.u32 2131351028, %v2680
    %v2690 = vshrl.u32 2102212464, %v2681
    %v2691 = vor.u32 %v2689, %v2690
    %v2692 = vshll.u32 2102212464, %v2680
    %v2693 = vshrl.u32 920167782, %v2681
    %v2694 = vor.u32 %v2692, %v2693
    %v2695 = vshll.u32 920167782, %v2680
    %v2696 = vshrl.u32 1326507024, %v2681
    %v2697 = vor.u32 %v2695, %v2696
    %vm2698 = vcmp.lt.s32.totalorder %v2679, 1
    %vm2699 = vcmp.lt.s32.totalorder %v2679, 2
    %vm2700 = vcmp.lt.s32.totalorder %v2679, 3
    %vm2701 = vcmp.lt.s32.totalorder %v2679, 4
    %v2702 = vsel %vm2698, %v2682, %v2685
    %v2703 = vsel %vm2701, %v2691, 2102212464
    %v2704 = vsel %vm2700, %v2688, %v2703
    %v2705 = vsel %vm2699, %v2702, %v2704
    %v2706 = vsel %vm2698, %v2685, %v2688
    %v2707 = vsel %vm2701, %v2694, 920167782
    %v2708 = vsel %vm2700, %v2691, %v2707
    %v2709 = vsel %vm2699, %v2706, %v2708
    %v2710 = vsel %vm2698, %v2688, %v2691
    %v2711 = vsel %vm2701, %v2697, 1326507024
    %v2712 = vsel %vm2700, %v2694, %v2711
    %v2713 = vsel %vm2699, %v2710, %v2712
    %v2714 = vshll.u32 %v2674, 8
    %v2715 = vand.u32 %v2714, 65535
    %v2716 = vshrl.u32 %v2714, 16
    %v2717 = vand.u32 %v2713, 65535
    %v2718 = vshrl.u32 %v2713, 16
    %v2719 = vmul.u32 %v2715, %v2717
    %v2720 = vmul.u32 %v2715, %v2718
    %v2721 = vmul.u32 %v2716, %v2717
    %v2722 = vmul.u32 %v2716, %v2718
    %v2723 = vshll.u32 %v2720, 16
    %v2724 = vshrl.u32 %v2720, 16
    %v2725 = vshll.u32 %v2721, 16
    %v2726 = vshrl.u32 %v2721, 16
    %vm2727 = vc.u32 %v2719, %v2723
    %v2728 = vsel %vm2727, 1, 0
    %v2729 = vadd.s32 %v2719, %v2723
    %v2730 = vadd.s32 %v2722, %v2728
    %vm2731 = vc.u32 %v2729, %v2725
    %v2732 = vsel %vm2731, 1, 0
    %v2733 = vadd.s32 %v2729, %v2725
    %v2734 = vadd.s32 %v2730, %v2732
    %v2735 = vadd.s32 %v2734, %v2724
    %v2736 = vadd.s32 %v2735, %v2726
    %v2737 = vand.u32 %v2714, 65535
    %v2738 = vshrl.u32 %v2714, 16
    %v2739 = vand.u32 %v2709, 65535
    %v2740 = vshrl.u32 %v2709, 16
    %v2741 = vmul.u32 %v2737, %v2739
    %v2742 = vmul.u32 %v2737, %v2740
    %v2743 = vmul.u32 %v2738, %v2739
    %v2744 = vmul.u32 %v2738, %v2740
    %v2745 = vshll.u32 %v2742, 16
    %v2746 = vshrl.u32 %v2742, 16
    %v2747 = vshll.u32 %v2743, 16
    %v2748 = vshrl.u32 %v2743, 16
    %vm2749 = vc.u32 %v2741, %v2745
    %v2750 = vsel %vm2749, 1, 0
    %v2751 = vadd.s32 %v2741, %v2745
    %v2752 = vadd.s32 %v2744, %v2750
    %vm2753 = vc.u32 %v2751, %v2747
    %v2754 = vsel %vm2753, 1, 0
    %v2755 = vadd.s32 %v2751, %v2747
    %v2756 = vadd.s32 %v2752, %v2754
    %v2757 = vadd.s32 %v2756, %v2746
    %v2758 = vadd.s32 %v2757, %v2748
    %v2759 = vmul.u32 %v2714, %v2705
    %v2760 = vadd.s32 %v2736, %v2755
    %vm2761 = vc.u32 %v2736, %v2755
    %v2762 = vadd.s32 %v2758, 1
    %v2763 = vsel %vm2761, %v2762, %v2758
    %v2764 = vadd.s32 %v2759, %v2763
    %v2765 = vadd.s32 %v2764, 536870912
    %v2766 = vshrl.u32 %v2765, 30
    %v2767 = vshll.u32 %v2766, 30
    %v2768 = vsub.s32 %v2764, %v2767
    %vm2769 = vcmp.lt.s32.totalorder %v2768, 0
    %v2770 = vsub.s32 0, %v2768
    %v2771 = vsel %vm2769, %v2770, %v2768
    %v2772 = vclz %v2771
    %v2773 = vsub.s32 %v2772, 2
    %vm2774 = vcmp.gt.s32.totalorder 0, %v2773
    %v2775 = vsel %vm2774, 0, %v2773
    %v2776 = vsub.s32 32, %v2775
    %v2777 = vshll.u32 %v2768, %v2775
    %v2778 = vshrl.u32 %v2760, %v2776
    %v2779 = vor.u32 %v2777, %v2778
    %v2780 = vsub.s32 4294967266, %v2775
    %v2781 = vadd.s32 %v2780, 127
    %v2782 = vshll.u32 %v2781, 23
    %v2783 = vor.u32 4788187, %v2782
    %v2784 = vand.u32 2147483647, %v2783
    %v2786 = vcvt.s32.f32 %v2779
    %v2787 = vmul.f32 %v2786, %v2784
    %v2788 = vxor.u32 %v2787, 2147483648
    %v2789 = vsel %vm2668, %v2788, %v2787
    %v2790 = vsub.s32 4, %v2766
    %v2791 = vsel %vm2668, %v2790, %v2766
    %v2792 = vsel %vm2667, %v185, %v2789
    %v2793 = vsel %vm2667, 0, %v2791
    %v2794 = vmul.f32 %v2792, %v2792
    %v2795 = vmul.f32 %v2794, -0.001358992
    %v2796 = vadd.f32 %v2795, 0.041655596
    %v2797 = vmul.f32 %v2794, %v2796
    %v2798 = vadd.f32 %v2797, -0.4999988
    %v2799 = vmul.f32 %v2794, %v2798
    %v2800 = vadd.f32 1.0, %v2799
    %v2801 = vmul.f32 %v2792, %v2792
    %v2802 = vmul.f32 %v2801, -0.00019511016
    %v2803 = vadd.f32 %v2802, 0.008332121
    %v2804 = vmul.f32 %v2801, %v2803
    %v2805 = vadd.f32 %v2804, -0.16666654
    %v2806 = vmul.f32 %v2801, %v2805
    %v2807 = vadd.f32 %v2806, 1.0
    %v2808 = vmul.f32 %v2807, %v2792
    %vm2809 = vweird.f32 %v185
    %v2810 = vadd.s32 %v2793, 3
    %v2811 = vand.u32 %v2810, 3
    %vm2812 = vcmp.lt.s32.totalorder %v2811, 2
    %vm2813 = vcmp.eq.s32.totalorder %v2811, 0
    %v2814 = vxor.u32 %v2808, 2147483648
    %v2815 = vsel %vm2813, %v2800, %v2814
    %vm2816 = vcmp.eq.s32.totalorder %v2811, 2
    %v2817 = vxor.u32 %v2800, 2147483648
    %v2818 = vsel %vm2816, %v2817, %v2808
    %v2819 = vsel %vm2812, %v2815, %v2818
    %v2820 = vsel %vm2809, nan, %v2819
    %v2821 = vand.u32 2147483647, %v186
    %vm2822 = vcmp.le.f32.partialorder %v2821, 0.7853982
    %vm2823 = vcmp.lt.s32.totalorder %v186, 0
    %v2824 = vand.u32 %v186, 2139095040
    %v2825 = vshrl.u32 %v2824, 23
    %v2826 = vsub.s32 %v2825, 127
    %v2827 = vand.u32 2147483647, %v186
    %v2828 = vand.u32 %v2827, 8388607
    %v2829 = vor.u32 %v2828, 8388608
    %v2830 = vsub.s32 0, %v2829
    %v2831 = vadd.s32 %v2826, 1
    %vm2832 = vcmp.gt.s32.totalorder %v2831, 0
    %v2833 = vsel %vm2832, %v2831, 0
    %v2834 = vshrl.u32 %v2833, 5
    %v2835 = vand.u32 %v2833, 31
    %v2836 = vsub.s32 32, %v2835
    %v2837 = vshrl.u32 683565275, %v2836
    %v2838 = vshll.u32 683565275, %v2835
    %v2839 = vshrl.u32 2475754826, %v2836
    %v2840 = vor.u32 %v2838, %v2839
    %v2841 = vshll.u32 2475754826, %v2835
    %v2842 = vshrl.u32 2131351028, %v2836
    %v2843 = vor.u32 %v2841, %v2842
    %v2844 = vshll.u32 2131351028, %v2835
    %v2845 = vshrl.u32 2102212464, %v2836
    %v2846 = vor.u32 %v2844, %v2845
    %v2847 = vshll.u32 2102212464, %v2835
    %v2848 = vshrl.u32 920167782, %v2836
    %v2849 = vor.u32 %v2847, %v2848
    %v2850 = vshll.u32 920167782, %v2835
    %v2851 = vshrl.u32 1326507024, %v2836
    %v2852 = vor.u32 %v2850, %v2851
    %vm2853 = vcmp.lt.s32.totalorder %v2834, 1
    %vm2854 = vcmp.lt.s32.totalorder %v2834, 2
    %vm2855 = vcmp.lt.s32.totalorder %v2834, 3
    %vm2856 = vcmp.lt.s32.totalorder %v2834, 4
    %v2857 = vsel %vm2853, %v2837, %v2840
    %v2858 = vsel %vm2856, %v2846, 2102212464
    %v2859 = vsel %vm2855, %v2843, %v2858
    %v2860 = vsel %vm2854, %v2857, %v2859
    %v2861 = vsel %vm2853, %v2840, %v2843
    %v2862 = vsel %vm2856, %v2849, 920167782
    %v2863 = vsel %vm2855, %v2846, %v2862
    %v2864 = vsel %vm2854, %v2861, %v2863
    %v2865 = vsel %vm2853, %v2843, %v2846
    %v2866 = vsel %vm2856, %v2852, 1326507024
    %v2867 = vsel %vm2855, %v2849, %v2866
    %v2868 = vsel %vm2854, %v2865, %v2867
    %v2869 = vshll.u32 %v2829, 8
    %v2870 = vand.u32 %v2869, 65535
    %v2871 = vshrl.u32 %v2869, 16
    %v2872 = vand.u32 %v2868, 65535
    %v2873 = vshrl.u32 %v2868, 16
    %v2874 = vmul.u32 %v2870, %v2872
    %v2875 = vmul.u32 %v2870, %v2873
    %v2876 = vmul.u32 %v2871, %v2872
    %v2877 = vmul.u32 %v2871, %v2873
    %v2878 = vshll.u32 %v2875, 16
    %v2879 = vshrl.u32 %v2875, 16
    %v2880 = vshll.u32 %v2876, 16
    %v2881 = vshrl.u32 %v2876, 16
    %vm2882 = vc.u32 %v2874, %v2878
    %v2883 = vsel %vm2882, 1, 0
    %v2884 = vadd.s32 %v2874, %v2878
    %v2885 = vadd.s32 %v2877, %v2883
    %vm2886 = vc.u32 %v2884, %v2880
    %v2887 = vsel %vm2886, 1, 0
    %v2888 = vadd.s32 %v2884, %v2880
    %v2889 = vadd.s32 %v2885, %v2887
    %v2890 = vadd.s32 %v2889, %v2879
    %v2891 = vadd.s32 %v2890, %v2881
    %v2892 = vand.u32 %v2869, 65535
    %v2893 = vshrl.u32 %v2869, 16
    %v2894 = vand.u32 %v2864, 65535
    %v2895 = vshrl.u32 %v2864, 16
    %v2896 = vmul.u32 %v2892, %v2894
    %v2897 = vmul.u32 %v2892, %v2895
    %v2898 = vmul.u32 %v2893, %v2894
    %v2899 = vmul.u32 %v2893, %v2895
    %v2900 = vshll.u32 %v2897, 16
    %v2901 = vshrl.u32 %v2897, 16
    %v2902 = vshll.u32 %v2898, 16
    %v2903 = vshrl.u32 %v2898, 16
    %vm2904 = vc.u32 %v2896, %v2900
    %v2905 = vsel %vm2904, 1, 0
    %v2906 = vadd.s32 %v2896, %v2900
    %v2907 = vadd.s32 %v2899, %v2905
    %vm2908 = vc.u32 %v2906, %v2902
    %v2909 = vsel %vm2908, 1, 0
    %v2910 = vadd.s32 %v2906, %v2902
    %v2911 = vadd.s32 %v2907, %v2909
    %v2912 = vadd.s32 %v2911, %v2901
    %v2913 = vadd.s32 %v2912, %v2903
    %v2914 = vmul.u32 %v2869, %v2860
    %v2915 = vadd.s32 %v2891, %v2910
    %vm2916 = vc.u32 %v2891, %v2910
    %v2917 = vadd.s32 %v2913, 1
    %v2918 = vsel %vm2916, %v2917, %v2913
    %v2919 = vadd.s32 %v2914, %v2918
    %v2920 = vadd.s32 %v2919, 536870912
    %v2921 = vshrl.u32 %v2920, 30
    %v2922 = vshll.u32 %v2921, 30
    %v2923 = vsub.s32 %v2919, %v2922
    %vm2924 = vcmp.lt.s32.totalorder %v2923, 0
    %v2925 = vsub.s32 0, %v2923
    %v2926 = vsel %vm2924, %v2925, %v2923
    %v2927 = vclz %v2926
    %v2928 = vsub.s32 %v2927, 2
    %vm2929 = vcmp.gt.s32.totalorder 0, %v2928
    %v2930 = vsel %vm2929, 0, %v2928
    %v2931 = vsub.s32 32, %v2930
    %v2932 = vshll.u32 %v2923, %v2930
    %v2933 = vshrl.u32 %v2915, %v2931
    %v2934 = vor.u32 %v2932, %v2933
    %v2935 = vsub.s32 4294967266, %v2930
    %v2936 = vadd.s32 %v2935, 127
    %v2937 = vshll.u32 %v2936, 23
    %v2938 = vor.u32 4788187, %v2937
    %v2939 = vand.u32 2147483647, %v2938
    %v2941 = vcvt.s32.f32 %v2934
    %v2942 = vmul.f32 %v2941, %v2939
    %v2943 = vxor.u32 %v2942, 2147483648
    %v2944 = vsel %vm2823, %v2943, %v2942
    %v2945 = vsub.s32 4, %v2921
    %v2946 = vsel %vm2823, %v2945, %v2921
    %v2947 = vsel %vm2822, %v186, %v2944
    %v2948 = vsel %vm2822, 0, %v2946
    %v2949 = vmul.f32 %v2947, %v2947
    %v2950 = vmul.f32 %v2949, -0.001358992
    %v2951 = vadd.f32 %v2950, 0.041655596
    %v2952 = vmul.f32 %v2949, %v2951
    %v2953 = vadd.f32 %v2952, -0.4999988
    %v2954 = vmul.f32 %v2949, %v2953
    %v2955 = vadd.f32 1.0, %v2954
    %v2956 = vmul.f32 %v2947, %v2947
    %v2957 = vmul.f32 %v2956, -0.00019511016
    %v2958 = vadd.f32 %v2957, 0.008332121
    %v2959 = vmul.f32 %v2956, %v2958
    %v2960 = vadd.f32 %v2959, -0.16666654
    %v2961 = vmul.f32 %v2956, %v2960
    %v2962 = vadd.f32 %v2961, 1.0
    %v2963 = vmul.f32 %v2962, %v2947
    %vm2964 = vweird.f32 %v186
    %v2965 = vadd.s32 %v2948, 3
    %v2966 = vand.u32 %v2965, 3
    %vm2967 = vcmp.lt.s32.totalorder %v2966, 2
    %vm2968 = vcmp.eq.s32.totalorder %v2966, 0
    %v2969 = vxor.u32 %v2963, 2147483648
    %v2970 = vsel %vm2968, %v2955, %v2969
    %vm2971 = vcmp.eq.s32.totalorder %v2966, 2
    %v2972 = vxor.u32 %v2955, 2147483648
    %v2973 = vsel %vm2971, %v2972, %v2963
    %v2974 = vsel %vm2967, %v2970, %v2973
    %v2975 = vsel %vm2964, nan, %v2974
    %v2976 = vand.u32 2147483647, %v187
    %vm2977 = vcmp.le.f32.partialorder %v2976, 0.7853982
    %vm2978 = vcmp.lt.s32.totalorder %v187, 0
    %v2979 = vand.u32 %v187, 2139095040
    %v2980 = vshrl.u32 %v2979, 23
    %v2981 = vsub.s32 %v2980, 127
    %v2982 = vand.u32 2147483647, %v187
    %v2983 = vand.u32 %v2982, 8388607
    %v2984 = vor.u32 %v2983, 8388608
    %v2985 = vsub.s32 0, %v2984
    %v2986 = vadd.s32 %v2981, 1
    %vm2987 = vcmp.gt.s32.totalorder %v2986, 0
    %v2988 = vsel %vm2987, %v2986, 0
    %v2989 = vshrl.u32 %v2988, 5
    %v2990 = vand.u32 %v2988, 31
    %v2991 = vsub.s32 32, %v2990
    %v2992 = vshrl.u32 683565275, %v2991
    %v2993 = vshll.u32 683565275, %v2990
    %v2994 = vshrl.u32 2475754826, %v2991
    %v2995 = vor.u32 %v2993, %v2994
    %v2996 = vshll.u32 2475754826, %v2990
    %v2997 = vshrl.u32 2131351028, %v2991
    %v2998 = vor.u32 %v2996, %v2997
    %v2999 = vshll.u32 2131351028, %v2990
    %v3000 = vshrl.u32 2102212464, %v2991
    %v3001 = vor.u32 %v2999, %v3000
    %v3002 = vshll.u32 2102212464, %v2990
    %v3003 = vshrl.u32 920167782, %v2991
    %v3004 = vor.u32 %v3002, %v3003
    %v3005 = vshll.u32 920167782, %v2990
    %v3006 = vshrl.u32 1326507024, %v2991
    %v3007 = vor.u32 %v3005, %v3006
    %vm3008 = vcmp.lt.s32.totalorder %v2989, 1
    %vm3009 = vcmp.lt.s32.totalorder %v2989, 2
    %vm3010 = vcmp.lt.s32.totalorder %v2989, 3
    %vm3011 = vcmp.lt.s32.totalorder %v2989, 4
    %v3012 = vsel %vm3008, %v2992, %v2995
    %v3013 = vsel %vm3011, %v3001, 2102212464
    %v3014 = vsel %vm3010, %v2998, %v3013
    %v3015 = vsel %vm3009, %v3012, %v3014
    %v3016 = vsel %vm3008, %v2995, %v2998
    %v3017 = vsel %vm3011, %v3004, 920167782
    %v3018 = vsel %vm3010, %v3001, %v3017
    %v3019 = vsel %vm3009, %v3016, %v3018
    %v3020 = vsel %vm3008, %v2998, %v3001
    %v3021 = vsel %vm3011, %v3007, 1326507024
    %v3022 = vsel %vm3010, %v3004, %v3021
    %v3023 = vsel %vm3009, %v3020, %v3022
    %v3024 = vshll.u32 %v2984, 8
    %v3025 = vand.u32 %v3024, 65535
    %v3026 = vshrl.u32 %v3024, 16
    %v3027 = vand.u32 %v3023, 65535
    %v3028 = vshrl.u32 %v3023, 16
    %v3029 = vmul.u32 %v3025, %v3027
    %v3030 = vmul.u32 %v3025, %v3028
    %v3031 = vmul.u32 %v3026, %v3027
    %v3032 = vmul.u32 %v3026, %v3028
    %v3033 = vshll.u32 %v3030, 16
    %v3034 = vshrl.u32 %v3030, 16
    %v3035 = vshll.u32 %v3031, 16
    %v3036 = vshrl.u32 %v3031, 16
    %vm3037 = vc.u32 %v3029, %v3033
    %v3038 = vsel %vm3037, 1, 0
    %v3039 = vadd.s32 %v3029, %v3033
    %v3040 = vadd.s32 %v3032, %v3038
    %vm3041 = vc.u32 %v3039, %v3035
    %v3042 = vsel %vm3041, 1, 0
    %v3043 = vadd.s32 %v3039, %v3035
    %v3044 = vadd.s32 %v3040, %v3042
    %v3045 = vadd.s32 %v3044, %v3034
    %v3046 = vadd.s32 %v3045, %v3036
    %v3047 = vand.u32 %v3024, 65535
    %v3048 = vshrl.u32 %v3024, 16
    %v3049 = vand.u32 %v3019, 65535
    %v3050 = vshrl.u32 %v3019, 16
    %v3051 = vmul.u32 %v3047, %v3049
    %v3052 = vmul.u32 %v3047, %v3050
    %v3053 = vmul.u32 %v3048, %v3049
    %v3054 = vmul.u32 %v3048, %v3050
    %v3055 = vshll.u32 %v3052, 16
    %v3056 = vshrl.u32 %v3052, 16
    %v3057 = vshll.u32 %v3053, 16
    %v3058 = vshrl.u32 %v3053, 16
    %vm3059 = vc.u32 %v3051, %v3055
    %v3060 = vsel %vm3059, 1, 0
    %v3061 = vadd.s32 %v3051, %v3055
    %v3062 = vadd.s32 %v3054, %v3060
    %vm3063 = vc.u32 %v3061, %v3057
    %v3064 = vsel %vm3063, 1, 0
    %v3065 = vadd.s32 %v3061, %v3057
    %v3066 = vadd.s32 %v3062, %v3064
    %v3067 = vadd.s32 %v3066, %v3056
    %v3068 = vadd.s32 %v3067, %v3058
    %v3069 = vmul.u32 %v3024, %v3015
    %v3070 = vadd.s32 %v3046, %v3065
    %vm3071 = vc.u32 %v3046, %v3065
    %v3072 = vadd.s32 %v3068, 1
    %v3073 = vsel %vm3071, %v3072, %v3068
    %v3074 = vadd.s32 %v3069, %v3073
    %v3075 = vadd.s32 %v3074, 536870912
    %v3076 = vshrl.u32 %v3075, 30
    %v3077 = vshll.u32 %v3076, 30
    %v3078 = vsub.s32 %v3074, %v3077
    %vm3079 = vcmp.lt.s32.totalorder %v3078, 0
    %v3080 = vsub.s32 0, %v3078
    %v3081 = vsel %vm3079, %v3080, %v3078
    %v3082 = vclz %v3081
    %v3083 = vsub.s32 %v3082, 2
    %vm3084 = vcmp.gt.s32.totalorder 0, %v3083
    %v3085 = vsel %vm3084, 0, %v3083
    %v3086 = vsub.s32 32, %v3085
    %v3087 = vshll.u32 %v3078, %v3085
    %v3088 = vshrl.u32 %v3070, %v3086
    %v3089 = vor.u32 %v3087, %v3088
    %v3090 = vsub.s32 4294967266, %v3085
    %v3091 = vadd.s32 %v3090, 127
    %v3092 = vshll.u32 %v3091, 23
    %v3093 = vor.u32 4788187, %v3092
    %v3094 = vand.u32 2147483647, %v3093
    %v3096 = vcvt.s32.f32 %v3089
    %v3097 = vmul.f32 %v3096, %v3094
    %v3098 = vxor.u32 %v3097, 2147483648
    %v3099 = vsel %vm2978, %v3098, %v3097
    %v3100 = vsub.s32 4, %v3076
    %v3101 = vsel %vm2978, %v3100, %v3076
    %v3102 = vsel %vm2977, %v187, %v3099
    %v3103 = vsel %vm2977, 0, %v3101
    %v3104 = vmul.f32 %v3102, %v3102
    %v3105 = vmul.f32 %v3104, -0.001358992
    %v3106 = vadd.f32 %v3105, 0.041655596
    %v3107 = vmul.f32 %v3104, %v3106
    %v3108 = vadd.f32 %v3107, -0.4999988
    %v3109 = vmul.f32 %v3104, %v3108
    %v3110 = vadd.f32 1.0, %v3109
    %v3111 = vmul.f32 %v3102, %v3102
    %v3112 = vmul.f32 %v3111, -0.00019511016
    %v3113 = vadd.f32 %v3112, 0.008332121
    %v3114 = vmul.f32 %v3111, %v3113
    %v3115 = vadd.f32 %v3114, -0.16666654
    %v3116 = vmul.f32 %v3111, %v3115
    %v3117 = vadd.f32 %v3116, 1.0
    %v3118 = vmul.f32 %v3117, %v3102
    %vm3119 = vweird.f32 %v187
    %v3120 = vadd.s32 %v3103, 3
    %v3121 = vand.u32 %v3120, 3
    %vm3122 = vcmp.lt.s32.totalorder %v3121, 2
    %vm3123 = vcmp.eq.s32.totalorder %v3121, 0
    %v3124 = vxor.u32 %v3118, 2147483648
    %v3125 = vsel %vm3123, %v3110, %v3124
    %vm3126 = vcmp.eq.s32.totalorder %v3121, 2
    %v3127 = vxor.u32 %v3110, 2147483648
    %v3128 = vsel %vm3126, %v3127, %v3118
    %v3129 = vsel %vm3122, %v3125, %v3128
    %v3130 = vsel %vm3119, nan, %v3129
    %v3131 = vand.u32 2147483647, %v188
    %vm3132 = vcmp.le.f32.partialorder %v3131, 0.7853982
    %vm3133 = vcmp.lt.s32.totalorder %v188, 0
    %v3134 = vand.u32 %v188, 2139095040
    %v3135 = vshrl.u32 %v3134, 23
    %v3136 = vsub.s32 %v3135, 127
    %v3137 = vand.u32 2147483647, %v188
    %v3138 = vand.u32 %v3137, 8388607
    %v3139 = vor.u32 %v3138, 8388608
    %v3140 = vsub.s32 0, %v3139
    %v3141 = vadd.s32 %v3136, 1
    %vm3142 = vcmp.gt.s32.totalorder %v3141, 0
    %v3143 = vsel %vm3142, %v3141, 0
    %v3144 = vshrl.u32 %v3143, 5
    %v3145 = vand.u32 %v3143, 31
    %v3146 = vsub.s32 32, %v3145
    %v3147 = vshrl.u32 683565275, %v3146
    %v3148 = vshll.u32 683565275, %v3145
    %v3149 = vshrl.u32 2475754826, %v3146
    %v3150 = vor.u32 %v3148, %v3149
    %v3151 = vshll.u32 2475754826, %v3145
    %v3152 = vshrl.u32 2131351028, %v3146
    %v3153 = vor.u32 %v3151, %v3152
    %v3154 = vshll.u32 2131351028, %v3145
    %v3155 = vshrl.u32 2102212464, %v3146
    %v3156 = vor.u32 %v3154, %v3155
    %v3157 = vshll.u32 2102212464, %v3145
    %v3158 = vshrl.u32 920167782, %v3146
    %v3159 = vor.u32 %v3157, %v3158
    %v3160 = vshll.u32 920167782, %v3145
    %v3161 = vshrl.u32 1326507024, %v3146
    %v3162 = vor.u32 %v3160, %v3161
    %vm3163 = vcmp.lt.s32.totalorder %v3144, 1
    %vm3164 = vcmp.lt.s32.totalorder %v3144, 2
    %vm3165 = vcmp.lt.s32.totalorder %v3144, 3
    %vm3166 = vcmp.lt.s32.totalorder %v3144, 4
    %v3167 = vsel %vm3163, %v3147, %v3150
    %v3168 = vsel %vm3166, %v3156, 2102212464
    %v3169 = vsel %vm3165, %v3153, %v3168
    %v3170 = vsel %vm3164, %v3167, %v3169
    %v3171 = vsel %vm3163, %v3150, %v3153
    %v3172 = vsel %vm3166, %v3159, 920167782
    %v3173 = vsel %vm3165, %v3156, %v3172
    %v3174 = vsel %vm3164, %v3171, %v3173
    %v3175 = vsel %vm3163, %v3153, %v3156
    %v3176 = vsel %vm3166, %v3162, 1326507024
    %v3177 = vsel %vm3165, %v3159, %v3176
    %v3178 = vsel %vm3164, %v3175, %v3177
    %v3179 = vshll.u32 %v3139, 8
    %v3180 = vand.u32 %v3179, 65535
    %v3181 = vshrl.u32 %v3179, 16
    %v3182 = vand.u32 %v3178, 65535
    %v3183 = vshrl.u32 %v3178, 16
    %v3184 = vmul.u32 %v3180, %v3182
    %v3185 = vmul.u32 %v3180, %v3183
    %v3186 = vmul.u32 %v3181, %v3182
    %v3187 = vmul.u32 %v3181, %v3183
    %v3188 = vshll.u32 %v3185, 16
    %v3189 = vshrl.u32 %v3185, 16
    %v3190 = vshll.u32 %v3186, 16
    %v3191 = vshrl.u32 %v3186, 16
    %vm3192 = vc.u32 %v3184, %v3188
    %v3193 = vsel %vm3192, 1, 0
    %v3194 = vadd.s32 %v3184, %v3188
    %v3195 = vadd.s32 %v3187, %v3193
    %vm3196 = vc.u32 %v3194, %v3190
    %v3197 = vsel %vm3196, 1, 0
    %v3198 = vadd.s32 %v3194, %v3190
    %v3199 = vadd.s32 %v3195, %v3197
    %v3200 = vadd.s32 %v3199, %v3189
    %v3201 = vadd.s32 %v3200, %v3191
    %v3202 = vand.u32 %v3179, 65535
    %v3203 = vshrl.u32 %v3179, 16
    %v3204 = vand.u32 %v3174, 65535
    %v3205 = vshrl.u32 %v3174, 16
    %v3206 = vmul.u32 %v3202, %v3204
    %v3207 = vmul.u32 %v3202, %v3205
    %v3208 = vmul.u32 %v3203, %v3204
    %v3209 = vmul.u32 %v3203, %v3205
    %v3210 = vshll.u32 %v3207, 16
    %v3211 = vshrl.u32 %v3207, 16
    %v3212 = vshll.u32 %v3208, 16
    %v3213 = vshrl.u32 %v3208, 16
    %vm3214 = vc.u32 %v3206, %v3210
    %v3215 = vsel %vm3214, 1, 0
    %v3216 = vadd.s32 %v3206, %v3210
    %v3217 = vadd.s32 %v3209, %v3215
    %vm3218 = vc.u32 %v3216, %v3212
    %v3219 = vsel %vm3218, 1, 0
    %v3220 = vadd.s32 %v3216, %v3212
    %v3221 = vadd.s32 %v3217, %v3219
    %v3222 = vadd.s32 %v3221, %v3211
    %v3223 = vadd.s32 %v3222, %v3213
    %v3224 = vmul.u32 %v3179, %v3170
    %v3225 = vadd.s32 %v3201, %v3220
    %vm3226 = vc.u32 %v3201, %v3220
    %v3227 = vadd.s32 %v3223, 1
    %v3228 = vsel %vm3226, %v3227, %v3223
    %v3229 = vadd.s32 %v3224, %v3228
    %v3230 = vadd.s32 %v3229, 536870912
    %v3231 = vshrl.u32 %v3230, 30
    %v3232 = vshll.u32 %v3231, 30
    %v3233 = vsub.s32 %v3229, %v3232
    %vm3234 = vcmp.lt.s32.totalorder %v3233, 0
    %v3235 = vsub.s32 0, %v3233
    %v3236 = vsel %vm3234, %v3235, %v3233
    %v3237 = vclz %v3236
    %v3238 = vsub.s32 %v3237, 2
    %vm3239 = vcmp.gt.s32.totalorder 0, %v3238
    %v3240 = vsel %vm3239, 0, %v3238
    %v3241 = vsub.s32 32, %v3240
    %v3242 = vshll.u32 %v3233, %v3240
    %v3243 = vshrl.u32 %v3225, %v3241
    %v3244 = vor.u32 %v3242, %v3243
    %v3245 = vsub.s32 4294967266, %v3240
    %v3246 = vadd.s32 %v3245, 127
    %v3247 = vshll.u32 %v3246, 23
    %v3248 = vor.u32 4788187, %v3247
    %v3249 = vand.u32 2147483647, %v3248
    %v3251 = vcvt.s32.f32 %v3244
    %v3252 = vmul.f32 %v3251, %v3249
    %v3253 = vxor.u32 %v3252, 2147483648
    %v3254 = vsel %vm3133, %v3253, %v3252
    %v3255 = vsub.s32 4, %v3231
    %v3256 = vsel %vm3133, %v3255, %v3231
    %v3257 = vsel %vm3132, %v188, %v3254
    %v3258 = vsel %vm3132, 0, %v3256
    %v3259 = vmul.f32 %v3257, %v3257
    %v3260 = vmul.f32 %v3259, -0.001358992
    %v3261 = vadd.f32 %v3260, 0.041655596
    %v3262 = vmul.f32 %v3259, %v3261
    %v3263 = vadd.f32 %v3262, -0.4999988
    %v3264 = vmul.f32 %v3259, %v3263
    %v3265 = vadd.f32 1.0, %v3264
    %v3266 = vmul.f32 %v3257, %v3257
    %v3267 = vmul.f32 %v3266, -0.00019511016
    %v3268 = vadd.f32 %v3267, 0.008332121
    %v3269 = vmul.f32 %v3266, %v3268
    %v3270 = vadd.f32 %v3269, -0.16666654
    %v3271 = vmul.f32 %v3266, %v3270
    %v3272 = vadd.f32 %v3271, 1.0
    %v3273 = vmul.f32 %v3272, %v3257
    %vm3274 = vweird.f32 %v188
    %v3275 = vadd.s32 %v3258, 3
    %v3276 = vand.u32 %v3275, 3
    %vm3277 = vcmp.lt.s32.totalorder %v3276, 2
    %vm3278 = vcmp.eq.s32.totalorder %v3276, 0
    %v3279 = vxor.u32 %v3273, 2147483648
    %v3280 = vsel %vm3278, %v3265, %v3279
    %vm3281 = vcmp.eq.s32.totalorder %v3276, 2
    %v3282 = vxor.u32 %v3265, 2147483648
    %v3283 = vsel %vm3281, %v3282, %v3273
    %v3284 = vsel %vm3277, %v3280, %v3283
    %v3285 = vsel %vm3274, nan, %v3284
    %v3286 = vand.u32 2147483647, %v189
    %vm3287 = vcmp.le.f32.partialorder %v3286, 0.7853982
    %vm3288 = vcmp.lt.s32.totalorder %v189, 0
    %v3289 = vand.u32 %v189, 2139095040
    %v3290 = vshrl.u32 %v3289, 23
    %v3291 = vsub.s32 %v3290, 127
    %v3292 = vand.u32 2147483647, %v189
    %v3293 = vand.u32 %v3292, 8388607
    %v3294 = vor.u32 %v3293, 8388608
    %v3295 = vsub.s32 0, %v3294
    %v3296 = vadd.s32 %v3291, 1
    %vm3297 = vcmp.gt.s32.totalorder %v3296, 0
    %v3298 = vsel %vm3297, %v3296, 0
    %v3299 = vshrl.u32 %v3298, 5
    %v3300 = vand.u32 %v3298, 31
    %v3301 = vsub.s32 32, %v3300
    %v3302 = vshrl.u32 683565275, %v3301
    %v3303 = vshll.u32 683565275, %v3300
    %v3304 = vshrl.u32 2475754826, %v3301
    %v3305 = vor.u32 %v3303, %v3304
    %v3306 = vshll.u32 2475754826, %v3300
    %v3307 = vshrl.u32 2131351028, %v3301
    %v3308 = vor.u32 %v3306, %v3307
    %v3309 = vshll.u32 2131351028, %v3300
    %v3310 = vshrl.u32 2102212464, %v3301
    %v3311 = vor.u32 %v3309, %v3310
    %v3312 = vshll.u32 2102212464, %v3300
    %v3313 = vshrl.u32 920167782, %v3301
    %v3314 = vor.u32 %v3312, %v3313
    %v3315 = vshll.u32 920167782, %v3300
    %v3316 = vshrl.u32 1326507024, %v3301
    %v3317 = vor.u32 %v3315, %v3316
    %vm3318 = vcmp.lt.s32.totalorder %v3299, 1
    %vm3319 = vcmp.lt.s32.totalorder %v3299, 2
    %vm3320 = vcmp.lt.s32.totalorder %v3299, 3
    %vm3321 = vcmp.lt.s32.totalorder %v3299, 4
    %v3322 = vsel %vm3318, %v3302, %v3305
    %v3323 = vsel %vm3321, %v3311, 2102212464
    %v3324 = vsel %vm3320, %v3308, %v3323
    %v3325 = vsel %vm3319, %v3322, %v3324
    %v3326 = vsel %vm3318, %v3305, %v3308
    %v3327 = vsel %vm3321, %v3314, 920167782
    %v3328 = vsel %vm3320, %v3311, %v3327
    %v3329 = vsel %vm3319, %v3326, %v3328
    %v3330 = vsel %vm3318, %v3308, %v3311
    %v3331 = vsel %vm3321, %v3317, 1326507024
    %v3332 = vsel %vm3320, %v3314, %v3331
    %v3333 = vsel %vm3319, %v3330, %v3332
    %v3334 = vshll.u32 %v3294, 8
    %v3335 = vand.u32 %v3334, 65535
    %v3336 = vshrl.u32 %v3334, 16
    %v3337 = vand.u32 %v3333, 65535
    %v3338 = vshrl.u32 %v3333, 16
    %v3339 = vmul.u32 %v3335, %v3337
    %v3340 = vmul.u32 %v3335, %v3338
    %v3341 = vmul.u32 %v3336, %v3337
    %v3342 = vmul.u32 %v3336, %v3338
    %v3343 = vshll.u32 %v3340, 16
    %v3344 = vshrl.u32 %v3340, 16
    %v3345 = vshll.u32 %v3341, 16
    %v3346 = vshrl.u32 %v3341, 16
    %vm3347 = vc.u32 %v3339, %v3343
    %v3348 = vsel %vm3347, 1, 0
    %v3349 = vadd.s32 %v3339, %v3343
    %v3350 = vadd.s32 %v3342, %v3348
    %vm3351 = vc.u32 %v3349, %v3345
    %v3352 = vsel %vm3351, 1, 0
    %v3353 = vadd.s32 %v3349, %v3345
    %v3354 = vadd.s32 %v3350, %v3352
    %v3355 = vadd.s32 %v3354, %v3344
    %v3356 = vadd.s32 %v3355, %v3346
    %v3357 = vand.u32 %v3334, 65535
    %v3358 = vshrl.u32 %v3334, 16
    %v3359 = vand.u32 %v3329, 65535
    %v3360 = vshrl.u32 %v3329, 16
    %v3361 = vmul.u32 %v3357, %v3359
    %v3362 = vmul.u32 %v3357, %v3360
    %v3363 = vmul.u32 %v3358, %v3359
    %v3364 = vmul.u32 %v3358, %v3360
    %v3365 = vshll.u32 %v3362, 16
    %v3366 = vshrl.u32 %v3362, 16
    %v3367 = vshll.u32 %v3363, 16
    %v3368 = vshrl.u32 %v3363, 16
    %vm3369 = vc.u32 %v3361, %v3365
    %v3370 = vsel %vm3369, 1, 0
    %v3371 = vadd.s32 %v3361, %v3365
    %v3372 = vadd.s32 %v3364, %v3370
    %vm3373 = vc.u32 %v3371, %v3367
    %v3374 = vsel %vm3373, 1, 0
    %v3375 = vadd.s32 %v3371, %v3367
    %v3376 = vadd.s32 %v3372, %v3374
    %v3377 = vadd.s32 %v3376, %v3366
    %v3378 = vadd.s32 %v3377, %v3368
    %v3379 = vmul.u32 %v3334, %v3325
    %v3380 = vadd.s32 %v3356, %v3375
    %vm3381 = vc.u32 %v3356, %v3375
    %v3382 = vadd.s32 %v3378, 1
    %v3383 = vsel %vm3381, %v3382, %v3378
    %v3384 = vadd.s32 %v3379, %v3383
    %v3385 = vadd.s32 %v3384, 536870912
    %v3386 = vshrl.u32 %v3385, 30
    %v3387 = vshll.u32 %v3386, 30
    %v3388 = vsub.s32 %v3384, %v3387
    %vm3389 = vcmp.lt.s32.totalorder %v3388, 0
    %v3390 = vsub.s32 0, %v3388
    %v3391 = vsel %vm3389, %v3390, %v3388
    %v3392 = vclz %v3391
    %v3393 = vsub.s32 %v3392, 2
    %vm3394 = vcmp.gt.s32.totalorder 0, %v3393
    %v3395 = vsel %vm3394, 0, %v3393
    %v3396 = vsub.s32 32, %v3395
    %v3397 = vshll.u32 %v3388, %v3395
    %v3398 = vshrl.u32 %v3380, %v3396
    %v3399 = vor.u32 %v3397, %v3398
    %v3400 = vsub.s32 4294967266, %v3395
    %v3401 = vadd.s32 %v3400, 127
    %v3402 = vshll.u32 %v3401, 23
    %v3403 = vor.u32 4788187, %v3402
    %v3404 = vand.u32 2147483647, %v3403
    %v3406 = vcvt.s32.f32 %v3399
    %v3407 = vmul.f32 %v3406, %v3404
    %v3408 = vxor.u32 %v3407, 2147483648
    %v3409 = vsel %vm3288, %v3408, %v3407
    %v3410 = vsub.s32 4, %v3386
    %v3411 = vsel %vm3288, %v3410, %v3386
    %v3412 = vsel %vm3287, %v189, %v3409
    %v3413 = vsel %vm3287, 0, %v3411
    %v3414 = vmul.f32 %v3412, %v3412
    %v3415 = vmul.f32 %v3414, -0.001358992
    %v3416 = vadd.f32 %v3415, 0.041655596
    %v3417 = vmul.f32 %v3414, %v3416
    %v3418 = vadd.f32 %v3417, -0.4999988
    %v3419 = vmul.f32 %v3414, %v3418
    %v3420 = vadd.f32 1.0, %v3419
    %v3421 = vmul.f32 %v3412, %v3412
    %v3422 = vmul.f32 %v3421, -0.00019511016
    %v3423 = vadd.f32 %v3422, 0.008332121
    %v3424 = vmul.f32 %v3421, %v3423
    %v3425 = vadd.f32 %v3424, -0.16666654
    %v3426 = vmul.f32 %v3421, %v3425
    %v3427 = vadd.f32 %v3426, 1.0
    %v3428 = vmul.f32 %v3427, %v3412
    %vm3429 = vweird.f32 %v189
    %v3430 = vadd.s32 %v3413, 3
    %v3431 = vand.u32 %v3430, 3
    %vm3432 = vcmp.lt.s32.totalorder %v3431, 2
    %vm3433 = vcmp.eq.s32.totalorder %v3431, 0
    %v3434 = vxor.u32 %v3428, 2147483648
    %v3435 = vsel %vm3433, %v3420, %v3434
    %vm3436 = vcmp.eq.s32.totalorder %v3431, 2
    %v3437 = vxor.u32 %v3420, 2147483648
    %v3438 = vsel %vm3436, %v3437, %v3428
    %v3439 = vsel %vm3432, %v3435, %v3438
    %v3440 = vsel %vm3429, nan, %v3439
    %v3441 = vand.u32 2147483647, %v190
    %vm3442 = vcmp.le.f32.partialorder %v3441, 0.7853982
    %vm3443 = vcmp.lt.s32.totalorder %v190, 0
    %v3444 = vand.u32 %v190, 2139095040
    %v3445 = vshrl.u32 %v3444, 23
    %v3446 = vsub.s32 %v3445, 127
    %v3447 = vand.u32 2147483647, %v190
    %v3448 = vand.u32 %v3447, 8388607
    %v3449 = vor.u32 %v3448, 8388608
    %v3450 = vsub.s32 0, %v3449
    %v3451 = vadd.s32 %v3446, 1
    %vm3452 = vcmp.gt.s32.totalorder %v3451, 0
    %v3453 = vsel %vm3452, %v3451, 0
    %v3454 = vshrl.u32 %v3453, 5
    %v3455 = vand.u32 %v3453, 31
    %v3456 = vsub.s32 32, %v3455
    %v3457 = vshrl.u32 683565275, %v3456
    %v3458 = vshll.u32 683565275, %v3455
    %v3459 = vshrl.u32 2475754826, %v3456
    %v3460 = vor.u32 %v3458, %v3459
    %v3461 = vshll.u32 2475754826, %v3455
    %v3462 = vshrl.u32 2131351028, %v3456
    %v3463 = vor.u32 %v3461, %v3462
    %v3464 = vshll.u32 2131351028, %v3455
    %v3465 = vshrl.u32 2102212464, %v3456
    %v3466 = vor.u32 %v3464, %v3465
    %v3467 = vshll.u32 2102212464, %v3455
    %v3468 = vshrl.u32 920167782, %v3456
    %v3469 = vor.u32 %v3467, %v3468
    %v3470 = vshll.u32 920167782, %v3455
    %v3471 = vshrl.u32 1326507024, %v3456
    %v3472 = vor.u32 %v3470, %v3471
    %vm3473 = vcmp.lt.s32.totalorder %v3454, 1
    %vm3474 = vcmp.lt.s32.totalorder %v3454, 2
    %vm3475 = vcmp.lt.s32.totalorder %v3454, 3
    %vm3476 = vcmp.lt.s32.totalorder %v3454, 4
    %v3477 = vsel %vm3473, %v3457, %v3460
    %v3478 = vsel %vm3476, %v3466, 2102212464
    %v3479 = vsel %vm3475, %v3463, %v3478
    %v3480 = vsel %vm3474, %v3477, %v3479
    %v3481 = vsel %vm3473, %v3460, %v3463
    %v3482 = vsel %vm3476, %v3469, 920167782
    %v3483 = vsel %vm3475, %v3466, %v3482
    %v3484 = vsel %vm3474, %v3481, %v3483
    %v3485 = vsel %vm3473, %v3463, %v3466
    %v3486 = vsel %vm3476, %v3472, 1326507024
    %v3487 = vsel %vm3475, %v3469, %v3486
    %v3488 = vsel %vm3474, %v3485, %v3487
    %v3489 = vshll.u32 %v3449, 8
    %v3490 = vand.u32 %v3489, 65535
    %v3491 = vshrl.u32 %v3489, 16
    %v3492 = vand.u32 %v3488, 65535
    %v3493 = vshrl.u32 %v3488, 16
    %v3494 = vmul.u32 %v3490, %v3492
    %v3495 = vmul.u32 %v3490, %v3493
    %v3496 = vmul.u32 %v3491, %v3492
    %v3497 = vmul.u32 %v3491, %v3493
    %v3498 = vshll.u32 %v3495, 16
    %v3499 = vshrl.u32 %v3495, 16
    %v3500 = vshll.u32 %v3496, 16
    %v3501 = vshrl.u32 %v3496, 16
    %vm3502 = vc.u32 %v3494, %v3498
    %v3503 = vsel %vm3502, 1, 0
    %v3504 = vadd.s32 %v3494, %v3498
    %v3505 = vadd.s32 %v3497, %v3503
    %vm3506 = vc.u32 %v3504, %v3500
    %v3507 = vsel %vm3506, 1, 0
    %v3508 = vadd.s32 %v3504, %v3500
    %v3509 = vadd.s32 %v3505, %v3507
    %v3510 = vadd.s32 %v3509, %v3499
    %v3511 = vadd.s32 %v3510, %v3501
    %v3512 = vand.u32 %v3489, 65535
    %v3513 = vshrl.u32 %v3489, 16
    %v3514 = vand.u32 %v3484, 65535
    %v3515 = vshrl.u32 %v3484, 16
    %v3516 = vmul.u32 %v3512, %v3514
    %v3517 = vmul.u32 %v3512, %v3515
    %v3518 = vmul.u32 %v3513, %v3514
    %v3519 = vmul.u32 %v3513, %v3515
    %v3520 = vshll.u32 %v3517, 16
    %v3521 = vshrl.u32 %v3517, 16
    %v3522 = vshll.u32 %v3518, 16
    %v3523 = vshrl.u32 %v3518, 16
    %vm3524 = vc.u32 %v3516, %v3520
    %v3525 = vsel %vm3524, 1, 0
    %v3526 = vadd.s32 %v3516, %v3520
    %v3527 = vadd.s32 %v3519, %v3525
    %vm3528 = vc.u32 %v3526, %v3522
    %v3529 = vsel %vm3528, 1, 0
    %v3530 = vadd.s32 %v3526, %v3522
    %v3531 = vadd.s32 %v3527, %v3529
    %v3532 = vadd.s32 %v3531, %v3521
    %v3533 = vadd.s32 %v3532, %v3523
    %v3534 = vmul.u32 %v3489, %v3480
    %v3535 = vadd.s32 %v3511, %v3530
    %vm3536 = vc.u32 %v3511, %v3530
    %v3537 = vadd.s32 %v3533, 1
    %v3538 = vsel %vm3536, %v3537, %v3533
    %v3539 = vadd.s32 %v3534, %v3538
    %v3540 = vadd.s32 %v3539, 536870912
    %v3541 = vshrl.u32 %v3540, 30
    %v3542 = vshll.u32 %v3541, 30
    %v3543 = vsub.s32 %v3539, %v3542
    %vm3544 = vcmp.lt.s32.totalorder %v3543, 0
    %v3545 = vsub.s32 0, %v3543
    %v3546 = vsel %vm3544, %v3545, %v3543
    %v3547 = vclz %v3546
    %v3548 = vsub.s32 %v3547, 2
    %vm3549 = vcmp.gt.s32.totalorder 0, %v3548
    %v3550 = vsel %vm3549, 0, %v3548
    %v3551 = vsub.s32 32, %v3550
    %v3552 = vshll.u32 %v3543, %v3550
    %v3553 = vshrl.u32 %v3535, %v3551
    %v3554 = vor.u32 %v3552, %v3553
    %v3555 = vsub.s32 4294967266, %v3550
    %v3556 = vadd.s32 %v3555, 127
    %v3557 = vshll.u32 %v3556, 23
    %v3558 = vor.u32 4788187, %v3557
    %v3559 = vand.u32 2147483647, %v3558
    %v3561 = vcvt.s32.f32 %v3554
    %v3562 = vmul.f32 %v3561, %v3559
    %v3563 = vxor.u32 %v3562, 2147483648
    %v3564 = vsel %vm3443, %v3563, %v3562
    %v3565 = vsub.s32 4, %v3541
    %v3566 = vsel %vm3443, %v3565, %v3541
    %v3567 = vsel %vm3442, %v190, %v3564
    %v3568 = vsel %vm3442, 0, %v3566
    %v3569 = vmul.f32 %v3567, %v3567
    %v3570 = vmul.f32 %v3569, -0.001358992
    %v3571 = vadd.f32 %v3570, 0.041655596
    %v3572 = vmul.f32 %v3569, %v3571
    %v3573 = vadd.f32 %v3572, -0.4999988
    %v3574 = vmul.f32 %v3569, %v3573
    %v3575 = vadd.f32 1.0, %v3574
    %v3576 = vmul.f32 %v3567, %v3567
    %v3577 = vmul.f32 %v3576, -0.00019511016
    %v3578 = vadd.f32 %v3577, 0.008332121
    %v3579 = vmul.f32 %v3576, %v3578
    %v3580 = vadd.f32 %v3579, -0.16666654
    %v3581 = vmul.f32 %v3576, %v3580
    %v3582 = vadd.f32 %v3581, 1.0
    %v3583 = vmul.f32 %v3582, %v3567
    %vm3584 = vweird.f32 %v190
    %v3585 = vadd.s32 %v3568, 3
    %v3586 = vand.u32 %v3585, 3
    %vm3587 = vcmp.lt.s32.totalorder %v3586, 2
    %vm3588 = vcmp.eq.s32.totalorder %v3586, 0
    %v3589 = vxor.u32 %v3583, 2147483648
    %v3590 = vsel %vm3588, %v3575, %v3589
    %vm3591 = vcmp.eq.s32.totalorder %v3586, 2
    %v3592 = vxor.u32 %v3575, 2147483648
    %v3593 = vsel %vm3591, %v3592, %v3583
    %v3594 = vsel %vm3587, %v3590, %v3593
    %v3595 = vsel %vm3584, nan, %v3594
    %v3596 = vand.u32 2147483647, %v191
    %vm3597 = vcmp.le.f32.partialorder %v3596, 0.7853982
    %vm3598 = vcmp.lt.s32.totalorder %v191, 0
    %v3599 = vand.u32 %v191, 2139095040
    %v3600 = vshrl.u32 %v3599, 23
    %v3601 = vsub.s32 %v3600, 127
    %v3602 = vand.u32 2147483647, %v191
    %v3603 = vand.u32 %v3602, 8388607
    %v3604 = vor.u32 %v3603, 8388608
    %v3605 = vsub.s32 0, %v3604
    %v3606 = vadd.s32 %v3601, 1
    %vm3607 = vcmp.gt.s32.totalorder %v3606, 0
    %v3608 = vsel %vm3607, %v3606, 0
    %v3609 = vshrl.u32 %v3608, 5
    %v3610 = vand.u32 %v3608, 31
    %v3611 = vsub.s32 32, %v3610
    %v3612 = vshrl.u32 683565275, %v3611
    %v3613 = vshll.u32 683565275, %v3610
    %v3614 = vshrl.u32 2475754826, %v3611
    %v3615 = vor.u32 %v3613, %v3614
    %v3616 = vshll.u32 2475754826, %v3610
    %v3617 = vshrl.u32 2131351028, %v3611
    %v3618 = vor.u32 %v3616, %v3617
    %v3619 = vshll.u32 2131351028, %v3610
    %v3620 = vshrl.u32 2102212464, %v3611
    %v3621 = vor.u32 %v3619, %v3620
    %v3622 = vshll.u32 2102212464, %v3610
    %v3623 = vshrl.u32 920167782, %v3611
    %v3624 = vor.u32 %v3622, %v3623
    %v3625 = vshll.u32 920167782, %v3610
    %v3626 = vshrl.u32 1326507024, %v3611
    %v3627 = vor.u32 %v3625, %v3626
    %vm3628 = vcmp.lt.s32.totalorder %v3609, 1
    %vm3629 = vcmp.lt.s32.totalorder %v3609, 2
    %vm3630 = vcmp.lt.s32.totalorder %v3609, 3
    %vm3631 = vcmp.lt.s32.totalorder %v3609, 4
    %v3632 = vsel %vm3628, %v3612, %v3615
    %v3633 = vsel %vm3631, %v3621, 2102212464
    %v3634 = vsel %vm3630, %v3618, %v3633
    %v3635 = vsel %vm3629, %v3632, %v3634
    %v3636 = vsel %vm3628, %v3615, %v3618
    %v3637 = vsel %vm3631, %v3624, 920167782
    %v3638 = vsel %vm3630, %v3621, %v3637
    %v3639 = vsel %vm3629, %v3636, %v3638
    %v3640 = vsel %vm3628, %v3618, %v3621
    %v3641 = vsel %vm3631, %v3627, 1326507024
    %v3642 = vsel %vm3630, %v3624, %v3641
    %v3643 = vsel %vm3629, %v3640, %v3642
    %v3644 = vshll.u32 %v3604, 8
    %v3645 = vand.u32 %v3644, 65535
    %v3646 = vshrl.u32 %v3644, 16
    %v3647 = vand.u32 %v3643, 65535
    %v3648 = vshrl.u32 %v3643, 16
    %v3649 = vmul.u32 %v3645, %v3647
    %v3650 = vmul.u32 %v3645, %v3648
    %v3651 = vmul.u32 %v3646, %v3647
    %v3652 = vmul.u32 %v3646, %v3648
    %v3653 = vshll.u32 %v3650, 16
    %v3654 = vshrl.u32 %v3650, 16
    %v3655 = vshll.u32 %v3651, 16
    %v3656 = vshrl.u32 %v3651, 16
    %vm3657 = vc.u32 %v3649, %v3653
    %v3658 = vsel %vm3657, 1, 0
    %v3659 = vadd.s32 %v3649, %v3653
    %v3660 = vadd.s32 %v3652, %v3658
    %vm3661 = vc.u32 %v3659, %v3655
    %v3662 = vsel %vm3661, 1, 0
    %v3663 = vadd.s32 %v3659, %v3655
    %v3664 = vadd.s32 %v3660, %v3662
    %v3665 = vadd.s32 %v3664, %v3654
    %v3666 = vadd.s32 %v3665, %v3656
    %v3667 = vand.u32 %v3644, 65535
    %v3668 = vshrl.u32 %v3644, 16
    %v3669 = vand.u32 %v3639, 65535
    %v3670 = vshrl.u32 %v3639, 16
    %v3671 = vmul.u32 %v3667, %v3669
    %v3672 = vmul.u32 %v3667, %v3670
    %v3673 = vmul.u32 %v3668, %v3669
    %v3674 = vmul.u32 %v3668, %v3670
    %v3675 = vshll.u32 %v3672, 16
    %v3676 = vshrl.u32 %v3672, 16
    %v3677 = vshll.u32 %v3673, 16
    %v3678 = vshrl.u32 %v3673, 16
    %vm3679 = vc.u32 %v3671, %v3675
    %v3680 = vsel %vm3679, 1, 0
    %v3681 = vadd.s32 %v3671, %v3675
    %v3682 = vadd.s32 %v3674, %v3680
    %vm3683 = vc.u32 %v3681, %v3677
    %v3684 = vsel %vm3683, 1, 0
    %v3685 = vadd.s32 %v3681, %v3677
    %v3686 = vadd.s32 %v3682, %v3684
    %v3687 = vadd.s32 %v3686, %v3676
    %v3688 = vadd.s32 %v3687, %v3678
    %v3689 = vmul.u32 %v3644, %v3635
    %v3690 = vadd.s32 %v3666, %v3685
    %vm3691 = vc.u32 %v3666, %v3685
    %v3692 = vadd.s32 %v3688, 1
    %v3693 = vsel %vm3691, %v3692, %v3688
    %v3694 = vadd.s32 %v3689, %v3693
    %v3695 = vadd.s32 %v3694, 536870912
    %v3696 = vshrl.u32 %v3695, 30
    %v3697 = vshll.u32 %v3696, 30
    %v3698 = vsub.s32 %v3694, %v3697
    %vm3699 = vcmp.lt.s32.totalorder %v3698, 0
    %v3700 = vsub.s32 0, %v3698
    %v3701 = vsel %vm3699, %v3700, %v3698
    %v3702 = vclz %v3701
    %v3703 = vsub.s32 %v3702, 2
    %vm3704 = vcmp.gt.s32.totalorder 0, %v3703
    %v3705 = vsel %vm3704, 0, %v3703
    %v3706 = vsub.s32 32, %v3705
    %v3707 = vshll.u32 %v3698, %v3705
    %v3708 = vshrl.u32 %v3690, %v3706
    %v3709 = vor.u32 %v3707, %v3708
    %v3710 = vsub.s32 4294967266, %v3705
    %v3711 = vadd.s32 %v3710, 127
    %v3712 = vshll.u32 %v3711, 23
    %v3713 = vor.u32 4788187, %v3712
    %v3714 = vand.u32 2147483647, %v3713
    %v3716 = vcvt.s32.f32 %v3709
    %v3717 = vmul.f32 %v3716, %v3714
    %v3718 = vxor.u32 %v3717, 2147483648
    %v3719 = vsel %vm3598, %v3718, %v3717
    %v3720 = vsub.s32 4, %v3696
    %v3721 = vsel %vm3598, %v3720, %v3696
    %v3722 = vsel %vm3597, %v191, %v3719
    %v3723 = vsel %vm3597, 0, %v3721
    %v3724 = vmul.f32 %v3722, %v3722
    %v3725 = vmul.f32 %v3724, -0.001358992
    %v3726 = vadd.f32 %v3725, 0.041655596
    %v3727 = vmul.f32 %v3724, %v3726
    %v3728 = vadd.f32 %v3727, -0.4999988
    %v3729 = vmul.f32 %v3724, %v3728
    %v3730 = vadd.f32 1.0, %v3729
    %v3731 = vmul.f32 %v3722, %v3722
    %v3732 = vmul.f32 %v3731, -0.00019511016
    %v3733 = vadd.f32 %v3732, 0.008332121
    %v3734 = vmul.f32 %v3731, %v3733
    %v3735 = vadd.f32 %v3734, -0.16666654
    %v3736 = vmul.f32 %v3731, %v3735
    %v3737 = vadd.f32 %v3736, 1.0
    %v3738 = vmul.f32 %v3737, %v3722
    %vm3739 = vweird.f32 %v191
    %v3740 = vadd.s32 %v3723, 3
    %v3741 = vand.u32 %v3740, 3
    %vm3742 = vcmp.lt.s32.totalorder %v3741, 2
    %vm3743 = vcmp.eq.s32.totalorder %v3741, 0
    %v3744 = vxor.u32 %v3738, 2147483648
    %v3745 = vsel %vm3743, %v3730, %v3744
    %vm3746 = vcmp.eq.s32.totalorder %v3741, 2
    %v3747 = vxor.u32 %v3730, 2147483648
    %v3748 = vsel %vm3746, %v3747, %v3738
    %v3749 = vsel %vm3742, %v3745, %v3748
    %v3750 = vsel %vm3739, nan, %v3749
    %v3751 = vand.u32 2147483647, %v192
    %vm3752 = vcmp.le.f32.partialorder %v3751, 0.7853982
    %vm3753 = vcmp.lt.s32.totalorder %v192, 0
    %v3754 = vand.u32 %v192, 2139095040
    %v3755 = vshrl.u32 %v3754, 23
    %v3756 = vsub.s32 %v3755, 127
    %v3757 = vand.u32 2147483647, %v192
    %v3758 = vand.u32 %v3757, 8388607
    %v3759 = vor.u32 %v3758, 8388608
    %v3760 = vsub.s32 0, %v3759
    %v3761 = vadd.s32 %v3756, 1
    %vm3762 = vcmp.gt.s32.totalorder %v3761, 0
    %v3763 = vsel %vm3762, %v3761, 0
    %v3764 = vshrl.u32 %v3763, 5
    %v3765 = vand.u32 %v3763, 31
    %v3766 = vsub.s32 32, %v3765
    %v3767 = vshrl.u32 683565275, %v3766
    %v3768 = vshll.u32 683565275, %v3765
    %v3769 = vshrl.u32 2475754826, %v3766
    %v3770 = vor.u32 %v3768, %v3769
    %v3771 = vshll.u32 2475754826, %v3765
    %v3772 = vshrl.u32 2131351028, %v3766
    %v3773 = vor.u32 %v3771, %v3772
    %v3774 = vshll.u32 2131351028, %v3765
    %v3775 = vshrl.u32 2102212464, %v3766
    %v3776 = vor.u32 %v3774, %v3775
    %v3777 = vshll.u32 2102212464, %v3765
    %v3778 = vshrl.u32 920167782, %v3766
    %v3779 = vor.u32 %v3777, %v3778
    %v3780 = vshll.u32 920167782, %v3765
    %v3781 = vshrl.u32 1326507024, %v3766
    %v3782 = vor.u32 %v3780, %v3781
    %vm3783 = vcmp.lt.s32.totalorder %v3764, 1
    %vm3784 = vcmp.lt.s32.totalorder %v3764, 2
    %vm3785 = vcmp.lt.s32.totalorder %v3764, 3
    %vm3786 = vcmp.lt.s32.totalorder %v3764, 4
    %v3787 = vsel %vm3783, %v3767, %v3770
    %v3788 = vsel %vm3786, %v3776, 2102212464
    %v3789 = vsel %vm3785, %v3773, %v3788
    %v3790 = vsel %vm3784, %v3787, %v3789
    %v3791 = vsel %vm3783, %v3770, %v3773
    %v3792 = vsel %vm3786, %v3779, 920167782
    %v3793 = vsel %vm3785, %v3776, %v3792
    %v3794 = vsel %vm3784, %v3791, %v3793
    %v3795 = vsel %vm3783, %v3773, %v3776
    %v3796 = vsel %vm3786, %v3782, 1326507024
    %v3797 = vsel %vm3785, %v3779, %v3796
    %v3798 = vsel %vm3784, %v3795, %v3797
    %v3799 = vshll.u32 %v3759, 8
    %v3800 = vand.u32 %v3799, 65535
    %v3801 = vshrl.u32 %v3799, 16
    %v3802 = vand.u32 %v3798, 65535
    %v3803 = vshrl.u32 %v3798, 16
    %v3804 = vmul.u32 %v3800, %v3802
    %v3805 = vmul.u32 %v3800, %v3803
    %v3806 = vmul.u32 %v3801, %v3802
    %v3807 = vmul.u32 %v3801, %v3803
    %v3808 = vshll.u32 %v3805, 16
    %v3809 = vshrl.u32 %v3805, 16
    %v3810 = vshll.u32 %v3806, 16
    %v3811 = vshrl.u32 %v3806, 16
    %vm3812 = vc.u32 %v3804, %v3808
    %v3813 = vsel %vm3812, 1, 0
    %v3814 = vadd.s32 %v3804, %v3808
    %v3815 = vadd.s32 %v3807, %v3813
    %vm3816 = vc.u32 %v3814, %v3810
    %v3817 = vsel %vm3816, 1, 0
    %v3818 = vadd.s32 %v3814, %v3810
    %v3819 = vadd.s32 %v3815, %v3817
    %v3820 = vadd.s32 %v3819, %v3809
    %v3821 = vadd.s32 %v3820, %v3811
    %v3822 = vand.u32 %v3799, 65535
    %v3823 = vshrl.u32 %v3799, 16
    %v3824 = vand.u32 %v3794, 65535
    %v3825 = vshrl.u32 %v3794, 16
    %v3826 = vmul.u32 %v3822, %v3824
    %v3827 = vmul.u32 %v3822, %v3825
    %v3828 = vmul.u32 %v3823, %v3824
    %v3829 = vmul.u32 %v3823, %v3825
    %v3830 = vshll.u32 %v3827, 16
    %v3831 = vshrl.u32 %v3827, 16
    %v3832 = vshll.u32 %v3828, 16
    %v3833 = vshrl.u32 %v3828, 16
    %vm3834 = vc.u32 %v3826, %v3830
    %v3835 = vsel %vm3834, 1, 0
    %v3836 = vadd.s32 %v3826, %v3830
    %v3837 = vadd.s32 %v3829, %v3835
    %vm3838 = vc.u32 %v3836, %v3832
    %v3839 = vsel %vm3838, 1, 0
    %v3840 = vadd.s32 %v3836, %v3832
    %v3841 = vadd.s32 %v3837, %v3839
    %v3842 = vadd.s32 %v3841, %v3831
    %v3843 = vadd.s32 %v3842, %v3833
    %v3844 = vmul.u32 %v3799, %v3790
    %v3845 = vadd.s32 %v3821, %v3840
    %vm3846 = vc.u32 %v3821, %v3840
    %v3847 = vadd.s32 %v3843, 1
    %v3848 = vsel %vm3846, %v3847, %v3843
    %v3849 = vadd.s32 %v3844, %v3848
    %v3850 = vadd.s32 %v3849, 536870912
    %v3851 = vshrl.u32 %v3850, 30
    %v3852 = vshll.u32 %v3851, 30
    %v3853 = vsub.s32 %v3849, %v3852
    %vm3854 = vcmp.lt.s32.totalorder %v3853, 0
    %v3855 = vsub.s32 0, %v3853
    %v3856 = vsel %vm3854, %v3855, %v3853
    %v3857 = vclz %v3856
    %v3858 = vsub.s32 %v3857, 2
    %vm3859 = vcmp.gt.s32.totalorder 0, %v3858
    %v3860 = vsel %vm3859, 0, %v3858
    %v3861 = vsub.s32 32, %v3860
    %v3862 = vshll.u32 %v3853, %v3860
    %v3863 = vshrl.u32 %v3845, %v3861
    %v3864 = vor.u32 %v3862, %v3863
    %v3865 = vsub.s32 4294967266, %v3860
    %v3866 = vadd.s32 %v3865, 127
    %v3867 = vshll.u32 %v3866, 23
    %v3868 = vor.u32 4788187, %v3867
    %v3869 = vand.u32 2147483647, %v3868
    %v3871 = vcvt.s32.f32 %v3864
    %v3872 = vmul.f32 %v3871, %v3869
    %v3873 = vxor.u32 %v3872, 2147483648
    %v3874 = vsel %vm3753, %v3873, %v3872
    %v3875 = vsub.s32 4, %v3851
    %v3876 = vsel %vm3753, %v3875, %v3851
    %v3877 = vsel %vm3752, %v192, %v3874
    %v3878 = vsel %vm3752, 0, %v3876
    %v3879 = vmul.f32 %v3877, %v3877
    %v3880 = vmul.f32 %v3879, -0.001358992
    %v3881 = vadd.f32 %v3880, 0.041655596
    %v3882 = vmul.f32 %v3879, %v3881
    %v3883 = vadd.f32 %v3882, -0.4999988
    %v3884 = vmul.f32 %v3879, %v3883
    %v3885 = vadd.f32 1.0, %v3884
    %v3886 = vmul.f32 %v3877, %v3877
    %v3887 = vmul.f32 %v3886, -0.00019511016
    %v3888 = vadd.f32 %v3887, 0.008332121
    %v3889 = vmul.f32 %v3886, %v3888
    %v3890 = vadd.f32 %v3889, -0.16666654
    %v3891 = vmul.f32 %v3886, %v3890
    %v3892 = vadd.f32 %v3891, 1.0
    %v3893 = vmul.f32 %v3892, %v3877
    %vm3894 = vweird.f32 %v192
    %v3895 = vadd.s32 %v3878, 3
    %v3896 = vand.u32 %v3895, 3
    %vm3897 = vcmp.lt.s32.totalorder %v3896, 2
    %vm3898 = vcmp.eq.s32.totalorder %v3896, 0
    %v3899 = vxor.u32 %v3893, 2147483648
    %v3900 = vsel %vm3898, %v3885, %v3899
    %vm3901 = vcmp.eq.s32.totalorder %v3896, 2
    %v3902 = vxor.u32 %v3885, 2147483648
    %v3903 = vsel %vm3901, %v3902, %v3893
    %v3904 = vsel %vm3897, %v3900, %v3903
    %v3905 = vsel %vm3894, nan, %v3904
    %v3906 = vand.u32 2147483647, %v193
    %vm3907 = vcmp.le.f32.partialorder %v3906, 0.7853982
    %vm3908 = vcmp.lt.s32.totalorder %v193, 0
    %v3909 = vand.u32 %v193, 2139095040
    %v3910 = vshrl.u32 %v3909, 23
    %v3911 = vsub.s32 %v3910, 127
    %v3912 = vand.u32 2147483647, %v193
    %v3913 = vand.u32 %v3912, 8388607
    %v3914 = vor.u32 %v3913, 8388608
    %v3915 = vsub.s32 0, %v3914
    %v3916 = vadd.s32 %v3911, 1
    %vm3917 = vcmp.gt.s32.totalorder %v3916, 0
    %v3918 = vsel %vm3917, %v3916, 0
    %v3919 = vshrl.u32 %v3918, 5
    %v3920 = vand.u32 %v3918, 31
    %v3921 = vsub.s32 32, %v3920
    %v3922 = vshrl.u32 683565275, %v3921
    %v3923 = vshll.u32 683565275, %v3920
    %v3924 = vshrl.u32 2475754826, %v3921
    %v3925 = vor.u32 %v3923, %v3924
    %v3926 = vshll.u32 2475754826, %v3920
    %v3927 = vshrl.u32 2131351028, %v3921
    %v3928 = vor.u32 %v3926, %v3927
    %v3929 = vshll.u32 2131351028, %v3920
    %v3930 = vshrl.u32 2102212464, %v3921
    %v3931 = vor.u32 %v3929, %v3930
    %v3932 = vshll.u32 2102212464, %v3920
    %v3933 = vshrl.u32 920167782, %v3921
    %v3934 = vor.u32 %v3932, %v3933
    %v3935 = vshll.u32 920167782, %v3920
    %v3936 = vshrl.u32 1326507024, %v3921
    %v3937 = vor.u32 %v3935, %v3936
    %vm3938 = vcmp.lt.s32.totalorder %v3919, 1
    %vm3939 = vcmp.lt.s32.totalorder %v3919, 2
    %vm3940 = vcmp.lt.s32.totalorder %v3919, 3
    %vm3941 = vcmp.lt.s32.totalorder %v3919, 4
    %v3942 = vsel %vm3938, %v3922, %v3925
    %v3943 = vsel %vm3941, %v3931, 2102212464
    %v3944 = vsel %vm3940, %v3928, %v3943
    %v3945 = vsel %vm3939, %v3942, %v3944
    %v3946 = vsel %vm3938, %v3925, %v3928
    %v3947 = vsel %vm3941, %v3934, 920167782
    %v3948 = vsel %vm3940, %v3931, %v3947
    %v3949 = vsel %vm3939, %v3946, %v3948
    %v3950 = vsel %vm3938, %v3928, %v3931
    %v3951 = vsel %vm3941, %v3937, 1326507024
    %v3952 = vsel %vm3940, %v3934, %v3951
    %v3953 = vsel %vm3939, %v3950, %v3952
    %v3954 = vshll.u32 %v3914, 8
    %v3955 = vand.u32 %v3954, 65535
    %v3956 = vshrl.u32 %v3954, 16
    %v3957 = vand.u32 %v3953, 65535
    %v3958 = vshrl.u32 %v3953, 16
    %v3959 = vmul.u32 %v3955, %v3957
    %v3960 = vmul.u32 %v3955, %v3958
    %v3961 = vmul.u32 %v3956, %v3957
    %v3962 = vmul.u32 %v3956, %v3958
    %v3963 = vshll.u32 %v3960, 16
    %v3964 = vshrl.u32 %v3960, 16
    %v3965 = vshll.u32 %v3961, 16
    %v3966 = vshrl.u32 %v3961, 16
    %vm3967 = vc.u32 %v3959, %v3963
    %v3968 = vsel %vm3967, 1, 0
    %v3969 = vadd.s32 %v3959, %v3963
    %v3970 = vadd.s32 %v3962, %v3968
    %vm3971 = vc.u32 %v3969, %v3965
    %v3972 = vsel %vm3971, 1, 0
    %v3973 = vadd.s32 %v3969, %v3965
    %v3974 = vadd.s32 %v3970, %v3972
    %v3975 = vadd.s32 %v3974, %v3964
    %v3976 = vadd.s32 %v3975, %v3966
    %v3977 = vand.u32 %v3954, 65535
    %v3978 = vshrl.u32 %v3954, 16
    %v3979 = vand.u32 %v3949, 65535
    %v3980 = vshrl.u32 %v3949, 16
    %v3981 = vmul.u32 %v3977, %v3979
    %v3982 = vmul.u32 %v3977, %v3980
    %v3983 = vmul.u32 %v3978, %v3979
    %v3984 = vmul.u32 %v3978, %v3980
    %v3985 = vshll.u32 %v3982, 16
    %v3986 = vshrl.u32 %v3982, 16
    %v3987 = vshll.u32 %v3983, 16
    %v3988 = vshrl.u32 %v3983, 16
    %vm3989 = vc.u32 %v3981, %v3985
    %v3990 = vsel %vm3989, 1, 0
    %v3991 = vadd.s32 %v3981, %v3985
    %v3992 = vadd.s32 %v3984, %v3990
    %vm3993 = vc.u32 %v3991, %v3987
    %v3994 = vsel %vm3993, 1, 0
    %v3995 = vadd.s32 %v3991, %v3987
    %v3996 = vadd.s32 %v3992, %v3994
    %v3997 = vadd.s32 %v3996, %v3986
    %v3998 = vadd.s32 %v3997, %v3988
    %v3999 = vmul.u32 %v3954, %v3945
    %v4000 = vadd.s32 %v3976, %v3995
    %vm4001 = vc.u32 %v3976, %v3995
    %v4002 = vadd.s32 %v3998, 1
    %v4003 = vsel %vm4001, %v4002, %v3998
    %v4004 = vadd.s32 %v3999, %v4003
    %v4005 = vadd.s32 %v4004, 536870912
    %v4006 = vshrl.u32 %v4005, 30
    %v4007 = vshll.u32 %v4006, 30
    %v4008 = vsub.s32 %v4004, %v4007
    %vm4009 = vcmp.lt.s32.totalorder %v4008, 0
    %v4010 = vsub.s32 0, %v4008
    %v4011 = vsel %vm4009, %v4010, %v4008
    %v4012 = vclz %v4011
    %v4013 = vsub.s32 %v4012, 2
    %vm4014 = vcmp.gt.s32.totalorder 0, %v4013
    %v4015 = vsel %vm4014, 0, %v4013
    %v4016 = vsub.s32 32, %v4015
    %v4017 = vshll.u32 %v4008, %v4015
    %v4018 = vshrl.u32 %v4000, %v4016
    %v4019 = vor.u32 %v4017, %v4018
    %v4020 = vsub.s32 4294967266, %v4015
    %v4021 = vadd.s32 %v4020, 127
    %v4022 = vshll.u32 %v4021, 23
    %v4023 = vor.u32 4788187, %v4022
    %v4024 = vand.u32 2147483647, %v4023
    %v4026 = vcvt.s32.f32 %v4019
    %v4027 = vmul.f32 %v4026, %v4024
    %v4028 = vxor.u32 %v4027, 2147483648
    %v4029 = vsel %vm3908, %v4028, %v4027
    %v4030 = vsub.s32 4, %v4006
    %v4031 = vsel %vm3908, %v4030, %v4006
    %v4032 = vsel %vm3907, %v193, %v4029
    %v4033 = vsel %vm3907, 0, %v4031
    %v4034 = vmul.f32 %v4032, %v4032
    %v4035 = vmul.f32 %v4034, -0.001358992
    %v4036 = vadd.f32 %v4035, 0.041655596
    %v4037 = vmul.f32 %v4034, %v4036
    %v4038 = vadd.f32 %v4037, -0.4999988
    %v4039 = vmul.f32 %v4034, %v4038
    %v4040 = vadd.f32 1.0, %v4039
    %v4041 = vmul.f32 %v4032, %v4032
    %v4042 = vmul.f32 %v4041, -0.00019511016
    %v4043 = vadd.f32 %v4042, 0.008332121
    %v4044 = vmul.f32 %v4041, %v4043
    %v4045 = vadd.f32 %v4044, -0.16666654
    %v4046 = vmul.f32 %v4041, %v4045
    %v4047 = vadd.f32 %v4046, 1.0
    %v4048 = vmul.f32 %v4047, %v4032
    %vm4049 = vweird.f32 %v193
    %v4050 = vadd.s32 %v4033, 3
    %v4051 = vand.u32 %v4050, 3
    %vm4052 = vcmp.lt.s32.totalorder %v4051, 2
    %vm4053 = vcmp.eq.s32.totalorder %v4051, 0
    %v4054 = vxor.u32 %v4048, 2147483648
    %v4055 = vsel %vm4053, %v4040, %v4054
    %vm4056 = vcmp.eq.s32.totalorder %v4051, 2
    %v4057 = vxor.u32 %v4040, 2147483648
    %v4058 = vsel %vm4056, %v4057, %v4048
    %v4059 = vsel %vm4052, %v4055, %v4058
    %v4060 = vsel %vm4049, nan, %v4059
    %v4061 = vand.u32 2147483647, %v194
    %vm4062 = vcmp.le.f32.partialorder %v4061, 0.7853982
    %vm4063 = vcmp.lt.s32.totalorder %v194, 0
    %v4064 = vand.u32 %v194, 2139095040
    %v4065 = vshrl.u32 %v4064, 23
    %v4066 = vsub.s32 %v4065, 127
    %v4067 = vand.u32 2147483647, %v194
    %v4068 = vand.u32 %v4067, 8388607
    %v4069 = vor.u32 %v4068, 8388608
    %v4070 = vsub.s32 0, %v4069
    %v4071 = vadd.s32 %v4066, 1
    %vm4072 = vcmp.gt.s32.totalorder %v4071, 0
    %v4073 = vsel %vm4072, %v4071, 0
    %v4074 = vshrl.u32 %v4073, 5
    %v4075 = vand.u32 %v4073, 31
    %v4076 = vsub.s32 32, %v4075
    %v4077 = vshrl.u32 683565275, %v4076
    %v4078 = vshll.u32 683565275, %v4075
    %v4079 = vshrl.u32 2475754826, %v4076
    %v4080 = vor.u32 %v4078, %v4079
    %v4081 = vshll.u32 2475754826, %v4075
    %v4082 = vshrl.u32 2131351028, %v4076
    %v4083 = vor.u32 %v4081, %v4082
    %v4084 = vshll.u32 2131351028, %v4075
    %v4085 = vshrl.u32 2102212464, %v4076
    %v4086 = vor.u32 %v4084, %v4085
    %v4087 = vshll.u32 2102212464, %v4075
    %v4088 = vshrl.u32 920167782, %v4076
    %v4089 = vor.u32 %v4087, %v4088
    %v4090 = vshll.u32 920167782, %v4075
    %v4091 = vshrl.u32 1326507024, %v4076
    %v4092 = vor.u32 %v4090, %v4091
    %vm4093 = vcmp.lt.s32.totalorder %v4074, 1
    %vm4094 = vcmp.lt.s32.totalorder %v4074, 2
    %vm4095 = vcmp.lt.s32.totalorder %v4074, 3
    %vm4096 = vcmp.lt.s32.totalorder %v4074, 4
    %v4097 = vsel %vm4093, %v4077, %v4080
    %v4098 = vsel %vm4096, %v4086, 2102212464
    %v4099 = vsel %vm4095, %v4083, %v4098
    %v4100 = vsel %vm4094, %v4097, %v4099
    %v4101 = vsel %vm4093, %v4080, %v4083
    %v4102 = vsel %vm4096, %v4089, 920167782
    %v4103 = vsel %vm4095, %v4086, %v4102
    %v4104 = vsel %vm4094, %v4101, %v4103
    %v4105 = vsel %vm4093, %v4083, %v4086
    %v4106 = vsel %vm4096, %v4092, 1326507024
    %v4107 = vsel %vm4095, %v4089, %v4106
    %v4108 = vsel %vm4094, %v4105, %v4107
    %v4109 = vshll.u32 %v4069, 8
    %v4110 = vand.u32 %v4109, 65535
    %v4111 = vshrl.u32 %v4109, 16
    %v4112 = vand.u32 %v4108, 65535
    %v4113 = vshrl.u32 %v4108, 16
    %v4114 = vmul.u32 %v4110, %v4112
    %v4115 = vmul.u32 %v4110, %v4113
    %v4116 = vmul.u32 %v4111, %v4112
    %v4117 = vmul.u32 %v4111, %v4113
    %v4118 = vshll.u32 %v4115, 16
    %v4119 = vshrl.u32 %v4115, 16
    %v4120 = vshll.u32 %v4116, 16
    %v4121 = vshrl.u32 %v4116, 16
    %vm4122 = vc.u32 %v4114, %v4118
    %v4123 = vsel %vm4122, 1, 0
    %v4124 = vadd.s32 %v4114, %v4118
    %v4125 = vadd.s32 %v4117, %v4123
    %vm4126 = vc.u32 %v4124, %v4120
    %v4127 = vsel %vm4126, 1, 0
    %v4128 = vadd.s32 %v4124, %v4120
    %v4129 = vadd.s32 %v4125, %v4127
    %v4130 = vadd.s32 %v4129, %v4119
    %v4131 = vadd.s32 %v4130, %v4121
    %v4132 = vand.u32 %v4109, 65535
    %v4133 = vshrl.u32 %v4109, 16
    %v4134 = vand.u32 %v4104, 65535
    %v4135 = vshrl.u32 %v4104, 16
    %v4136 = vmul.u32 %v4132, %v4134
    %v4137 = vmul.u32 %v4132, %v4135
    %v4138 = vmul.u32 %v4133, %v4134
    %v4139 = vmul.u32 %v4133, %v4135
    %v4140 = vshll.u32 %v4137, 16
    %v4141 = vshrl.u32 %v4137, 16
    %v4142 = vshll.u32 %v4138, 16
    %v4143 = vshrl.u32 %v4138, 16
    %vm4144 = vc.u32 %v4136, %v4140
    %v4145 = vsel %vm4144, 1, 0
    %v4146 = vadd.s32 %v4136, %v4140
    %v4147 = vadd.s32 %v4139, %v4145
    %vm4148 = vc.u32 %v4146, %v4142
    %v4149 = vsel %vm4148, 1, 0
    %v4150 = vadd.s32 %v4146, %v4142
    %v4151 = vadd.s32 %v4147, %v4149
    %v4152 = vadd.s32 %v4151, %v4141
    %v4153 = vadd.s32 %v4152, %v4143
    %v4154 = vmul.u32 %v4109, %v4100
    %v4155 = vadd.s32 %v4131, %v4150
    %vm4156 = vc.u32 %v4131, %v4150
    %v4157 = vadd.s32 %v4153, 1
    %v4158 = vsel %vm4156, %v4157, %v4153
    %v4159 = vadd.s32 %v4154, %v4158
    %v4160 = vadd.s32 %v4159, 536870912
    %v4161 = vshrl.u32 %v4160, 30
    %v4162 = vshll.u32 %v4161, 30
    %v4163 = vsub.s32 %v4159, %v4162
    %vm4164 = vcmp.lt.s32.totalorder %v4163, 0
    %v4165 = vsub.s32 0, %v4163
    %v4166 = vsel %vm4164, %v4165, %v4163
    %v4167 = vclz %v4166
    %v4168 = vsub.s32 %v4167, 2
    %vm4169 = vcmp.gt.s32.totalorder 0, %v4168
    %v4170 = vsel %vm4169, 0, %v4168
    %v4171 = vsub.s32 32, %v4170
    %v4172 = vshll.u32 %v4163, %v4170
    %v4173 = vshrl.u32 %v4155, %v4171
    %v4174 = vor.u32 %v4172, %v4173
    %v4175 = vsub.s32 4294967266, %v4170
    %v4176 = vadd.s32 %v4175, 127
    %v4177 = vshll.u32 %v4176, 23
    %v4178 = vor.u32 4788187, %v4177
    %v4179 = vand.u32 2147483647, %v4178
    %v4181 = vcvt.s32.f32 %v4174
    %v4182 = vmul.f32 %v4181, %v4179
    %v4183 = vxor.u32 %v4182, 2147483648
    %v4184 = vsel %vm4063, %v4183, %v4182
    %v4185 = vsub.s32 4, %v4161
    %v4186 = vsel %vm4063, %v4185, %v4161
    %v4187 = vsel %vm4062, %v194, %v4184
    %v4188 = vsel %vm4062, 0, %v4186
    %v4189 = vmul.f32 %v4187, %v4187
    %v4190 = vmul.f32 %v4189, -0.001358992
    %v4191 = vadd.f32 %v4190, 0.041655596
    %v4192 = vmul.f32 %v4189, %v4191
    %v4193 = vadd.f32 %v4192, -0.4999988
    %v4194 = vmul.f32 %v4189, %v4193
    %v4195 = vadd.f32 1.0, %v4194
    %v4196 = vmul.f32 %v4187, %v4187
    %v4197 = vmul.f32 %v4196, -0.00019511016
    %v4198 = vadd.f32 %v4197, 0.008332121
    %v4199 = vmul.f32 %v4196, %v4198
    %v4200 = vadd.f32 %v4199, -0.16666654
    %v4201 = vmul.f32 %v4196, %v4200
    %v4202 = vadd.f32 %v4201, 1.0
    %v4203 = vmul.f32 %v4202, %v4187
    %vm4204 = vweird.f32 %v194
    %v4205 = vadd.s32 %v4188, 3
    %v4206 = vand.u32 %v4205, 3
    %vm4207 = vcmp.lt.s32.totalorder %v4206, 2
    %vm4208 = vcmp.eq.s32.totalorder %v4206, 0
    %v4209 = vxor.u32 %v4203, 2147483648
    %v4210 = vsel %vm4208, %v4195, %v4209
    %vm4211 = vcmp.eq.s32.totalorder %v4206, 2
    %v4212 = vxor.u32 %v4195, 2147483648
    %v4213 = vsel %vm4211, %v4212, %v4203
    %v4214 = vsel %vm4207, %v4210, %v4213
    %v4215 = vsel %vm4204, nan, %v4214
    %v4216 = vand.u32 2147483647, %v195
    %vm4217 = vcmp.le.f32.partialorder %v4216, 0.7853982
    %vm4218 = vcmp.lt.s32.totalorder %v195, 0
    %v4219 = vand.u32 %v195, 2139095040
    %v4220 = vshrl.u32 %v4219, 23
    %v4221 = vsub.s32 %v4220, 127
    %v4222 = vand.u32 2147483647, %v195
    %v4223 = vand.u32 %v4222, 8388607
    %v4224 = vor.u32 %v4223, 8388608
    %v4225 = vsub.s32 0, %v4224
    %v4226 = vadd.s32 %v4221, 1
    %vm4227 = vcmp.gt.s32.totalorder %v4226, 0
    %v4228 = vsel %vm4227, %v4226, 0
    %v4229 = vshrl.u32 %v4228, 5
    %v4230 = vand.u32 %v4228, 31
    %v4231 = vsub.s32 32, %v4230
    %v4232 = vshrl.u32 683565275, %v4231
    %v4233 = vshll.u32 683565275, %v4230
    %v4234 = vshrl.u32 2475754826, %v4231
    %v4235 = vor.u32 %v4233, %v4234
    %v4236 = vshll.u32 2475754826, %v4230
    %v4237 = vshrl.u32 2131351028, %v4231
    %v4238 = vor.u32 %v4236, %v4237
    %v4239 = vshll.u32 2131351028, %v4230
    %v4240 = vshrl.u32 2102212464, %v4231
    %v4241 = vor.u32 %v4239, %v4240
    %v4242 = vshll.u32 2102212464, %v4230
    %v4243 = vshrl.u32 920167782, %v4231
    %v4244 = vor.u32 %v4242, %v4243
    %v4245 = vshll.u32 920167782, %v4230
    %v4246 = vshrl.u32 1326507024, %v4231
    %v4247 = vor.u32 %v4245, %v4246
    %vm4248 = vcmp.lt.s32.totalorder %v4229, 1
    %vm4249 = vcmp.lt.s32.totalorder %v4229, 2
    %vm4250 = vcmp.lt.s32.totalorder %v4229, 3
    %vm4251 = vcmp.lt.s32.totalorder %v4229, 4
    %v4252 = vsel %vm4248, %v4232, %v4235
    %v4253 = vsel %vm4251, %v4241, 2102212464
    %v4254 = vsel %vm4250, %v4238, %v4253
    %v4255 = vsel %vm4249, %v4252, %v4254
    %v4256 = vsel %vm4248, %v4235, %v4238
    %v4257 = vsel %vm4251, %v4244, 920167782
    %v4258 = vsel %vm4250, %v4241, %v4257
    %v4259 = vsel %vm4249, %v4256, %v4258
    %v4260 = vsel %vm4248, %v4238, %v4241
    %v4261 = vsel %vm4251, %v4247, 1326507024
    %v4262 = vsel %vm4250, %v4244, %v4261
    %v4263 = vsel %vm4249, %v4260, %v4262
    %v4264 = vshll.u32 %v4224, 8
    %v4265 = vand.u32 %v4264, 65535
    %v4266 = vshrl.u32 %v4264, 16
    %v4267 = vand.u32 %v4263, 65535
    %v4268 = vshrl.u32 %v4263, 16
    %v4269 = vmul.u32 %v4265, %v4267
    %v4270 = vmul.u32 %v4265, %v4268
    %v4271 = vmul.u32 %v4266, %v4267
    %v4272 = vmul.u32 %v4266, %v4268
    %v4273 = vshll.u32 %v4270, 16
    %v4274 = vshrl.u32 %v4270, 16
    %v4275 = vshll.u32 %v4271, 16
    %v4276 = vshrl.u32 %v4271, 16
    %vm4277 = vc.u32 %v4269, %v4273
    %v4278 = vsel %vm4277, 1, 0
    %v4279 = vadd.s32 %v4269, %v4273
    %v4280 = vadd.s32 %v4272, %v4278
    %vm4281 = vc.u32 %v4279, %v4275
    %v4282 = vsel %vm4281, 1, 0
    %v4283 = vadd.s32 %v4279, %v4275
    %v4284 = vadd.s32 %v4280, %v4282
    %v4285 = vadd.s32 %v4284, %v4274
    %v4286 = vadd.s32 %v4285, %v4276
    %v4287 = vand.u32 %v4264, 65535
    %v4288 = vshrl.u32 %v4264, 16
    %v4289 = vand.u32 %v4259, 65535
    %v4290 = vshrl.u32 %v4259, 16
    %v4291 = vmul.u32 %v4287, %v4289
    %v4292 = vmul.u32 %v4287, %v4290
    %v4293 = vmul.u32 %v4288, %v4289
    %v4294 = vmul.u32 %v4288, %v4290
    %v4295 = vshll.u32 %v4292, 16
    %v4296 = vshrl.u32 %v4292, 16
    %v4297 = vshll.u32 %v4293, 16
    %v4298 = vshrl.u32 %v4293, 16
    %vm4299 = vc.u32 %v4291, %v4295
    %v4300 = vsel %vm4299, 1, 0
    %v4301 = vadd.s32 %v4291, %v4295
    %v4302 = vadd.s32 %v4294, %v4300
    %vm4303 = vc.u32 %v4301, %v4297
    %v4304 = vsel %vm4303, 1, 0
    %v4305 = vadd.s32 %v4301, %v4297
    %v4306 = vadd.s32 %v4302, %v4304
    %v4307 = vadd.s32 %v4306, %v4296
    %v4308 = vadd.s32 %v4307, %v4298
    %v4309 = vmul.u32 %v4264, %v4255
    %v4310 = vadd.s32 %v4286, %v4305
    %vm4311 = vc.u32 %v4286, %v4305
    %v4312 = vadd.s32 %v4308, 1
    %v4313 = vsel %vm4311, %v4312, %v4308
    %v4314 = vadd.s32 %v4309, %v4313
    %v4315 = vadd.s32 %v4314, 536870912
    %v4316 = vshrl.u32 %v4315, 30
    %v4317 = vshll.u32 %v4316, 30
    %v4318 = vsub.s32 %v4314, %v4317
    %vm4319 = vcmp.lt.s32.totalorder %v4318, 0
    %v4320 = vsub.s32 0, %v4318
    %v4321 = vsel %vm4319, %v4320, %v4318
    %v4322 = vclz %v4321
    %v4323 = vsub.s32 %v4322, 2
    %vm4324 = vcmp.gt.s32.totalorder 0, %v4323
    %v4325 = vsel %vm4324, 0, %v4323
    %v4326 = vsub.s32 32, %v4325
    %v4327 = vshll.u32 %v4318, %v4325
    %v4328 = vshrl.u32 %v4310, %v4326
    %v4329 = vor.u32 %v4327, %v4328
    %v4330 = vsub.s32 4294967266, %v4325
    %v4331 = vadd.s32 %v4330, 127
    %v4332 = vshll.u32 %v4331, 23
    %v4333 = vor.u32 4788187, %v4332
    %v4334 = vand.u32 2147483647, %v4333
    %v4336 = vcvt.s32.f32 %v4329
    %v4337 = vmul.f32 %v4336, %v4334
    %v4338 = vxor.u32 %v4337, 2147483648
    %v4339 = vsel %vm4218, %v4338, %v4337
    %v4340 = vsub.s32 4, %v4316
    %v4341 = vsel %vm4218, %v4340, %v4316
    %v4342 = vsel %vm4217, %v195, %v4339
    %v4343 = vsel %vm4217, 0, %v4341
    %v4344 = vmul.f32 %v4342, %v4342
    %v4345 = vmul.f32 %v4344, -0.001358992
    %v4346 = vadd.f32 %v4345, 0.041655596
    %v4347 = vmul.f32 %v4344, %v4346
    %v4348 = vadd.f32 %v4347, -0.4999988
    %v4349 = vmul.f32 %v4344, %v4348
    %v4350 = vadd.f32 1.0, %v4349
    %v4351 = vmul.f32 %v4342, %v4342
    %v4352 = vmul.f32 %v4351, -0.00019511016
    %v4353 = vadd.f32 %v4352, 0.008332121
    %v4354 = vmul.f32 %v4351, %v4353
    %v4355 = vadd.f32 %v4354, -0.16666654
    %v4356 = vmul.f32 %v4351, %v4355
    %v4357 = vadd.f32 %v4356, 1.0
    %v4358 = vmul.f32 %v4357, %v4342
    %vm4359 = vweird.f32 %v195
    %v4360 = vadd.s32 %v4343, 3
    %v4361 = vand.u32 %v4360, 3
    %vm4362 = vcmp.lt.s32.totalorder %v4361, 2
    %vm4363 = vcmp.eq.s32.totalorder %v4361, 0
    %v4364 = vxor.u32 %v4358, 2147483648
    %v4365 = vsel %vm4363, %v4350, %v4364
    %vm4366 = vcmp.eq.s32.totalorder %v4361, 2
    %v4367 = vxor.u32 %v4350, 2147483648
    %v4368 = vsel %vm4366, %v4367, %v4358
    %v4369 = vsel %vm4362, %v4365, %v4368
    %v4370 = vsel %vm4359, nan, %v4369
    %v4371 = vand.u32 2147483647, %v196
    %vm4372 = vcmp.le.f32.partialorder %v4371, 0.7853982
    %vm4373 = vcmp.lt.s32.totalorder %v196, 0
    %v4374 = vand.u32 %v196, 2139095040
    %v4375 = vshrl.u32 %v4374, 23
    %v4376 = vsub.s32 %v4375, 127
    %v4377 = vand.u32 2147483647, %v196
    %v4378 = vand.u32 %v4377, 8388607
    %v4379 = vor.u32 %v4378, 8388608
    %v4380 = vsub.s32 0, %v4379
    %v4381 = vadd.s32 %v4376, 1
    %vm4382 = vcmp.gt.s32.totalorder %v4381, 0
    %v4383 = vsel %vm4382, %v4381, 0
    %v4384 = vshrl.u32 %v4383, 5
    %v4385 = vand.u32 %v4383, 31
    %v4386 = vsub.s32 32, %v4385
    %v4387 = vshrl.u32 683565275, %v4386
    %v4388 = vshll.u32 683565275, %v4385
    %v4389 = vshrl.u32 2475754826, %v4386
    %v4390 = vor.u32 %v4388, %v4389
    %v4391 = vshll.u32 2475754826, %v4385
    %v4392 = vshrl.u32 2131351028, %v4386
    %v4393 = vor.u32 %v4391, %v4392
    %v4394 = vshll.u32 2131351028, %v4385
    %v4395 = vshrl.u32 2102212464, %v4386
    %v4396 = vor.u32 %v4394, %v4395
    %v4397 = vshll.u32 2102212464, %v4385
    %v4398 = vshrl.u32 920167782, %v4386
    %v4399 = vor.u32 %v4397, %v4398
    %v4400 = vshll.u32 920167782, %v4385
    %v4401 = vshrl.u32 1326507024, %v4386
    %v4402 = vor.u32 %v4400, %v4401
    %vm4403 = vcmp.lt.s32.totalorder %v4384, 1
    %vm4404 = vcmp.lt.s32.totalorder %v4384, 2
    %vm4405 = vcmp.lt.s32.totalorder %v4384, 3
    %vm4406 = vcmp.lt.s32.totalorder %v4384, 4
    %v4407 = vsel %vm4403, %v4387, %v4390
    %v4408 = vsel %vm4406, %v4396, 2102212464
    %v4409 = vsel %vm4405, %v4393, %v4408
    %v4410 = vsel %vm4404, %v4407, %v4409
    %v4411 = vsel %vm4403, %v4390, %v4393
    %v4412 = vsel %vm4406, %v4399, 920167782
    %v4413 = vsel %vm4405, %v4396, %v4412
    %v4414 = vsel %vm4404, %v4411, %v4413
    %v4415 = vsel %vm4403, %v4393, %v4396
    %v4416 = vsel %vm4406, %v4402, 1326507024
    %v4417 = vsel %vm4405, %v4399, %v4416
    %v4418 = vsel %vm4404, %v4415, %v4417
    %v4419 = vshll.u32 %v4379, 8
    %v4420 = vand.u32 %v4419, 65535
    %v4421 = vshrl.u32 %v4419, 16
    %v4422 = vand.u32 %v4418, 65535
    %v4423 = vshrl.u32 %v4418, 16
    %v4424 = vmul.u32 %v4420, %v4422
    %v4425 = vmul.u32 %v4420, %v4423
    %v4426 = vmul.u32 %v4421, %v4422
    %v4427 = vmul.u32 %v4421, %v4423
    %v4428 = vshll.u32 %v4425, 16
    %v4429 = vshrl.u32 %v4425, 16
    %v4430 = vshll.u32 %v4426, 16
    %v4431 = vshrl.u32 %v4426, 16
    %vm4432 = vc.u32 %v4424, %v4428
    %v4433 = vsel %vm4432, 1, 0
    %v4434 = vadd.s32 %v4424, %v4428
    %v4435 = vadd.s32 %v4427, %v4433
    %vm4436 = vc.u32 %v4434, %v4430
    %v4437 = vsel %vm4436, 1, 0
    %v4438 = vadd.s32 %v4434, %v4430
    %v4439 = vadd.s32 %v4435, %v4437
    %v4440 = vadd.s32 %v4439, %v4429
    %v4441 = vadd.s32 %v4440, %v4431
    %v4442 = vand.u32 %v4419, 65535
    %v4443 = vshrl.u32 %v4419, 16
    %v4444 = vand.u32 %v4414, 65535
    %v4445 = vshrl.u32 %v4414, 16
    %v4446 = vmul.u32 %v4442, %v4444
    %v4447 = vmul.u32 %v4442, %v4445
    %v4448 = vmul.u32 %v4443, %v4444
    %v4449 = vmul.u32 %v4443, %v4445
    %v4450 = vshll.u32 %v4447, 16
    %v4451 = vshrl.u32 %v4447, 16
    %v4452 = vshll.u32 %v4448, 16
    %v4453 = vshrl.u32 %v4448, 16
    %vm4454 = vc.u32 %v4446, %v4450
    %v4455 = vsel %vm4454, 1, 0
    %v4456 = vadd.s32 %v4446, %v4450
    %v4457 = vadd.s32 %v4449, %v4455
    %vm4458 = vc.u32 %v4456, %v4452
    %v4459 = vsel %vm4458, 1, 0
    %v4460 = vadd.s32 %v4456, %v4452
    %v4461 = vadd.s32 %v4457, %v4459
    %v4462 = vadd.s32 %v4461, %v4451
    %v4463 = vadd.s32 %v4462, %v4453
    %v4464 = vmul.u32 %v4419, %v4410
    %v4465 = vadd.s32 %v4441, %v4460
    %vm4466 = vc.u32 %v4441, %v4460
    %v4467 = vadd.s32 %v4463, 1
    %v4468 = vsel %vm4466, %v4467, %v4463
    %v4469 = vadd.s32 %v4464, %v4468
    %v4470 = vadd.s32 %v4469, 536870912
    %v4471 = vshrl.u32 %v4470, 30
    %v4472 = vshll.u32 %v4471, 30
    %v4473 = vsub.s32 %v4469, %v4472
    %vm4474 = vcmp.lt.s32.totalorder %v4473, 0
    %v4475 = vsub.s32 0, %v4473
    %v4476 = vsel %vm4474, %v4475, %v4473
    %v4477 = vclz %v4476
    %v4478 = vsub.s32 %v4477, 2
    %vm4479 = vcmp.gt.s32.totalorder 0, %v4478
    %v4480 = vsel %vm4479, 0, %v4478
    %v4481 = vsub.s32 32, %v4480
    %v4482 = vshll.u32 %v4473, %v4480
    %v4483 = vshrl.u32 %v4465, %v4481
    %v4484 = vor.u32 %v4482, %v4483
    %v4485 = vsub.s32 4294967266, %v4480
    %v4486 = vadd.s32 %v4485, 127
    %v4487 = vshll.u32 %v4486, 23
    %v4488 = vor.u32 4788187, %v4487
    %v4489 = vand.u32 2147483647, %v4488
    %v4491 = vcvt.s32.f32 %v4484
    %v4492 = vmul.f32 %v4491, %v4489
    %v4493 = vxor.u32 %v4492, 2147483648
    %v4494 = vsel %vm4373, %v4493, %v4492
    %v4495 = vsub.s32 4, %v4471
    %v4496 = vsel %vm4373, %v4495, %v4471
    %v4497 = vsel %vm4372, %v196, %v4494
    %v4498 = vsel %vm4372, 0, %v4496
    %v4499 = vmul.f32 %v4497, %v4497
    %v4500 = vmul.f32 %v4499, -0.001358992
    %v4501 = vadd.f32 %v4500, 0.041655596
    %v4502 = vmul.f32 %v4499, %v4501
    %v4503 = vadd.f32 %v4502, -0.4999988
    %v4504 = vmul.f32 %v4499, %v4503
    %v4505 = vadd.f32 1.0, %v4504
    %v4506 = vmul.f32 %v4497, %v4497
    %v4507 = vmul.f32 %v4506, -0.00019511016
    %v4508 = vadd.f32 %v4507, 0.008332121
    %v4509 = vmul.f32 %v4506, %v4508
    %v4510 = vadd.f32 %v4509, -0.16666654
    %v4511 = vmul.f32 %v4506, %v4510
    %v4512 = vadd.f32 %v4511, 1.0
    %v4513 = vmul.f32 %v4512, %v4497
    %vm4514 = vweird.f32 %v196
    %v4515 = vadd.s32 %v4498, 3
    %v4516 = vand.u32 %v4515, 3
    %vm4517 = vcmp.lt.s32.totalorder %v4516, 2
    %vm4518 = vcmp.eq.s32.totalorder %v4516, 0
    %v4519 = vxor.u32 %v4513, 2147483648
    %v4520 = vsel %vm4518, %v4505, %v4519
    %vm4521 = vcmp.eq.s32.totalorder %v4516, 2
    %v4522 = vxor.u32 %v4505, 2147483648
    %v4523 = vsel %vm4521, %v4522, %v4513
    %v4524 = vsel %vm4517, %v4520, %v4523
    %v4525 = vsel %vm4514, nan, %v4524
    %v4526 = vand.u32 2147483647, %v197
    %vm4527 = vcmp.le.f32.partialorder %v4526, 0.7853982
    %vm4528 = vcmp.lt.s32.totalorder %v197, 0
    %v4529 = vand.u32 %v197, 2139095040
    %v4530 = vshrl.u32 %v4529, 23
    %v4531 = vsub.s32 %v4530, 127
    %v4532 = vand.u32 2147483647, %v197
    %v4533 = vand.u32 %v4532, 8388607
    %v4534 = vor.u32 %v4533, 8388608
    %v4535 = vsub.s32 0, %v4534
    %v4536 = vadd.s32 %v4531, 1
    %vm4537 = vcmp.gt.s32.totalorder %v4536, 0
    %v4538 = vsel %vm4537, %v4536, 0
    %v4539 = vshrl.u32 %v4538, 5
    %v4540 = vand.u32 %v4538, 31
    %v4541 = vsub.s32 32, %v4540
    %v4542 = vshrl.u32 683565275, %v4541
    %v4543 = vshll.u32 683565275, %v4540
    %v4544 = vshrl.u32 2475754826, %v4541
    %v4545 = vor.u32 %v4543, %v4544
    %v4546 = vshll.u32 2475754826, %v4540
    %v4547 = vshrl.u32 2131351028, %v4541
    %v4548 = vor.u32 %v4546, %v4547
    %v4549 = vshll.u32 2131351028, %v4540
    %v4550 = vshrl.u32 2102212464, %v4541
    %v4551 = vor.u32 %v4549, %v4550
    %v4552 = vshll.u32 2102212464, %v4540
    %v4553 = vshrl.u32 920167782, %v4541
    %v4554 = vor.u32 %v4552, %v4553
    %v4555 = vshll.u32 920167782, %v4540
    %v4556 = vshrl.u32 1326507024, %v4541
    %v4557 = vor.u32 %v4555, %v4556
    %vm4558 = vcmp.lt.s32.totalorder %v4539, 1
    %vm4559 = vcmp.lt.s32.totalorder %v4539, 2
    %vm4560 = vcmp.lt.s32.totalorder %v4539, 3
    %vm4561 = vcmp.lt.s32.totalorder %v4539, 4
    %v4562 = vsel %vm4558, %v4542, %v4545
    %v4563 = vsel %vm4561, %v4551, 2102212464
    %v4564 = vsel %vm4560, %v4548, %v4563
    %v4565 = vsel %vm4559, %v4562, %v4564
    %v4566 = vsel %vm4558, %v4545, %v4548
    %v4567 = vsel %vm4561, %v4554, 920167782
    %v4568 = vsel %vm4560, %v4551, %v4567
    %v4569 = vsel %vm4559, %v4566, %v4568
    %v4570 = vsel %vm4558, %v4548, %v4551
    %v4571 = vsel %vm4561, %v4557, 1326507024
    %v4572 = vsel %vm4560, %v4554, %v4571
    %v4573 = vsel %vm4559, %v4570, %v4572
    %v4574 = vshll.u32 %v4534, 8
    %v4575 = vand.u32 %v4574, 65535
    %v4576 = vshrl.u32 %v4574, 16
    %v4577 = vand.u32 %v4573, 65535
    %v4578 = vshrl.u32 %v4573, 16
    %v4579 = vmul.u32 %v4575, %v4577
    %v4580 = vmul.u32 %v4575, %v4578
    %v4581 = vmul.u32 %v4576, %v4577
    %v4582 = vmul.u32 %v4576, %v4578
    %v4583 = vshll.u32 %v4580, 16
    %v4584 = vshrl.u32 %v4580, 16
    %v4585 = vshll.u32 %v4581, 16
    %v4586 = vshrl.u32 %v4581, 16
    %vm4587 = vc.u32 %v4579, %v4583
    %v4588 = vsel %vm4587, 1, 0
    %v4589 = vadd.s32 %v4579, %v4583
    %v4590 = vadd.s32 %v4582, %v4588
    %vm4591 = vc.u32 %v4589, %v4585
    %v4592 = vsel %vm4591, 1, 0
    %v4593 = vadd.s32 %v4589, %v4585
    %v4594 = vadd.s32 %v4590, %v4592
    %v4595 = vadd.s32 %v4594, %v4584
    %v4596 = vadd.s32 %v4595, %v4586
    %v4597 = vand.u32 %v4574, 65535
    %v4598 = vshrl.u32 %v4574, 16
    %v4599 = vand.u32 %v4569, 65535
    %v4600 = vshrl.u32 %v4569, 16
    %v4601 = vmul.u32 %v4597, %v4599
    %v4602 = vmul.u32 %v4597, %v4600
    %v4603 = vmul.u32 %v4598, %v4599
    %v4604 = vmul.u32 %v4598, %v4600
    %v4605 = vshll.u32 %v4602, 16
    %v4606 = vshrl.u32 %v4602, 16
    %v4607 = vshll.u32 %v4603, 16
    %v4608 = vshrl.u32 %v4603, 16
    %vm4609 = vc.u32 %v4601, %v4605
    %v4610 = vsel %vm4609, 1, 0
    %v4611 = vadd.s32 %v4601, %v4605
    %v4612 = vadd.s32 %v4604, %v4610
    %vm4613 = vc.u32 %v4611, %v4607
    %v4614 = vsel %vm4613, 1, 0
    %v4615 = vadd.s32 %v4611, %v4607
    %v4616 = vadd.s32 %v4612, %v4614
    %v4617 = vadd.s32 %v4616, %v4606
    %v4618 = vadd.s32 %v4617, %v4608
    %v4619 = vmul.u32 %v4574, %v4565
    %v4620 = vadd.s32 %v4596, %v4615
    %vm4621 = vc.u32 %v4596, %v4615
    %v4622 = vadd.s32 %v4618, 1
    %v4623 = vsel %vm4621, %v4622, %v4618
    %v4624 = vadd.s32 %v4619, %v4623
    %v4625 = vadd.s32 %v4624, 536870912
    %v4626 = vshrl.u32 %v4625, 30
    %v4627 = vshll.u32 %v4626, 30
    %v4628 = vsub.s32 %v4624, %v4627
    %vm4629 = vcmp.lt.s32.totalorder %v4628, 0
    %v4630 = vsub.s32 0, %v4628
    %v4631 = vsel %vm4629, %v4630, %v4628
    %v4632 = vclz %v4631
    %v4633 = vsub.s32 %v4632, 2
    %vm4634 = vcmp.gt.s32.totalorder 0, %v4633
    %v4635 = vsel %vm4634, 0, %v4633
    %v4636 = vsub.s32 32, %v4635
    %v4637 = vshll.u32 %v4628, %v4635
    %v4638 = vshrl.u32 %v4620, %v4636
    %v4639 = vor.u32 %v4637, %v4638
    %v4640 = vsub.s32 4294967266, %v4635
    %v4641 = vadd.s32 %v4640, 127
    %v4642 = vshll.u32 %v4641, 23
    %v4643 = vor.u32 4788187, %v4642
    %v4644 = vand.u32 2147483647, %v4643
    %v4646 = vcvt.s32.f32 %v4639
    %v4647 = vmul.f32 %v4646, %v4644
    %v4648 = vxor.u32 %v4647, 2147483648
    %v4649 = vsel %vm4528, %v4648, %v4647
    %v4650 = vsub.s32 4, %v4626
    %v4651 = vsel %vm4528, %v4650, %v4626
    %v4652 = vsel %vm4527, %v197, %v4649
    %v4653 = vsel %vm4527, 0, %v4651
    %v4654 = vmul.f32 %v4652, %v4652
    %v4655 = vmul.f32 %v4654, -0.001358992
    %v4656 = vadd.f32 %v4655, 0.041655596
    %v4657 = vmul.f32 %v4654, %v4656
    %v4658 = vadd.f32 %v4657, -0.4999988
    %v4659 = vmul.f32 %v4654, %v4658
    %v4660 = vadd.f32 1.0, %v4659
    %v4661 = vmul.f32 %v4652, %v4652
    %v4662 = vmul.f32 %v4661, -0.00019511016
    %v4663 = vadd.f32 %v4662, 0.008332121
    %v4664 = vmul.f32 %v4661, %v4663
    %v4665 = vadd.f32 %v4664, -0.16666654
    %v4666 = vmul.f32 %v4661, %v4665
    %v4667 = vadd.f32 %v4666, 1.0
    %v4668 = vmul.f32 %v4667, %v4652
    %vm4669 = vweird.f32 %v197
    %v4670 = vadd.s32 %v4653, 3
    %v4671 = vand.u32 %v4670, 3
    %vm4672 = vcmp.lt.s32.totalorder %v4671, 2
    %vm4673 = vcmp.eq.s32.totalorder %v4671, 0
    %v4674 = vxor.u32 %v4668, 2147483648
    %v4675 = vsel %vm4673, %v4660, %v4674
    %vm4676 = vcmp.eq.s32.totalorder %v4671, 2
    %v4677 = vxor.u32 %v4660, 2147483648
    %v4678 = vsel %vm4676, %v4677, %v4668
    %v4679 = vsel %vm4672, %v4675, %v4678
    %v4680 = vsel %vm4669, nan, %v4679
    %v4681 = vand.u32 2147483647, %v198
    %vm4682 = vcmp.le.f32.partialorder %v4681, 0.7853982
    %vm4683 = vcmp.lt.s32.totalorder %v198, 0
    %v4684 = vand.u32 %v198, 2139095040
    %v4685 = vshrl.u32 %v4684, 23
    %v4686 = vsub.s32 %v4685, 127
    %v4687 = vand.u32 2147483647, %v198
    %v4688 = vand.u32 %v4687, 8388607
    %v4689 = vor.u32 %v4688, 8388608
    %v4690 = vsub.s32 0, %v4689
    %v4691 = vadd.s32 %v4686, 1
    %vm4692 = vcmp.gt.s32.totalorder %v4691, 0
    %v4693 = vsel %vm4692, %v4691, 0
    %v4694 = vshrl.u32 %v4693, 5
    %v4695 = vand.u32 %v4693, 31
    %v4696 = vsub.s32 32, %v4695
    %v4697 = vshrl.u32 683565275, %v4696
    %v4698 = vshll.u32 683565275, %v4695
    %v4699 = vshrl.u32 2475754826, %v4696
    %v4700 = vor.u32 %v4698, %v4699
    %v4701 = vshll.u32 2475754826, %v4695
    %v4702 = vshrl.u32 2131351028, %v4696
    %v4703 = vor.u32 %v4701, %v4702
    %v4704 = vshll.u32 2131351028, %v4695
    %v4705 = vshrl.u32 2102212464, %v4696
    %v4706 = vor.u32 %v4704, %v4705
    %v4707 = vshll.u32 2102212464, %v4695
    %v4708 = vshrl.u32 920167782, %v4696
    %v4709 = vor.u32 %v4707, %v4708
    %v4710 = vshll.u32 920167782, %v4695
    %v4711 = vshrl.u32 1326507024, %v4696
    %v4712 = vor.u32 %v4710, %v4711
    %vm4713 = vcmp.lt.s32.totalorder %v4694, 1
    %vm4714 = vcmp.lt.s32.totalorder %v4694, 2
    %vm4715 = vcmp.lt.s32.totalorder %v4694, 3
    %vm4716 = vcmp.lt.s32.totalorder %v4694, 4
    %v4717 = vsel %vm4713, %v4697, %v4700
    %v4718 = vsel %vm4716, %v4706, 2102212464
    %v4719 = vsel %vm4715, %v4703, %v4718
    %v4720 = vsel %vm4714, %v4717, %v4719
    %v4721 = vsel %vm4713, %v4700, %v4703
    %v4722 = vsel %vm4716, %v4709, 920167782
    %v4723 = vsel %vm4715, %v4706, %v4722
    %v4724 = vsel %vm4714, %v4721, %v4723
    %v4725 = vsel %vm4713, %v4703, %v4706
    %v4726 = vsel %vm4716, %v4712, 1326507024
    %v4727 = vsel %vm4715, %v4709, %v4726
    %v4728 = vsel %vm4714, %v4725, %v4727
    %v4729 = vshll.u32 %v4689, 8
    %v4730 = vand.u32 %v4729, 65535
    %v4731 = vshrl.u32 %v4729, 16
    %v4732 = vand.u32 %v4728, 65535
    %v4733 = vshrl.u32 %v4728, 16
    %v4734 = vmul.u32 %v4730, %v4732
    %v4735 = vmul.u32 %v4730, %v4733
    %v4736 = vmul.u32 %v4731, %v4732
    %v4737 = vmul.u32 %v4731, %v4733
    %v4738 = vshll.u32 %v4735, 16
    %v4739 = vshrl.u32 %v4735, 16
    %v4740 = vshll.u32 %v4736, 16
    %v4741 = vshrl.u32 %v4736, 16
    %vm4742 = vc.u32 %v4734, %v4738
    %v4743 = vsel %vm4742, 1, 0
    %v4744 = vadd.s32 %v4734, %v4738
    %v4745 = vadd.s32 %v4737, %v4743
    %vm4746 = vc.u32 %v4744, %v4740
    %v4747 = vsel %vm4746, 1, 0
    %v4748 = vadd.s32 %v4744, %v4740
    %v4749 = vadd.s32 %v4745, %v4747
    %v4750 = vadd.s32 %v4749, %v4739
    %v4751 = vadd.s32 %v4750, %v4741
    %v4752 = vand.u32 %v4729, 65535
    %v4753 = vshrl.u32 %v4729, 16
    %v4754 = vand.u32 %v4724, 65535
    %v4755 = vshrl.u32 %v4724, 16
    %v4756 = vmul.u32 %v4752, %v4754
    %v4757 = vmul.u32 %v4752, %v4755
    %v4758 = vmul.u32 %v4753, %v4754
    %v4759 = vmul.u32 %v4753, %v4755
    %v4760 = vshll.u32 %v4757, 16
    %v4761 = vshrl.u32 %v4757, 16
    %v4762 = vshll.u32 %v4758, 16
    %v4763 = vshrl.u32 %v4758, 16
    %vm4764 = vc.u32 %v4756, %v4760
    %v4765 = vsel %vm4764, 1, 0
    %v4766 = vadd.s32 %v4756, %v4760
    %v4767 = vadd.s32 %v4759, %v4765
    %vm4768 = vc.u32 %v4766, %v4762
    %v4769 = vsel %vm4768, 1, 0
    %v4770 = vadd.s32 %v4766, %v4762
    %v4771 = vadd.s32 %v4767, %v4769
    %v4772 = vadd.s32 %v4771, %v4761
    %v4773 = vadd.s32 %v4772, %v4763
    %v4774 = vmul.u32 %v4729, %v4720
    %v4775 = vadd.s32 %v4751, %v4770
    %vm4776 = vc.u32 %v4751, %v4770
    %v4777 = vadd.s32 %v4773, 1
    %v4778 = vsel %vm4776, %v4777, %v4773
    %v4779 = vadd.s32 %v4774, %v4778
    %v4780 = vadd.s32 %v4779, 536870912
    %v4781 = vshrl.u32 %v4780, 30
    %v4782 = vshll.u32 %v4781, 30
    %v4783 = vsub.s32 %v4779, %v4782
    %vm4784 = vcmp.lt.s32.totalorder %v4783, 0
    %v4785 = vsub.s32 0, %v4783
    %v4786 = vsel %vm4784, %v4785, %v4783
    %v4787 = vclz %v4786
    %v4788 = vsub.s32 %v4787, 2
    %vm4789 = vcmp.gt.s32.totalorder 0, %v4788
    %v4790 = vsel %vm4789, 0, %v4788
    %v4791 = vsub.s32 32, %v4790
    %v4792 = vshll.u32 %v4783, %v4790
    %v4793 = vshrl.u32 %v4775, %v4791
    %v4794 = vor.u32 %v4792, %v4793
    %v4795 = vsub.s32 4294967266, %v4790
    %v4796 = vadd.s32 %v4795, 127
    %v4797 = vshll.u32 %v4796, 23
    %v4798 = vor.u32 4788187, %v4797
    %v4799 = vand.u32 2147483647, %v4798
    %v4801 = vcvt.s32.f32 %v4794
    %v4802 = vmul.f32 %v4801, %v4799
    %v4803 = vxor.u32 %v4802, 2147483648
    %v4804 = vsel %vm4683, %v4803, %v4802
    %v4805 = vsub.s32 4, %v4781
    %v4806 = vsel %vm4683, %v4805, %v4781
    %v4807 = vsel %vm4682, %v198, %v4804
    %v4808 = vsel %vm4682, 0, %v4806
    %v4809 = vmul.f32 %v4807, %v4807
    %v4810 = vmul.f32 %v4809, -0.001358992
    %v4811 = vadd.f32 %v4810, 0.041655596
    %v4812 = vmul.f32 %v4809, %v4811
    %v4813 = vadd.f32 %v4812, -0.4999988
    %v4814 = vmul.f32 %v4809, %v4813
    %v4815 = vadd.f32 1.0, %v4814
    %v4816 = vmul.f32 %v4807, %v4807
    %v4817 = vmul.f32 %v4816, -0.00019511016
    %v4818 = vadd.f32 %v4817, 0.008332121
    %v4819 = vmul.f32 %v4816, %v4818
    %v4820 = vadd.f32 %v4819, -0.16666654
    %v4821 = vmul.f32 %v4816, %v4820
    %v4822 = vadd.f32 %v4821, 1.0
    %v4823 = vmul.f32 %v4822, %v4807
    %vm4824 = vweird.f32 %v198
    %v4825 = vadd.s32 %v4808, 3
    %v4826 = vand.u32 %v4825, 3
    %vm4827 = vcmp.lt.s32.totalorder %v4826, 2
    %vm4828 = vcmp.eq.s32.totalorder %v4826, 0
    %v4829 = vxor.u32 %v4823, 2147483648
    %v4830 = vsel %vm4828, %v4815, %v4829
    %vm4831 = vcmp.eq.s32.totalorder %v4826, 2
    %v4832 = vxor.u32 %v4815, 2147483648
    %v4833 = vsel %vm4831, %v4832, %v4823
    %v4834 = vsel %vm4827, %v4830, %v4833
    %v4835 = vsel %vm4824, nan, %v4834
    %v4836 = vand.u32 2147483647, %v199
    %vm4837 = vcmp.le.f32.partialorder %v4836, 0.7853982
    %vm4838 = vcmp.lt.s32.totalorder %v199, 0
    %v4839 = vand.u32 %v199, 2139095040
    %v4840 = vshrl.u32 %v4839, 23
    %v4841 = vsub.s32 %v4840, 127
    %v4842 = vand.u32 2147483647, %v199
    %v4843 = vand.u32 %v4842, 8388607
    %v4844 = vor.u32 %v4843, 8388608
    %v4845 = vsub.s32 0, %v4844
    %v4846 = vadd.s32 %v4841, 1
    %vm4847 = vcmp.gt.s32.totalorder %v4846, 0
    %v4848 = vsel %vm4847, %v4846, 0
    %v4849 = vshrl.u32 %v4848, 5
    %v4850 = vand.u32 %v4848, 31
    %v4851 = vsub.s32 32, %v4850
    %v4852 = vshrl.u32 683565275, %v4851
    %v4853 = vshll.u32 683565275, %v4850
    %v4854 = vshrl.u32 2475754826, %v4851
    %v4855 = vor.u32 %v4853, %v4854
    %v4856 = vshll.u32 2475754826, %v4850
    %v4857 = vshrl.u32 2131351028, %v4851
    %v4858 = vor.u32 %v4856, %v4857
    %v4859 = vshll.u32 2131351028, %v4850
    %v4860 = vshrl.u32 2102212464, %v4851
    %v4861 = vor.u32 %v4859, %v4860
    %v4862 = vshll.u32 2102212464, %v4850
    %v4863 = vshrl.u32 920167782, %v4851
    %v4864 = vor.u32 %v4862, %v4863
    %v4865 = vshll.u32 920167782, %v4850
    %v4866 = vshrl.u32 1326507024, %v4851
    %v4867 = vor.u32 %v4865, %v4866
    %vm4868 = vcmp.lt.s32.totalorder %v4849, 1
    %vm4869 = vcmp.lt.s32.totalorder %v4849, 2
    %vm4870 = vcmp.lt.s32.totalorder %v4849, 3
    %vm4871 = vcmp.lt.s32.totalorder %v4849, 4
    %v4872 = vsel %vm4868, %v4852, %v4855
    %v4873 = vsel %vm4871, %v4861, 2102212464
    %v4874 = vsel %vm4870, %v4858, %v4873
    %v4875 = vsel %vm4869, %v4872, %v4874
    %v4876 = vsel %vm4868, %v4855, %v4858
    %v4877 = vsel %vm4871, %v4864, 920167782
    %v4878 = vsel %vm4870, %v4861, %v4877
    %v4879 = vsel %vm4869, %v4876, %v4878
    %v4880 = vsel %vm4868, %v4858, %v4861
    %v4881 = vsel %vm4871, %v4867, 1326507024
    %v4882 = vsel %vm4870, %v4864, %v4881
    %v4883 = vsel %vm4869, %v4880, %v4882
    %v4884 = vshll.u32 %v4844, 8
    %v4885 = vand.u32 %v4884, 65535
    %v4886 = vshrl.u32 %v4884, 16
    %v4887 = vand.u32 %v4883, 65535
    %v4888 = vshrl.u32 %v4883, 16
    %v4889 = vmul.u32 %v4885, %v4887
    %v4890 = vmul.u32 %v4885, %v4888
    %v4891 = vmul.u32 %v4886, %v4887
    %v4892 = vmul.u32 %v4886, %v4888
    %v4893 = vshll.u32 %v4890, 16
    %v4894 = vshrl.u32 %v4890, 16
    %v4895 = vshll.u32 %v4891, 16
    %v4896 = vshrl.u32 %v4891, 16
    %vm4897 = vc.u32 %v4889, %v4893
    %v4898 = vsel %vm4897, 1, 0
    %v4899 = vadd.s32 %v4889, %v4893
    %v4900 = vadd.s32 %v4892, %v4898
    %vm4901 = vc.u32 %v4899, %v4895
    %v4902 = vsel %vm4901, 1, 0
    %v4903 = vadd.s32 %v4899, %v4895
    %v4904 = vadd.s32 %v4900, %v4902
    %v4905 = vadd.s32 %v4904, %v4894
    %v4906 = vadd.s32 %v4905, %v4896
    %v4907 = vand.u32 %v4884, 65535
    %v4908 = vshrl.u32 %v4884, 16
    %v4909 = vand.u32 %v4879, 65535
    %v4910 = vshrl.u32 %v4879, 16
    %v4911 = vmul.u32 %v4907, %v4909
    %v4912 = vmul.u32 %v4907, %v4910
    %v4913 = vmul.u32 %v4908, %v4909
    %v4914 = vmul.u32 %v4908, %v4910
    %v4915 = vshll.u32 %v4912, 16
    %v4916 = vshrl.u32 %v4912, 16
    %v4917 = vshll.u32 %v4913, 16
    %v4918 = vshrl.u32 %v4913, 16
    %vm4919 = vc.u32 %v4911, %v4915
    %v4920 = vsel %vm4919, 1, 0
    %v4921 = vadd.s32 %v4911, %v4915
    %v4922 = vadd.s32 %v4914, %v4920
    %vm4923 = vc.u32 %v4921, %v4917
    %v4924 = vsel %vm4923, 1, 0
    %v4925 = vadd.s32 %v4921, %v4917
    %v4926 = vadd.s32 %v4922, %v4924
    %v4927 = vadd.s32 %v4926, %v4916
    %v4928 = vadd.s32 %v4927, %v4918
    %v4929 = vmul.u32 %v4884, %v4875
    %v4930 = vadd.s32 %v4906, %v4925
    %vm4931 = vc.u32 %v4906, %v4925
    %v4932 = vadd.s32 %v4928, 1
    %v4933 = vsel %vm4931, %v4932, %v4928
    %v4934 = vadd.s32 %v4929, %v4933
    %v4935 = vadd.s32 %v4934, 536870912
    %v4936 = vshrl.u32 %v4935, 30
    %v4937 = vshll.u32 %v4936, 30
    %v4938 = vsub.s32 %v4934, %v4937
    %vm4939 = vcmp.lt.s32.totalorder %v4938, 0
    %v4940 = vsub.s32 0, %v4938
    %v4941 = vsel %vm4939, %v4940, %v4938
    %v4942 = vclz %v4941
    %v4943 = vsub.s32 %v4942, 2
    %vm4944 = vcmp.gt.s32.totalorder 0, %v4943
    %v4945 = vsel %vm4944, 0, %v4943
    %v4946 = vsub.s32 32, %v4945
    %v4947 = vshll.u32 %v4938, %v4945
    %v4948 = vshrl.u32 %v4930, %v4946
    %v4949 = vor.u32 %v4947, %v4948
    %v4950 = vsub.s32 4294967266, %v4945
    %v4951 = vadd.s32 %v4950, 127
    %v4952 = vshll.u32 %v4951, 23
    %v4953 = vor.u32 4788187, %v4952
    %v4954 = vand.u32 2147483647, %v4953
    %v4956 = vcvt.s32.f32 %v4949
    %v4957 = vmul.f32 %v4956, %v4954
    %v4958 = vxor.u32 %v4957, 2147483648
    %v4959 = vsel %vm4838, %v4958, %v4957
    %v4960 = vsub.s32 4, %v4936
    %v4961 = vsel %vm4838, %v4960, %v4936
    %v4962 = vsel %vm4837, %v199, %v4959
    %v4963 = vsel %vm4837, 0, %v4961
    %v4964 = vmul.f32 %v4962, %v4962
    %v4965 = vmul.f32 %v4964, -0.001358992
    %v4966 = vadd.f32 %v4965, 0.041655596
    %v4967 = vmul.f32 %v4964, %v4966
    %v4968 = vadd.f32 %v4967, -0.4999988
    %v4969 = vmul.f32 %v4964, %v4968
    %v4970 = vadd.f32 1.0, %v4969
    %v4971 = vmul.f32 %v4962, %v4962
    %v4972 = vmul.f32 %v4971, -0.00019511016
    %v4973 = vadd.f32 %v4972, 0.008332121
    %v4974 = vmul.f32 %v4971, %v4973
    %v4975 = vadd.f32 %v4974, -0.16666654
    %v4976 = vmul.f32 %v4971, %v4975
    %v4977 = vadd.f32 %v4976, 1.0
    %v4978 = vmul.f32 %v4977, %v4962
    %vm4979 = vweird.f32 %v199
    %v4980 = vadd.s32 %v4963, 3
    %v4981 = vand.u32 %v4980, 3
    %vm4982 = vcmp.lt.s32.totalorder %v4981, 2
    %vm4983 = vcmp.eq.s32.totalorder %v4981, 0
    %v4984 = vxor.u32 %v4978, 2147483648
    %v4985 = vsel %vm4983, %v4970, %v4984
    %vm4986 = vcmp.eq.s32.totalorder %v4981, 2
    %v4987 = vxor.u32 %v4970, 2147483648
    %v4988 = vsel %vm4986, %v4987, %v4978
    %v4989 = vsel %vm4982, %v4985, %v4988
    %v4990 = vsel %vm4979, nan, %v4989
    %v4991 = vand.u32 2147483647, %v200
    %vm4992 = vcmp.le.f32.partialorder %v4991, 0.7853982
    %vm4993 = vcmp.lt.s32.totalorder %v200, 0
    %v4994 = vand.u32 %v200, 2139095040
    %v4995 = vshrl.u32 %v4994, 23
    %v4996 = vsub.s32 %v4995, 127
    %v4997 = vand.u32 2147483647, %v200
    %v4998 = vand.u32 %v4997, 8388607
    %v4999 = vor.u32 %v4998, 8388608
    %v5000 = vsub.s32 0, %v4999
    %v5001 = vadd.s32 %v4996, 1
    %vm5002 = vcmp.gt.s32.totalorder %v5001, 0
    %v5003 = vsel %vm5002, %v5001, 0
    %v5004 = vshrl.u32 %v5003, 5
    %v5005 = vand.u32 %v5003, 31
    %v5006 = vsub.s32 32, %v5005
    %v5007 = vshrl.u32 683565275, %v5006
    %v5008 = vshll.u32 683565275, %v5005
    %v5009 = vshrl.u32 2475754826, %v5006
    %v5010 = vor.u32 %v5008, %v5009
    %v5011 = vshll.u32 2475754826, %v5005
    %v5012 = vshrl.u32 2131351028, %v5006
    %v5013 = vor.u32 %v5011, %v5012
    %v5014 = vshll.u32 2131351028, %v5005
    %v5015 = vshrl.u32 2102212464, %v5006
    %v5016 = vor.u32 %v5014, %v5015
    %v5017 = vshll.u32 2102212464, %v5005
    %v5018 = vshrl.u32 920167782, %v5006
    %v5019 = vor.u32 %v5017, %v5018
    %v5020 = vshll.u32 920167782, %v5005
    %v5021 = vshrl.u32 1326507024, %v5006
    %v5022 = vor.u32 %v5020, %v5021
    %vm5023 = vcmp.lt.s32.totalorder %v5004, 1
    %vm5024 = vcmp.lt.s32.totalorder %v5004, 2
    %vm5025 = vcmp.lt.s32.totalorder %v5004, 3
    %vm5026 = vcmp.lt.s32.totalorder %v5004, 4
    %v5027 = vsel %vm5023, %v5007, %v5010
    %v5028 = vsel %vm5026, %v5016, 2102212464
    %v5029 = vsel %vm5025, %v5013, %v5028
    %v5030 = vsel %vm5024, %v5027, %v5029
    %v5031 = vsel %vm5023, %v5010, %v5013
    %v5032 = vsel %vm5026, %v5019, 920167782
    %v5033 = vsel %vm5025, %v5016, %v5032
    %v5034 = vsel %vm5024, %v5031, %v5033
    %v5035 = vsel %vm5023, %v5013, %v5016
    %v5036 = vsel %vm5026, %v5022, 1326507024
    %v5037 = vsel %vm5025, %v5019, %v5036
    %v5038 = vsel %vm5024, %v5035, %v5037
    %v5039 = vshll.u32 %v4999, 8
    %v5040 = vand.u32 %v5039, 65535
    %v5041 = vshrl.u32 %v5039, 16
    %v5042 = vand.u32 %v5038, 65535
    %v5043 = vshrl.u32 %v5038, 16
    %v5044 = vmul.u32 %v5040, %v5042
    %v5045 = vmul.u32 %v5040, %v5043
    %v5046 = vmul.u32 %v5041, %v5042
    %v5047 = vmul.u32 %v5041, %v5043
    %v5048 = vshll.u32 %v5045, 16
    %v5049 = vshrl.u32 %v5045, 16
    %v5050 = vshll.u32 %v5046, 16
    %v5051 = vshrl.u32 %v5046, 16
    %vm5052 = vc.u32 %v5044, %v5048
    %v5053 = vsel %vm5052, 1, 0
    %v5054 = vadd.s32 %v5044, %v5048
    %v5055 = vadd.s32 %v5047, %v5053
    %vm5056 = vc.u32 %v5054, %v5050
    %v5057 = vsel %vm5056, 1, 0
    %v5058 = vadd.s32 %v5054, %v5050
    %v5059 = vadd.s32 %v5055, %v5057
    %v5060 = vadd.s32 %v5059, %v5049
    %v5061 = vadd.s32 %v5060, %v5051
    %v5062 = vand.u32 %v5039, 65535
    %v5063 = vshrl.u32 %v5039, 16
    %v5064 = vand.u32 %v5034, 65535
    %v5065 = vshrl.u32 %v5034, 16
    %v5066 = vmul.u32 %v5062, %v5064
    %v5067 = vmul.u32 %v5062, %v5065
    %v5068 = vmul.u32 %v5063, %v5064
    %v5069 = vmul.u32 %v5063, %v5065
    %v5070 = vshll.u32 %v5067, 16
    %v5071 = vshrl.u32 %v5067, 16
    %v5072 = vshll.u32 %v5068, 16
    %v5073 = vshrl.u32 %v5068, 16
    %vm5074 = vc.u32 %v5066, %v5070
    %v5075 = vsel %vm5074, 1, 0
    %v5076 = vadd.s32 %v5066, %v5070
    %v5077 = vadd.s32 %v5069, %v5075
    %vm5078 = vc.u32 %v5076, %v5072
    %v5079 = vsel %vm5078, 1, 0
    %v5080 = vadd.s32 %v5076, %v5072
    %v5081 = vadd.s32 %v5077, %v5079
    %v5082 = vadd.s32 %v5081, %v5071
    %v5083 = vadd.s32 %v5082, %v5073
    %v5084 = vmul.u32 %v5039, %v5030
    %v5085 = vadd.s32 %v5061, %v5080
    %vm5086 = vc.u32 %v5061, %v5080
    %v5087 = vadd.s32 %v5083, 1
    %v5088 = vsel %vm5086, %v5087, %v5083
    %v5089 = vadd.s32 %v5084, %v5088
    %v5090 = vadd.s32 %v5089, 536870912
    %v5091 = vshrl.u32 %v5090, 30
    %v5092 = vshll.u32 %v5091, 30
    %v5093 = vsub.s32 %v5089, %v5092
    %vm5094 = vcmp.lt.s32.totalorder %v5093, 0
    %v5095 = vsub.s32 0, %v5093
    %v5096 = vsel %vm5094, %v5095, %v5093
    %v5097 = vclz %v5096
    %v5098 = vsub.s32 %v5097, 2
    %vm5099 = vcmp.gt.s32.totalorder 0, %v5098
    %v5100 = vsel %vm5099, 0, %v5098
    %v5101 = vsub.s32 32, %v5100
    %v5102 = vshll.u32 %v5093, %v5100
    %v5103 = vshrl.u32 %v5085, %v5101
    %v5104 = vor.u32 %v5102, %v5103
    %v5105 = vsub.s32 4294967266, %v5100
    %v5106 = vadd.s32 %v5105, 127
    %v5107 = vshll.u32 %v5106, 23
    %v5108 = vor.u32 4788187, %v5107
    %v5109 = vand.u32 2147483647, %v5108
    %v5111 = vcvt.s32.f32 %v5104
    %v5112 = vmul.f32 %v5111, %v5109
    %v5113 = vxor.u32 %v5112, 2147483648
    %v5114 = vsel %vm4993, %v5113, %v5112
    %v5115 = vsub.s32 4, %v5091
    %v5116 = vsel %vm4993, %v5115, %v5091
    %v5117 = vsel %vm4992, %v200, %v5114
    %v5118 = vsel %vm4992, 0, %v5116
    %v5119 = vmul.f32 %v5117, %v5117
    %v5120 = vmul.f32 %v5119, -0.001358992
    %v5121 = vadd.f32 %v5120, 0.041655596
    %v5122 = vmul.f32 %v5119, %v5121
    %v5123 = vadd.f32 %v5122, -0.4999988
    %v5124 = vmul.f32 %v5119, %v5123
    %v5125 = vadd.f32 1.0, %v5124
    %v5126 = vmul.f32 %v5117, %v5117
    %v5127 = vmul.f32 %v5126, -0.00019511016
    %v5128 = vadd.f32 %v5127, 0.008332121
    %v5129 = vmul.f32 %v5126, %v5128
    %v5130 = vadd.f32 %v5129, -0.16666654
    %v5131 = vmul.f32 %v5126, %v5130
    %v5132 = vadd.f32 %v5131, 1.0
    %v5133 = vmul.f32 %v5132, %v5117
    %vm5134 = vweird.f32 %v200
    %v5135 = vadd.s32 %v5118, 3
    %v5136 = vand.u32 %v5135, 3
    %vm5137 = vcmp.lt.s32.totalorder %v5136, 2
    %vm5138 = vcmp.eq.s32.totalorder %v5136, 0
    %v5139 = vxor.u32 %v5133, 2147483648
    %v5140 = vsel %vm5138, %v5125, %v5139
    %vm5141 = vcmp.eq.s32.totalorder %v5136, 2
    %v5142 = vxor.u32 %v5125, 2147483648
    %v5143 = vsel %vm5141, %v5142, %v5133
    %v5144 = vsel %vm5137, %v5140, %v5143
    %v5145 = vsel %vm5134, nan, %v5144
    %v5146 = vsel %vm201, 1, 0
    %v5147 = vperm.slane %v5146, 0
    %vm5148 = vcmp.eq.s32.totalorder %v5147, 1
    %v5149 = vsel %vm5148, %v355, %v2820
    %v5150 = vsel %vm5148, %v509, %v2975
    %v5151 = vsel %vm5148, %v663, %v3130
    %v5152 = vsel %vm5148, %v817, %v3285
    %v5153 = vsel %vm5148, %v971, %v3440
    %v5154 = vsel %vm5148, %v1125, %v3595
    %v5155 = vsel %vm5148, %v1279, %v3750
    %v5156 = vsel %vm5148, %v1433, %v3905
    %v5157 = vsel %vm5148, %v1587, %v4060
    %v5158 = vsel %vm5148, %v1741, %v4215
    %v5159 = vsel %vm5148, %v1895, %v4370
    %v5160 = vsel %vm5148, %v2049, %v4525
    %v5161 = vsel %vm5148, %v2203, %v4680
    %v5162 = vsel %vm5148, %v2357, %v4835
    %v5163 = vsel %vm5148, %v2511, %v4990
    %v5164 = vsel %vm5148, %v2665, %v5145
    %v5165 = vld [vmem:[%s0] sm:$0xff]
    %v5166 = vld [vmem:[%s0 + $0x8] sm:$0xff]
    %v5167 = vld [vmem:[%s0 + $0x10] sm:$0xff]
    %v5168 = vld [vmem:[%s0 + $0x18] sm:$0xff]
    %v5169 = vld [vmem:[%s0 + $0x20] sm:$0xff]
    %v5170 = vld [vmem:[%s0 + $0x28] sm:$0xff]
    %v5171 = vld [vmem:[%s0 + $0x30] sm:$0xff]
    %v5172 = vld [vmem:[%s0 + $0x38] sm:$0xff]
    %v5173 = vld [vmem:[%s0 + $0x40] sm:$0xff]
    %v5174 = vld [vmem:[%s0 + $0x48] sm:$0xff]
    %v5175 = vld [vmem:[%s0 + $0x50] sm:$0xff]
    %v5176 = vld [vmem:[%s0 + $0x58] sm:$0xff]
    %v5177 = vld [vmem:[%s0 + $0x60] sm:$0xff]
    %v5178 = vld [vmem:[%s0 + $0x68] sm:$0xff]
    %v5179 = vld [vmem:[%s0 + $0x70] sm:$0xff]
    %v5180 = vld [vmem:[%s0 + $0x78] sm:$0xff]
    %v5181 = vadd.f32 %v5165, %v5149
    %v5182 = vadd.f32 %v5166, %v5150
    %v5183 = vadd.f32 %v5167, %v5151
    %v5184 = vadd.f32 %v5168, %v5152
    %v5185 = vadd.f32 %v5169, %v5153
    %v5186 = vadd.f32 %v5170, %v5154
    %v5187 = vadd.f32 %v5171, %v5155
    %v5188 = vadd.f32 %v5172, %v5156
    %v5189 = vadd.f32 %v5173, %v5157
    %v5190 = vadd.f32 %v5174, %v5158
    %v5191 = vadd.f32 %v5175, %v5159
    %v5192 = vadd.f32 %v5176, %v5160
    %v5193 = vadd.f32 %v5177, %v5161
    %v5194 = vadd.f32 %v5178, %v5162
    %v5195 = vadd.f32 %v5179, %v5163
    %v5196 = vadd.f32 %v5180, %v5164
    %v5197 = vld [vmem:[#allocation2] sm:$0xf]
    %v5198 = vld [vmem:[#allocation2 + $0x4] sm:$0xf]
    %v5199 = vld [vmem:[#allocation2 + $0x8] sm:$0xf]
    %v5200 = vld [vmem:[#allocation2 + $0xc] sm:$0xf]
    %v5201 = vld [vmem:[#allocation2 + $0x10] sm:$0xf]
    %v5202 = vld [vmem:[#allocation2 + $0x14] sm:$0xf]
    %v5203 = vld [vmem:[#allocation2 + $0x18] sm:$0xf]
    %v5204 = vld [vmem:[#allocation2 + $0x1c] sm:$0xf]
    %v5205 = vld [vmem:[#allocation2 + $0x20] sm:$0xf]
    %v5206 = vld [vmem:[#allocation2 + $0x24] sm:$0xf]
    %v5207 = vld [vmem:[#allocation2 + $0x28] sm:$0xf]
    %v5208 = vld [vmem:[#allocation2 + $0x2c] sm:$0xf]
    %v5209 = vld [vmem:[#allocation2 + $0x30] sm:$0xf]
    %v5210 = vld [vmem:[#allocation2 + $0x34] sm:$0xf]
    %v5211 = vld [vmem:[#allocation2 + $0x38] sm:$0xf]
    %v5212 = vld [vmem:[#allocation2 + $0x3c] sm:$0xf]
    %v5213 = vpack.c.bf16 %v5182, %v5181
    %v5214 = vpack.c.bf16 %v5184, %v5183
    %v5215 = vpack.c.bf16 %v5186, %v5185
    %v5216 = vpack.c.bf16 %v5188, %v5187
    %v5217 = vpack.c.bf16 %v5190, %v5189
    %v5218 = vpack.c.bf16 %v5192, %v5191
    %v5219 = vpack.c.bf16 %v5194, %v5193
    %v5220 = vpack.c.bf16 %v5196, %v5195
    %v5221 = vperm.slane %v66, 0
    %v5238 = vunpack.c.l.b16 %v5197
    %v5239 = vunpack.c.l.b16 %v5198
    %v5240 = vunpack.c.l.b16 %v5199
    %v5241 = vunpack.c.l.b16 %v5200
    %v5242 = vunpack.c.l.b16 %v5201
    %v5243 = vunpack.c.l.b16 %v5202
    %v5244 = vunpack.c.l.b16 %v5203
    %v5245 = vunpack.c.l.b16 %v5204
    %v5246 = vunpack.c.l.b16 %v5205
    %v5247 = vunpack.c.l.b16 %v5206
    %v5248 = vunpack.c.l.b16 %v5207
    %v5249 = vunpack.c.l.b16 %v5208
    %v5250 = vunpack.c.l.b16 %v5209
    %v5251 = vunpack.c.l.b16 %v5210
    %v5252 = vunpack.c.l.b16 %v5211
    %v5253 = vunpack.c.l.b16 %v5212
    %v5254 = vpack.c.b16 %v5239, %v5238
    %v5255 = vpack.c.b16 %v5241, %v5240
    %v5256 = vpack.c.b16 %v5243, %v5242
    %v5257 = vpack.c.b16 %v5245, %v5244
    %v5258 = vpack.c.b16 %v5247, %v5246
    %v5259 = vpack.c.b16 %v5249, %v5248
    %v5260 = vpack.c.b16 %v5251, %v5250
    %v5261 = vpack.c.b16 %v5253, %v5252
    %5270 = vmatpush.bf16.msra.mxu0 %v5261
    %5271 = vmatpush.bf16.msra.mxu0 %v5260
    %5272 = vmatpush.bf16.msra.mxu0 %v5259
    %5273 = vmatpush.bf16.msra.mxu0 %v5258
    %5274 = vmatpush.bf16.msra.mxu0 %v5257
    %5275 = vmatpush.bf16.msra.mxu0 %v5256
    %5276 = vmatpush.bf16.msra.mxu0 %v5255
    %5277 = vmatpush.bf16.msra.mxu0 %v5254
    %5278 = vmatmul.bf16.gmra.mxu0 %v5213
    %v5279 = vpop.f32.mrf.mxu0
    %v5280 = vadd.f32 %v5221, %v5279
    %v5281 = vpop.f32.mrf.mxu0
    %v5282 = vadd.f32 %v5221, %v5281
    %5283 = vmatmul.bf16.gmra.mxu0 %v5214
    %v5284 = vpop.f32.mrf.mxu0
    %v5285 = vadd.f32 %v5221, %v5284
    %v5286 = vpop.f32.mrf.mxu0
    %v5287 = vadd.f32 %v5221, %v5286
    %5288 = vmatmul.bf16.gmra.mxu0 %v5215
    %v5289 = vpop.f32.mrf.mxu0
    %v5290 = vadd.f32 %v5221, %v5289
    %v5291 = vpop.f32.mrf.mxu0
    %v5292 = vadd.f32 %v5221, %v5291
    %5293 = vmatmul.bf16.gmra.mxu0 %v5216
    %v5294 = vpop.f32.mrf.mxu0
    %v5295 = vadd.f32 %v5221, %v5294
    %v5296 = vpop.f32.mrf.mxu0
    %v5297 = vadd.f32 %v5221, %v5296
    %5298 = vmatmul.bf16.gmra.mxu0 %v5217
    %v5299 = vpop.f32.mrf.mxu0
    %v5300 = vadd.f32 %v5221, %v5299
    %v5301 = vpop.f32.mrf.mxu0
    %v5302 = vadd.f32 %v5221, %v5301
    %5303 = vmatmul.bf16.gmra.mxu0 %v5218
    %v5304 = vpop.f32.mrf.mxu0
    %v5305 = vadd.f32 %v5221, %v5304
    %v5306 = vpop.f32.mrf.mxu0
    %v5307 = vadd.f32 %v5221, %v5306
    %5308 = vmatmul.bf16.gmra.mxu0 %v5219
    %v5309 = vpop.f32.mrf.mxu0
    %v5310 = vadd.f32 %v5221, %v5309
    %v5311 = vpop.f32.mrf.mxu0
    %v5312 = vadd.f32 %v5221, %v5311
    %5313 = vmatmul.bf16.gmra.mxu0 %v5220
    %v5314 = vpop.f32.mrf.mxu0
    %v5315 = vadd.f32 %v5221, %v5314
    %v5316 = vpop.f32.mrf.mxu0
    %v5317 = vadd.f32 %v5221, %v5316
    %5318 = vdwg.mxu0
    %v5319 = vmul.f32 %v5280, 0.5
    %v5320 = vmul.f32 %v5282, 0.5
    %v5321 = vmul.f32 %v5285, 0.5
    %v5322 = vmul.f32 %v5287, 0.5
    %v5323 = vmul.f32 %v5290, 0.5
    %v5324 = vmul.f32 %v5292, 0.5
    %v5325 = vmul.f32 %v5295, 0.5
    %v5326 = vmul.f32 %v5297, 0.5
    %v5327 = vmul.f32 %v5300, 0.5
    %v5328 = vmul.f32 %v5302, 0.5
    %v5329 = vmul.f32 %v5305, 0.5
    %v5330 = vmul.f32 %v5307, 0.5
    %v5331 = vmul.f32 %v5310, 0.5
    %v5332 = vmul.f32 %v5312, 0.5
    %v5333 = vmul.f32 %v5315, 0.5
    %v5334 = vmul.f32 %v5317, 0.5
    %v5335 = vmul.f32 %v5280, 0.70710677
    %v5336 = vmul.f32 %v5282, 0.70710677
    %v5337 = vmul.f32 %v5285, 0.70710677
    %v5338 = vmul.f32 %v5287, 0.70710677
    %v5339 = vmul.f32 %v5290, 0.70710677
    %v5340 = vmul.f32 %v5292, 0.70710677
    %v5341 = vmul.f32 %v5295, 0.70710677
    %v5342 = vmul.f32 %v5297, 0.70710677
    %v5343 = vmul.f32 %v5300, 0.70710677
    %v5344 = vmul.f32 %v5302, 0.70710677
    %v5345 = vmul.f32 %v5305, 0.70710677
    %v5346 = vmul.f32 %v5307, 0.70710677
    %v5347 = vmul.f32 %v5310, 0.70710677
    %v5348 = vmul.f32 %v5312, 0.70710677
    %v5349 = vmul.f32 %v5315, 0.70710677
    %v5350 = vmul.f32 %v5317, 0.70710677
    %v5351 = vmul.f32 %v5335, %v5335
    %v5352 = vmin.f32 16.0, %v5351
    %v5353 = vmul.f32 %v5352, 2.1237322e-06
    %v5354 = vadd.f32 %v5353, 0.00028619796
    %v5355 = vmul.f32 %v5352, %v5354
    %v5356 = vadd.f32 %v5355, 0.0036580483
    %v5357 = vmul.f32 %v5352, %v5356
    %v5358 = vadd.f32 %v5357, 0.05243302
    %v5359 = vmul.f32 %v5352, %v5358
    %v5360 = vadd.f32 %v5359, 0.18741608
    %v5361 = vmul.f32 %v5352, %v5360
    %v5362 = vadd.f32 %v5361, 1.1283791
    %v5363 = vmul.f32 %v5335, %v5362
    %v5364 = vmul.f32 %v5352, 3.8918573e-05
    %v5365 = vadd.f32 %v5364, 0.001143296
    %v5366 = vmul.f32 %v5352, %v5365
    %v5367 = vadd.f32 %v5366, 0.014752088
    %v5368 = vmul.f32 %v5352, %v5367
    %v5369 = vadd.f32 %v5368, 0.112945676
    %v5370 = vmul.f32 %v5352, %v5369
    %v5371 = vadd.f32 %v5370, 0.4994258
    %v5372 = vmul.f32 %v5352, %v5371
    %v5373 = vadd.f32 %v5372, 1.0
    %v5374 = vrcp.pop %v5373
    %v5375 = vmul.f32 %v5373, %v5374
    %v5376 = vsub.f32 1.0, %v5375
    %v5377 = vmul.f32 %v5374, %v5376
    %v5378 = vadd.f32 %v5374, %v5377
    %vm5379 = vweird.f32 %v5373
    %vm5380 = vweird.f32 %v5374
    %vm5381 = vmor %vm5379, %vm5380
    %v5382 = vsel %vm5381, %v5374, %v5378
    %v5383 = vand.u32 2147483647, %v5373
    %vm5384 = vcmp.eq.f32.partialorder %v5383, 8.507059e+37
    %v5385 = vand.u32 %v5373, 2147483648
    %v5386 = vor.u32 1.1754944e-38, %v5385
    %v5387 = vsel %vm5384, %v5386, %v5382
    %v5388 = vmul.f32 %v5363, %v5387
    %v5389 = vmin.f32 %v5388, 1.0
    %v5390 = vmax.f32 %v5389, -1.0
    %v5391 = vmul.f32 %v5336, %v5336
    %v5392 = vmin.f32 16.0, %v5391
    %v5393 = vmul.f32 %v5392, 2.1237322e-06
    %v5394 = vadd.f32 %v5393, 0.00028619796
    %v5395 = vmul.f32 %v5392, %v5394
    %v5396 = vadd.f32 %v5395, 0.0036580483
    %v5397 = vmul.f32 %v5392, %v5396
    %v5398 = vadd.f32 %v5397, 0.05243302
    %v5399 = vmul.f32 %v5392, %v5398
    %v5400 = vadd.f32 %v5399, 0.18741608
    %v5401 = vmul.f32 %v5392, %v5400
    %v5402 = vadd.f32 %v5401, 1.1283791
    %v5403 = vmul.f32 %v5336, %v5402
    %v5404 = vmul.f32 %v5392, 3.8918573e-05
    %v5405 = vadd.f32 %v5404, 0.001143296
    %v5406 = vmul.f32 %v5392, %v5405
    %v5407 = vadd.f32 %v5406, 0.014752088
    %v5408 = vmul.f32 %v5392, %v5407
    %v5409 = vadd.f32 %v5408, 0.112945676
    %v5410 = vmul.f32 %v5392, %v5409
    %v5411 = vadd.f32 %v5410, 0.4994258
    %v5412 = vmul.f32 %v5392, %v5411
    %v5413 = vadd.f32 %v5412, 1.0
    %v5414 = vrcp.pop %v5413
    %v5415 = vmul.f32 %v5413, %v5414
    %v5416 = vsub.f32 1.0, %v5415
    %v5417 = vmul.f32 %v5414, %v5416
    %v5418 = vadd.f32 %v5414, %v5417
    %vm5419 = vweird.f32 %v5413
    %vm5420 = vweird.f32 %v5414
    %vm5421 = vmor %vm5419, %vm5420
    %v5422 = vsel %vm5421, %v5414, %v5418
    %v5423 = vand.u32 2147483647, %v5413
    %vm5424 = vcmp.eq.f32.partialorder %v5423, 8.507059e+37
    %v5425 = vand.u32 %v5413, 2147483648
    %v5426 = vor.u32 1.1754944e-38, %v5425
    %v5427 = vsel %vm5424, %v5426, %v5422
    %v5428 = vmul.f32 %v5403, %v5427
    %v5429 = vmin.f32 %v5428, 1.0
    %v5430 = vmax.f32 %v5429, -1.0
    %v5431 = vmul.f32 %v5337, %v5337
    %v5432 = vmin.f32 16.0, %v5431
    %v5433 = vmul.f32 %v5432, 2.1237322e-06
    %v5434 = vadd.f32 %v5433, 0.00028619796
    %v5435 = vmul.f32 %v5432, %v5434
    %v5436 = vadd.f32 %v5435, 0.0036580483
    %v5437 = vmul.f32 %v5432, %v5436
    %v5438 = vadd.f32 %v5437, 0.05243302
    %v5439 = vmul.f32 %v5432, %v5438
    %v5440 = vadd.f32 %v5439, 0.18741608
    %v5441 = vmul.f32 %v5432, %v5440
    %v5442 = vadd.f32 %v5441, 1.1283791
    %v5443 = vmul.f32 %v5337, %v5442
    %v5444 = vmul.f32 %v5432, 3.8918573e-05
    %v5445 = vadd.f32 %v5444, 0.001143296
    %v5446 = vmul.f32 %v5432, %v5445
    %v5447 = vadd.f32 %v5446, 0.014752088
    %v5448 = vmul.f32 %v5432, %v5447
    %v5449 = vadd.f32 %v5448, 0.112945676
    %v5450 = vmul.f32 %v5432, %v5449
    %v5451 = vadd.f32 %v5450, 0.4994258
    %v5452 = vmul.f32 %v5432, %v5451
    %v5453 = vadd.f32 %v5452, 1.0
    %v5454 = vrcp.pop %v5453
    %v5455 = vmul.f32 %v5453, %v5454
    %v5456 = vsub.f32 1.0, %v5455
    %v5457 = vmul.f32 %v5454, %v5456
    %v5458 = vadd.f32 %v5454, %v5457
    %vm5459 = vweird.f32 %v5453
    %vm5460 = vweird.f32 %v5454
    %vm5461 = vmor %vm5459, %vm5460
    %v5462 = vsel %vm5461, %v5454, %v5458
    %v5463 = vand.u32 2147483647, %v5453
    %vm5464 = vcmp.eq.f32.partialorder %v5463, 8.507059e+37
    %v5465 = vand.u32 %v5453, 2147483648
    %v5466 = vor.u32 1.1754944e-38, %v5465
    %v5467 = vsel %vm5464, %v5466, %v5462
    %v5468 = vmul.f32 %v5443, %v5467
    %v5469 = vmin.f32 %v5468, 1.0
    %v5470 = vmax.f32 %v5469, -1.0
    %v5471 = vmul.f32 %v5338, %v5338
    %v5472 = vmin.f32 16.0, %v5471
    %v5473 = vmul.f32 %v5472, 2.1237322e-06
    %v5474 = vadd.f32 %v5473, 0.00028619796
    %v5475 = vmul.f32 %v5472, %v5474
    %v5476 = vadd.f32 %v5475, 0.0036580483
    %v5477 = vmul.f32 %v5472, %v5476
    %v5478 = vadd.f32 %v5477, 0.05243302
    %v5479 = vmul.f32 %v5472, %v5478
    %v5480 = vadd.f32 %v5479, 0.18741608
    %v5481 = vmul.f32 %v5472, %v5480
    %v5482 = vadd.f32 %v5481, 1.1283791
    %v5483 = vmul.f32 %v5338, %v5482
    %v5484 = vmul.f32 %v5472, 3.8918573e-05
    %v5485 = vadd.f32 %v5484, 0.001143296
    %v5486 = vmul.f32 %v5472, %v5485
    %v5487 = vadd.f32 %v5486, 0.014752088
    %v5488 = vmul.f32 %v5472, %v5487
    %v5489 = vadd.f32 %v5488, 0.112945676
    %v5490 = vmul.f32 %v5472, %v5489
    %v5491 = vadd.f32 %v5490, 0.4994258
    %v5492 = vmul.f32 %v5472, %v5491
    %v5493 = vadd.f32 %v5492, 1.0
    %v5494 = vrcp.pop %v5493
    %v5495 = vmul.f32 %v5493, %v5494
    %v5496 = vsub.f32 1.0, %v5495
    %v5497 = vmul.f32 %v5494, %v5496
    %v5498 = vadd.f32 %v5494, %v5497
    %vm5499 = vweird.f32 %v5493
    %vm5500 = vweird.f32 %v5494
    %vm5501 = vmor %vm5499, %vm5500
    %v5502 = vsel %vm5501, %v5494, %v5498
    %v5503 = vand.u32 2147483647, %v5493
    %vm5504 = vcmp.eq.f32.partialorder %v5503, 8.507059e+37
    %v5505 = vand.u32 %v5493, 2147483648
    %v5506 = vor.u32 1.1754944e-38, %v5505
    %v5507 = vsel %vm5504, %v5506, %v5502
    %v5508 = vmul.f32 %v5483, %v5507
    %v5509 = vmin.f32 %v5508, 1.0
    %v5510 = vmax.f32 %v5509, -1.0
    %v5511 = vmul.f32 %v5339, %v5339
    %v5512 = vmin.f32 16.0, %v5511
    %v5513 = vmul.f32 %v5512, 2.1237322e-06
    %v5514 = vadd.f32 %v5513, 0.00028619796
    %v5515 = vmul.f32 %v5512, %v5514
    %v5516 = vadd.f32 %v5515, 0.0036580483
    %v5517 = vmul.f32 %v5512, %v5516
    %v5518 = vadd.f32 %v5517, 0.05243302
    %v5519 = vmul.f32 %v5512, %v5518
    %v5520 = vadd.f32 %v5519, 0.18741608
    %v5521 = vmul.f32 %v5512, %v5520
    %v5522 = vadd.f32 %v5521, 1.1283791
    %v5523 = vmul.f32 %v5339, %v5522
    %v5524 = vmul.f32 %v5512, 3.8918573e-05
    %v5525 = vadd.f32 %v5524, 0.001143296
    %v5526 = vmul.f32 %v5512, %v5525
    %v5527 = vadd.f32 %v5526, 0.014752088
    %v5528 = vmul.f32 %v5512, %v5527
    %v5529 = vadd.f32 %v5528, 0.112945676
    %v5530 = vmul.f32 %v5512, %v5529
    %v5531 = vadd.f32 %v5530, 0.4994258
    %v5532 = vmul.f32 %v5512, %v5531
    %v5533 = vadd.f32 %v5532, 1.0
    %v5534 = vrcp.pop %v5533
    %v5535 = vmul.f32 %v5533, %v5534
    %v5536 = vsub.f32 1.0, %v5535
    %v5537 = vmul.f32 %v5534, %v5536
    %v5538 = vadd.f32 %v5534, %v5537
    %vm5539 = vweird.f32 %v5533
    %vm5540 = vweird.f32 %v5534
    %vm5541 = vmor %vm5539, %vm5540
    %v5542 = vsel %vm5541, %v5534, %v5538
    %v5543 = vand.u32 2147483647, %v5533
    %vm5544 = vcmp.eq.f32.partialorder %v5543, 8.507059e+37
    %v5545 = vand.u32 %v5533, 2147483648
    %v5546 = vor.u32 1.1754944e-38, %v5545
    %v5547 = vsel %vm5544, %v5546, %v5542
    %v5548 = vmul.f32 %v5523, %v5547
    %v5549 = vmin.f32 %v5548, 1.0
    %v5550 = vmax.f32 %v5549, -1.0
    %v5551 = vmul.f32 %v5340, %v5340
    %v5552 = vmin.f32 16.0, %v5551
    %v5553 = vmul.f32 %v5552, 2.1237322e-06
    %v5554 = vadd.f32 %v5553, 0.00028619796
    %v5555 = vmul.f32 %v5552, %v5554
    %v5556 = vadd.f32 %v5555, 0.0036580483
    %v5557 = vmul.f32 %v5552, %v5556
    %v5558 = vadd.f32 %v5557, 0.05243302
    %v5559 = vmul.f32 %v5552, %v5558
    %v5560 = vadd.f32 %v5559, 0.18741608
    %v5561 = vmul.f32 %v5552, %v5560
    %v5562 = vadd.f32 %v5561, 1.1283791
    %v5563 = vmul.f32 %v5340, %v5562
    %v5564 = vmul.f32 %v5552, 3.8918573e-05
    %v5565 = vadd.f32 %v5564, 0.001143296
    %v5566 = vmul.f32 %v5552, %v5565
    %v5567 = vadd.f32 %v5566, 0.014752088
    %v5568 = vmul.f32 %v5552, %v5567
    %v5569 = vadd.f32 %v5568, 0.112945676
    %v5570 = vmul.f32 %v5552, %v5569
    %v5571 = vadd.f32 %v5570, 0.4994258
    %v5572 = vmul.f32 %v5552, %v5571
    %v5573 = vadd.f32 %v5572, 1.0
    %v5574 = vrcp.pop %v5573
    %v5575 = vmul.f32 %v5573, %v5574
    %v5576 = vsub.f32 1.0, %v5575
    %v5577 = vmul.f32 %v5574, %v5576
    %v5578 = vadd.f32 %v5574, %v5577
    %vm5579 = vweird.f32 %v5573
    %vm5580 = vweird.f32 %v5574
    %vm5581 = vmor %vm5579, %vm5580
    %v5582 = vsel %vm5581, %v5574, %v5578
    %v5583 = vand.u32 2147483647, %v5573
    %vm5584 = vcmp.eq.f32.partialorder %v5583, 8.507059e+37
    %v5585 = vand.u32 %v5573, 2147483648
    %v5586 = vor.u32 1.1754944e-38, %v5585
    %v5587 = vsel %vm5584, %v5586, %v5582
    %v5588 = vmul.f32 %v5563, %v5587
    %v5589 = vmin.f32 %v5588, 1.0
    %v5590 = vmax.f32 %v5589, -1.0
    %v5591 = vmul.f32 %v5341, %v5341
    %v5592 = vmin.f32 16.0, %v5591
    %v5593 = vmul.f32 %v5592, 2.1237322e-06
    %v5594 = vadd.f32 %v5593, 0.00028619796
    %v5595 = vmul.f32 %v5592, %v5594
    %v5596 = vadd.f32 %v5595, 0.0036580483
    %v5597 = vmul.f32 %v5592, %v5596
    %v5598 = vadd.f32 %v5597, 0.05243302
    %v5599 = vmul.f32 %v5592, %v5598
    %v5600 = vadd.f32 %v5599, 0.18741608
    %v5601 = vmul.f32 %v5592, %v5600
    %v5602 = vadd.f32 %v5601, 1.1283791
    %v5603 = vmul.f32 %v5341, %v5602
    %v5604 = vmul.f32 %v5592, 3.8918573e-05
    %v5605 = vadd.f32 %v5604, 0.001143296
    %v5606 = vmul.f32 %v5592, %v5605
    %v5607 = vadd.f32 %v5606, 0.014752088
    %v5608 = vmul.f32 %v5592, %v5607
    %v5609 = vadd.f32 %v5608, 0.112945676
    %v5610 = vmul.f32 %v5592, %v5609
    %v5611 = vadd.f32 %v5610, 0.4994258
    %v5612 = vmul.f32 %v5592, %v5611
    %v5613 = vadd.f32 %v5612, 1.0
    %v5614 = vrcp.pop %v5613
    %v5615 = vmul.f32 %v5613, %v5614
    %v5616 = vsub.f32 1.0, %v5615
    %v5617 = vmul.f32 %v5614, %v5616
    %v5618 = vadd.f32 %v5614, %v5617
    %vm5619 = vweird.f32 %v5613
    %vm5620 = vweird.f32 %v5614
    %vm5621 = vmor %vm5619, %vm5620
    %v5622 = vsel %vm5621, %v5614, %v5618
    %v5623 = vand.u32 2147483647, %v5613
    %vm5624 = vcmp.eq.f32.partialorder %v5623, 8.507059e+37
    %v5625 = vand.u32 %v5613, 2147483648
    %v5626 = vor.u32 1.1754944e-38, %v5625
    %v5627 = vsel %vm5624, %v5626, %v5622
    %v5628 = vmul.f32 %v5603, %v5627
    %v5629 = vmin.f32 %v5628, 1.0
    %v5630 = vmax.f32 %v5629, -1.0
    %v5631 = vmul.f32 %v5342, %v5342
    %v5632 = vmin.f32 16.0, %v5631
    %v5633 = vmul.f32 %v5632, 2.1237322e-06
    %v5634 = vadd.f32 %v5633, 0.00028619796
    %v5635 = vmul.f32 %v5632, %v5634
    %v5636 = vadd.f32 %v5635, 0.0036580483
    %v5637 = vmul.f32 %v5632, %v5636
    %v5638 = vadd.f32 %v5637, 0.05243302
    %v5639 = vmul.f32 %v5632, %v5638
    %v5640 = vadd.f32 %v5639, 0.18741608
    %v5641 = vmul.f32 %v5632, %v5640
    %v5642 = vadd.f32 %v5641, 1.1283791
    %v5643 = vmul.f32 %v5342, %v5642
    %v5644 = vmul.f32 %v5632, 3.8918573e-05
    %v5645 = vadd.f32 %v5644, 0.001143296
    %v5646 = vmul.f32 %v5632, %v5645
    %v5647 = vadd.f32 %v5646, 0.014752088
    %v5648 = vmul.f32 %v5632, %v5647
    %v5649 = vadd.f32 %v5648, 0.112945676
    %v5650 = vmul.f32 %v5632, %v5649
    %v5651 = vadd.f32 %v5650, 0.4994258
    %v5652 = vmul.f32 %v5632, %v5651
    %v5653 = vadd.f32 %v5652, 1.0
    %v5654 = vrcp.pop %v5653
    %v5655 = vmul.f32 %v5653, %v5654
    %v5656 = vsub.f32 1.0, %v5655
    %v5657 = vmul.f32 %v5654, %v5656
    %v5658 = vadd.f32 %v5654, %v5657
    %vm5659 = vweird.f32 %v5653
    %vm5660 = vweird.f32 %v5654
    %vm5661 = vmor %vm5659, %vm5660
    %v5662 = vsel %vm5661, %v5654, %v5658
    %v5663 = vand.u32 2147483647, %v5653
    %vm5664 = vcmp.eq.f32.partialorder %v5663, 8.507059e+37
    %v5665 = vand.u32 %v5653, 2147483648
    %v5666 = vor.u32 1.1754944e-38, %v5665
    %v5667 = vsel %vm5664, %v5666, %v5662
    %v5668 = vmul.f32 %v5643, %v5667
    %v5669 = vmin.f32 %v5668, 1.0
    %v5670 = vmax.f32 %v5669, -1.0
    %v5671 = vmul.f32 %v5343, %v5343
    %v5672 = vmin.f32 16.0, %v5671
    %v5673 = vmul.f32 %v5672, 2.1237322e-06
    %v5674 = vadd.f32 %v5673, 0.00028619796
    %v5675 = vmul.f32 %v5672, %v5674
    %v5676 = vadd.f32 %v5675, 0.0036580483
    %v5677 = vmul.f32 %v5672, %v5676
    %v5678 = vadd.f32 %v5677, 0.05243302
    %v5679 = vmul.f32 %v5672, %v5678
    %v5680 = vadd.f32 %v5679, 0.18741608
    %v5681 = vmul.f32 %v5672, %v5680
    %v5682 = vadd.f32 %v5681, 1.1283791
    %v5683 = vmul.f32 %v5343, %v5682
    %v5684 = vmul.f32 %v5672, 3.8918573e-05
    %v5685 = vadd.f32 %v5684, 0.001143296
    %v5686 = vmul.f32 %v5672, %v5685
    %v5687 = vadd.f32 %v5686, 0.014752088
    %v5688 = vmul.f32 %v5672, %v5687
    %v5689 = vadd.f32 %v5688, 0.112945676
    %v5690 = vmul.f32 %v5672, %v5689
    %v5691 = vadd.f32 %v5690, 0.4994258
    %v5692 = vmul.f32 %v5672, %v5691
    %v5693 = vadd.f32 %v5692, 1.0
    %v5694 = vrcp.pop %v5693
    %v5695 = vmul.f32 %v5693, %v5694
    %v5696 = vsub.f32 1.0, %v5695
    %v5697 = vmul.f32 %v5694, %v5696
    %v5698 = vadd.f32 %v5694, %v5697
    %vm5699 = vweird.f32 %v5693
    %vm5700 = vweird.f32 %v5694
    %vm5701 = vmor %vm5699, %vm5700
    %v5702 = vsel %vm5701, %v5694, %v5698
    %v5703 = vand.u32 2147483647, %v5693
    %vm5704 = vcmp.eq.f32.partialorder %v5703, 8.507059e+37
    %v5705 = vand.u32 %v5693, 2147483648
    %v5706 = vor.u32 1.1754944e-38, %v5705
    %v5707 = vsel %vm5704, %v5706, %v5702
    %v5708 = vmul.f32 %v5683, %v5707
    %v5709 = vmin.f32 %v5708, 1.0
    %v5710 = vmax.f32 %v5709, -1.0
    %v5711 = vmul.f32 %v5344, %v5344
    %v5712 = vmin.f32 16.0, %v5711
    %v5713 = vmul.f32 %v5712, 2.1237322e-06
    %v5714 = vadd.f32 %v5713, 0.00028619796
    %v5715 = vmul.f32 %v5712, %v5714
    %v5716 = vadd.f32 %v5715, 0.0036580483
    %v5717 = vmul.f32 %v5712, %v5716
    %v5718 = vadd.f32 %v5717, 0.05243302
    %v5719 = vmul.f32 %v5712, %v5718
    %v5720 = vadd.f32 %v5719, 0.18741608
    %v5721 = vmul.f32 %v5712, %v5720
    %v5722 = vadd.f32 %v5721, 1.1283791
    %v5723 = vmul.f32 %v5344, %v5722
    %v5724 = vmul.f32 %v5712, 3.8918573e-05
    %v5725 = vadd.f32 %v5724, 0.001143296
    %v5726 = vmul.f32 %v5712, %v5725
    %v5727 = vadd.f32 %v5726, 0.014752088
    %v5728 = vmul.f32 %v5712, %v5727
    %v5729 = vadd.f32 %v5728, 0.112945676
    %v5730 = vmul.f32 %v5712, %v5729
    %v5731 = vadd.f32 %v5730, 0.4994258
    %v5732 = vmul.f32 %v5712, %v5731
    %v5733 = vadd.f32 %v5732, 1.0
    %v5734 = vrcp.pop %v5733
    %v5735 = vmul.f32 %v5733, %v5734
    %v5736 = vsub.f32 1.0, %v5735
    %v5737 = vmul.f32 %v5734, %v5736
    %v5738 = vadd.f32 %v5734, %v5737
    %vm5739 = vweird.f32 %v5733
    %vm5740 = vweird.f32 %v5734
    %vm5741 = vmor %vm5739, %vm5740
    %v5742 = vsel %vm5741, %v5734, %v5738
    %v5743 = vand.u32 2147483647, %v5733
    %vm5744 = vcmp.eq.f32.partialorder %v5743, 8.507059e+37
    %v5745 = vand.u32 %v5733, 2147483648
    %v5746 = vor.u32 1.1754944e-38, %v5745
    %v5747 = vsel %vm5744, %v5746, %v5742
    %v5748 = vmul.f32 %v5723, %v5747
    %v5749 = vmin.f32 %v5748, 1.0
    %v5750 = vmax.f32 %v5749, -1.0
    %v5751 = vmul.f32 %v5345, %v5345
    %v5752 = vmin.f32 16.0, %v5751
    %v5753 = vmul.f32 %v5752, 2.1237322e-06
    %v5754 = vadd.f32 %v5753, 0.00028619796
    %v5755 = vmul.f32 %v5752, %v5754
    %v5756 = vadd.f32 %v5755, 0.0036580483
    %v5757 = vmul.f32 %v5752, %v5756
    %v5758 = vadd.f32 %v5757, 0.05243302
    %v5759 = vmul.f32 %v5752, %v5758
    %v5760 = vadd.f32 %v5759, 0.18741608
    %v5761 = vmul.f32 %v5752, %v5760
    %v5762 = vadd.f32 %v5761, 1.1283791
    %v5763 = vmul.f32 %v5345, %v5762
    %v5764 = vmul.f32 %v5752, 3.8918573e-05
    %v5765 = vadd.f32 %v5764, 0.001143296
    %v5766 = vmul.f32 %v5752, %v5765
    %v5767 = vadd.f32 %v5766, 0.014752088
    %v5768 = vmul.f32 %v5752, %v5767
    %v5769 = vadd.f32 %v5768, 0.112945676
    %v5770 = vmul.f32 %v5752, %v5769
    %v5771 = vadd.f32 %v5770, 0.4994258
    %v5772 = vmul.f32 %v5752, %v5771
    %v5773 = vadd.f32 %v5772, 1.0
    %v5774 = vrcp.pop %v5773
    %v5775 = vmul.f32 %v5773, %v5774
    %v5776 = vsub.f32 1.0, %v5775
    %v5777 = vmul.f32 %v5774, %v5776
    %v5778 = vadd.f32 %v5774, %v5777
    %vm5779 = vweird.f32 %v5773
    %vm5780 = vweird.f32 %v5774
    %vm5781 = vmor %vm5779, %vm5780
    %v5782 = vsel %vm5781, %v5774, %v5778
    %v5783 = vand.u32 2147483647, %v5773
    %vm5784 = vcmp.eq.f32.partialorder %v5783, 8.507059e+37
    %v5785 = vand.u32 %v5773, 2147483648
    %v5786 = vor.u32 1.1754944e-38, %v5785
    %v5787 = vsel %vm5784, %v5786, %v5782
    %v5788 = vmul.f32 %v5763, %v5787
    %v5789 = vmin.f32 %v5788, 1.0
    %v5790 = vmax.f32 %v5789, -1.0
    %v5791 = vmul.f32 %v5346, %v5346
    %v5792 = vmin.f32 16.0, %v5791
    %v5793 = vmul.f32 %v5792, 2.1237322e-06
    %v5794 = vadd.f32 %v5793, 0.00028619796
    %v5795 = vmul.f32 %v5792, %v5794
    %v5796 = vadd.f32 %v5795, 0.0036580483
    %v5797 = vmul.f32 %v5792, %v5796
    %v5798 = vadd.f32 %v5797, 0.05243302
    %v5799 = vmul.f32 %v5792, %v5798
    %v5800 = vadd.f32 %v5799, 0.18741608
    %v5801 = vmul.f32 %v5792, %v5800
    %v5802 = vadd.f32 %v5801, 1.1283791
    %v5803 = vmul.f32 %v5346, %v5802
    %v5804 = vmul.f32 %v5792, 3.8918573e-05
    %v5805 = vadd.f32 %v5804, 0.001143296
    %v5806 = vmul.f32 %v5792, %v5805
    %v5807 = vadd.f32 %v5806, 0.014752088
    %v5808 = vmul.f32 %v5792, %v5807
    %v5809 = vadd.f32 %v5808, 0.112945676
    %v5810 = vmul.f32 %v5792, %v5809
    %v5811 = vadd.f32 %v5810, 0.4994258
    %v5812 = vmul.f32 %v5792, %v5811
    %v5813 = vadd.f32 %v5812, 1.0
    %v5814 = vrcp.pop %v5813
    %v5815 = vmul.f32 %v5813, %v5814
    %v5816 = vsub.f32 1.0, %v5815
    %v5817 = vmul.f32 %v5814, %v5816
    %v5818 = vadd.f32 %v5814, %v5817
    %vm5819 = vweird.f32 %v5813
    %vm5820 = vweird.f32 %v5814
    %vm5821 = vmor %vm5819, %vm5820
    %v5822 = vsel %vm5821, %v5814, %v5818
    %v5823 = vand.u32 2147483647, %v5813
    %vm5824 = vcmp.eq.f32.partialorder %v5823, 8.507059e+37
    %v5825 = vand.u32 %v5813, 2147483648
    %v5826 = vor.u32 1.1754944e-38, %v5825
    %v5827 = vsel %vm5824, %v5826, %v5822
    %v5828 = vmul.f32 %v5803, %v5827
    %v5829 = vmin.f32 %v5828, 1.0
    %v5830 = vmax.f32 %v5829, -1.0
    %v5831 = vmul.f32 %v5347, %v5347
    %v5832 = vmin.f32 16.0, %v5831
    %v5833 = vmul.f32 %v5832, 2.1237322e-06
    %v5834 = vadd.f32 %v5833, 0.00028619796
    %v5835 = vmul.f32 %v5832, %v5834
    %v5836 = vadd.f32 %v5835, 0.0036580483
    %v5837 = vmul.f32 %v5832, %v5836
    %v5838 = vadd.f32 %v5837, 0.05243302
    %v5839 = vmul.f32 %v5832, %v5838
    %v5840 = vadd.f32 %v5839, 0.18741608
    %v5841 = vmul.f32 %v5832, %v5840
    %v5842 = vadd.f32 %v5841, 1.1283791
    %v5843 = vmul.f32 %v5347, %v5842
    %v5844 = vmul.f32 %v5832, 3.8918573e-05
    %v5845 = vadd.f32 %v5844, 0.001143296
    %v5846 = vmul.f32 %v5832, %v5845
    %v5847 = vadd.f32 %v5846, 0.014752088
    %v5848 = vmul.f32 %v5832, %v5847
    %v5849 = vadd.f32 %v5848, 0.112945676
    %v5850 = vmul.f32 %v5832, %v5849
    %v5851 = vadd.f32 %v5850, 0.4994258
    %v5852 = vmul.f32 %v5832, %v5851
    %v5853 = vadd.f32 %v5852, 1.0
    %v5854 = vrcp.pop %v5853
    %v5855 = vmul.f32 %v5853, %v5854
    %v5856 = vsub.f32 1.0, %v5855
    %v5857 = vmul.f32 %v5854, %v5856
    %v5858 = vadd.f32 %v5854, %v5857
    %vm5859 = vweird.f32 %v5853
    %vm5860 = vweird.f32 %v5854
    %vm5861 = vmor %vm5859, %vm5860
    %v5862 = vsel %vm5861, %v5854, %v5858
    %v5863 = vand.u32 2147483647, %v5853
    %vm5864 = vcmp.eq.f32.partialorder %v5863, 8.507059e+37
    %v5865 = vand.u32 %v5853, 2147483648
    %v5866 = vor.u32 1.1754944e-38, %v5865
    %v5867 = vsel %vm5864, %v5866, %v5862
    %v5868 = vmul.f32 %v5843, %v5867
    %v5869 = vmin.f32 %v5868, 1.0
    %v5870 = vmax.f32 %v5869, -1.0
    %v5871 = vmul.f32 %v5348, %v5348
    %v5872 = vmin.f32 16.0, %v5871
    %v5873 = vmul.f32 %v5872, 2.1237322e-06
    %v5874 = vadd.f32 %v5873, 0.00028619796
    %v5875 = vmul.f32 %v5872, %v5874
    %v5876 = vadd.f32 %v5875, 0.0036580483
    %v5877 = vmul.f32 %v5872, %v5876
    %v5878 = vadd.f32 %v5877, 0.05243302
    %v5879 = vmul.f32 %v5872, %v5878
    %v5880 = vadd.f32 %v5879, 0.18741608
    %v5881 = vmul.f32 %v5872, %v5880
    %v5882 = vadd.f32 %v5881, 1.1283791
    %v5883 = vmul.f32 %v5348, %v5882
    %v5884 = vmul.f32 %v5872, 3.8918573e-05
    %v5885 = vadd.f32 %v5884, 0.001143296
    %v5886 = vmul.f32 %v5872, %v5885
    %v5887 = vadd.f32 %v5886, 0.014752088
    %v5888 = vmul.f32 %v5872, %v5887
    %v5889 = vadd.f32 %v5888, 0.112945676
    %v5890 = vmul.f32 %v5872, %v5889
    %v5891 = vadd.f32 %v5890, 0.4994258
    %v5892 = vmul.f32 %v5872, %v5891
    %v5893 = vadd.f32 %v5892, 1.0
    %v5894 = vrcp.pop %v5893
    %v5895 = vmul.f32 %v5893, %v5894
    %v5896 = vsub.f32 1.0, %v5895
    %v5897 = vmul.f32 %v5894, %v5896
    %v5898 = vadd.f32 %v5894, %v5897
    %vm5899 = vweird.f32 %v5893
    %vm5900 = vweird.f32 %v5894
    %vm5901 = vmor %vm5899, %vm5900
    %v5902 = vsel %vm5901, %v5894, %v5898
    %v5903 = vand.u32 2147483647, %v5893
    %vm5904 = vcmp.eq.f32.partialorder %v5903, 8.507059e+37
    %v5905 = vand.u32 %v5893, 2147483648
    %v5906 = vor.u32 1.1754944e-38, %v5905
    %v5907 = vsel %vm5904, %v5906, %v5902
    %v5908 = vmul.f32 %v5883, %v5907
    %v5909 = vmin.f32 %v5908, 1.0
    %v5910 = vmax.f32 %v5909, -1.0
    %v5911 = vmul.f32 %v5349, %v5349
    %v5912 = vmin.f32 16.0, %v5911
    %v5913 = vmul.f32 %v5912, 2.1237322e-06
    %v5914 = vadd.f32 %v5913, 0.00028619796
    %v5915 = vmul.f32 %v5912, %v5914
    %v5916 = vadd.f32 %v5915, 0.0036580483
    %v5917 = vmul.f32 %v5912, %v5916
    %v5918 = vadd.f32 %v5917, 0.05243302
    %v5919 = vmul.f32 %v5912, %v5918
    %v5920 = vadd.f32 %v5919, 0.18741608
    %v5921 = vmul.f32 %v5912, %v5920
    %v5922 = vadd.f32 %v5921, 1.1283791
    %v5923 = vmul.f32 %v5349, %v5922
    %v5924 = vmul.f32 %v5912, 3.8918573e-05
    %v5925 = vadd.f32 %v5924, 0.001143296
    %v5926 = vmul.f32 %v5912, %v5925
    %v5927 = vadd.f32 %v5926, 0.014752088
    %v5928 = vmul.f32 %v5912, %v5927
    %v5929 = vadd.f32 %v5928, 0.112945676
    %v5930 = vmul.f32 %v5912, %v5929
    %v5931 = vadd.f32 %v5930, 0.4994258
    %v5932 = vmul.f32 %v5912, %v5931
    %v5933 = vadd.f32 %v5932, 1.0
    %v5934 = vrcp.pop %v5933
    %v5935 = vmul.f32 %v5933, %v5934
    %v5936 = vsub.f32 1.0, %v5935
    %v5937 = vmul.f32 %v5934, %v5936
    %v5938 = vadd.f32 %v5934, %v5937
    %vm5939 = vweird.f32 %v5933
    %vm5940 = vweird.f32 %v5934
    %vm5941 = vmor %vm5939, %vm5940
    %v5942 = vsel %vm5941, %v5934, %v5938
    %v5943 = vand.u32 2147483647, %v5933
    %vm5944 = vcmp.eq.f32.partialorder %v5943, 8.507059e+37
    %v5945 = vand.u32 %v5933, 2147483648
    %v5946 = vor.u32 1.1754944e-38, %v5945
    %v5947 = vsel %vm5944, %v5946, %v5942
    %v5948 = vmul.f32 %v5923, %v5947
    %v5949 = vmin.f32 %v5948, 1.0
    %v5950 = vmax.f32 %v5949, -1.0
    %v5951 = vmul.f32 %v5350, %v5350
    %v5952 = vmin.f32 16.0, %v5951
    %v5953 = vmul.f32 %v5952, 2.1237322e-06
    %v5954 = vadd.f32 %v5953, 0.00028619796
    %v5955 = vmul.f32 %v5952, %v5954
    %v5956 = vadd.f32 %v5955, 0.0036580483
    %v5957 = vmul.f32 %v5952, %v5956
    %v5958 = vadd.f32 %v5957, 0.05243302
    %v5959 = vmul.f32 %v5952, %v5958
    %v5960 = vadd.f32 %v5959, 0.18741608
    %v5961 = vmul.f32 %v5952, %v5960
    %v5962 = vadd.f32 %v5961, 1.1283791
    %v5963 = vmul.f32 %v5350, %v5962
    %v5964 = vmul.f32 %v5952, 3.8918573e-05
    %v5965 = vadd.f32 %v5964, 0.001143296
    %v5966 = vmul.f32 %v5952, %v5965
    %v5967 = vadd.f32 %v5966, 0.014752088
    %v5968 = vmul.f32 %v5952, %v5967
    %v5969 = vadd.f32 %v5968, 0.112945676
    %v5970 = vmul.f32 %v5952, %v5969
    %v5971 = vadd.f32 %v5970, 0.4994258
    %v5972 = vmul.f32 %v5952, %v5971
    %v5973 = vadd.f32 %v5972, 1.0
    %v5974 = vrcp.pop %v5973
    %v5975 = vmul.f32 %v5973, %v5974
    %v5976 = vsub.f32 1.0, %v5975
    %v5977 = vmul.f32 %v5974, %v5976
    %v5978 = vadd.f32 %v5974, %v5977
    %vm5979 = vweird.f32 %v5973
    %vm5980 = vweird.f32 %v5974
    %vm5981 = vmor %vm5979, %vm5980
    %v5982 = vsel %vm5981, %v5974, %v5978
    %v5983 = vand.u32 2147483647, %v5973
    %vm5984 = vcmp.eq.f32.partialorder %v5983, 8.507059e+37
    %v5985 = vand.u32 %v5973, 2147483648
    %v5986 = vor.u32 1.1754944e-38, %v5985
    %v5987 = vsel %vm5984, %v5986, %v5982
    %v5988 = vmul.f32 %v5963, %v5987
    %v5989 = vmin.f32 %v5988, 1.0
    %v5990 = vmax.f32 %v5989, -1.0
    %v5991 = vadd.f32 %v5390, 1.0
    %v5992 = vadd.f32 %v5430, 1.0
    %v5993 = vadd.f32 %v5470, 1.0
    %v5994 = vadd.f32 %v5510, 1.0
    %v5995 = vadd.f32 %v5550, 1.0
    %v5996 = vadd.f32 %v5590, 1.0
    %v5997 = vadd.f32 %v5630, 1.0
    %v5998 = vadd.f32 %v5670, 1.0
    %v5999 = vadd.f32 %v5710, 1.0
    %v6000 = vadd.f32 %v5750, 1.0
    %v6001 = vadd.f32 %v5790, 1.0
    %v6002 = vadd.f32 %v5830, 1.0
    %v6003 = vadd.f32 %v5870, 1.0
    %v6004 = vadd.f32 %v5910, 1.0
    %v6005 = vadd.f32 %v5950, 1.0
    %v6006 = vadd.f32 %v5990, 1.0
    %v6007 = vmul.f32 %v5319, %v5991
    %v6008 = vmul.f32 %v5320, %v5992
    %v6009 = vmul.f32 %v5321, %v5993
    %v6010 = vmul.f32 %v5322, %v5994
    %v6011 = vmul.f32 %v5323, %v5995
    %v6012 = vmul.f32 %v5324, %v5996
    %v6013 = vmul.f32 %v5325, %v5997
    %v6014 = vmul.f32 %v5326, %v5998
    %v6015 = vmul.f32 %v5327, %v5999
    %v6016 = vmul.f32 %v5328, %v6000
    %v6017 = vmul.f32 %v5329, %v6001
    %v6018 = vmul.f32 %v5330, %v6002
    %v6019 = vmul.f32 %v5331, %v6003
    %v6020 = vmul.f32 %v5332, %v6004
    %v6021 = vmul.f32 %v5333, %v6005
    %v6022 = vmul.f32 %v5334, %v6006
    %v6023 = vld [vmem:[#allocation5] sm:$0xf]
    %v6024 = vld [vmem:[#allocation5 + $0x4] sm:$0xf]
    %v6025 = vld [vmem:[#allocation5 + $0x8] sm:$0xf]
    %v6026 = vld [vmem:[#allocation5 + $0xc] sm:$0xf]
    %v6027 = vld [vmem:[#allocation5 + $0x10] sm:$0xf]
    %v6028 = vld [vmem:[#allocation5 + $0x14] sm:$0xf]
    %v6029 = vld [vmem:[#allocation5 + $0x18] sm:$0xf]
    %v6030 = vld [vmem:[#allocation5 + $0x1c] sm:$0xf]
    %v6031 = vld [vmem:[#allocation5 + $0x20] sm:$0xf]
    %v6032 = vld [vmem:[#allocation5 + $0x24] sm:$0xf]
    %v6033 = vld [vmem:[#allocation5 + $0x28] sm:$0xf]
    %v6034 = vld [vmem:[#allocation5 + $0x2c] sm:$0xf]
    %v6035 = vld [vmem:[#allocation5 + $0x30] sm:$0xf]
    %v6036 = vld [vmem:[#allocation5 + $0x34] sm:$0xf]
    %v6037 = vld [vmem:[#allocation5 + $0x38] sm:$0xf]
    %v6038 = vld [vmem:[#allocation5 + $0x3c] sm:$0xf]
    %v6039 = vpack.c.bf16 %v6008, %v6007
    %v6040 = vpack.c.bf16 %v6010, %v6009
    %v6041 = vpack.c.bf16 %v6012, %v6011
    %v6042 = vpack.c.bf16 %v6014, %v6013
    %v6043 = vpack.c.bf16 %v6016, %v6015
    %v6044 = vpack.c.bf16 %v6018, %v6017
    %v6045 = vpack.c.bf16 %v6020, %v6019
    %v6046 = vpack.c.bf16 %v6022, %v6021
    %v6047 = vperm.slane %v67, 0
    %v6064 = vunpack.c.l.b16 %v6023
    %v6065 = vunpack.c.l.b16 %v6024
    %v6066 = vunpack.c.l.b16 %v6025
    %v6067 = vunpack.c.l.b16 %v6026
    %v6068 = vunpack.c.l.b16 %v6027
    %v6069 = vunpack.c.l.b16 %v6028
    %v6070 = vunpack.c.l.b16 %v6029
    %v6071 = vunpack.c.l.b16 %v6030
    %v6072 = vunpack.c.l.b16 %v6031
    %v6073 = vunpack.c.l.b16 %v6032
    %v6074 = vunpack.c.l.b16 %v6033
    %v6075 = vunpack.c.l.b16 %v6034
    %v6076 = vunpack.c.l.b16 %v6035
    %v6077 = vunpack.c.l.b16 %v6036
    %v6078 = vunpack.c.l.b16 %v6037
    %v6079 = vunpack.c.l.b16 %v6038
    %v6080 = vpack.c.b16 %v6065, %v6064
    %v6081 = vpack.c.b16 %v6067, %v6066
    %v6082 = vpack.c.b16 %v6069, %v6068
    %v6083 = vpack.c.b16 %v6071, %v6070
    %v6084 = vpack.c.b16 %v6073, %v6072
    %v6085 = vpack.c.b16 %v6075, %v6074
    %v6086 = vpack.c.b16 %v6077, %v6076
    %v6087 = vpack.c.b16 %v6079, %v6078
    %6096 = vmatpush.bf16.msra.mxu0 %v6087
    %6097 = vmatpush.bf16.msra.mxu0 %v6086
    %6098 = vmatpush.bf16.msra.mxu0 %v6085
    %6099 = vmatpush.bf16.msra.mxu0 %v6084
    %6100 = vmatpush.bf16.msra.mxu0 %v6083
    %6101 = vmatpush.bf16.msra.mxu0 %v6082
    %6102 = vmatpush.bf16.msra.mxu0 %v6081
    %6103 = vmatpush.bf16.msra.mxu0 %v6080
    %6104 = vmatmul.bf16.gmra.mxu0 %v6039
    %v6105 = vpop.f32.mrf.mxu0
    %v6106 = vadd.f32 %v6047, %v6105
    %v6107 = vpop.f32.mrf.mxu0
    %v6108 = vadd.f32 %v6047, %v6107
    %6109 = vmatmul.bf16.gmra.mxu0 %v6040
    %v6110 = vpop.f32.mrf.mxu0
    %v6111 = vadd.f32 %v6047, %v6110
    %v6112 = vpop.f32.mrf.mxu0
    %v6113 = vadd.f32 %v6047, %v6112
    %6114 = vmatmul.bf16.gmra.mxu0 %v6041
    %v6115 = vpop.f32.mrf.mxu0
    %v6116 = vadd.f32 %v6047, %v6115
    %v6117 = vpop.f32.mrf.mxu0
    %v6118 = vadd.f32 %v6047, %v6117
    %6119 = vmatmul.bf16.gmra.mxu0 %v6042
    %v6120 = vpop.f32.mrf.mxu0
    %v6121 = vadd.f32 %v6047, %v6120
    %v6122 = vpop.f32.mrf.mxu0
    %v6123 = vadd.f32 %v6047, %v6122
    %6124 = vmatmul.bf16.gmra.mxu0 %v6043
    %v6125 = vpop.f32.mrf.mxu0
    %v6126 = vadd.f32 %v6047, %v6125
    %v6127 = vpop.f32.mrf.mxu0
    %v6128 = vadd.f32 %v6047, %v6127
    %6129 = vmatmul.bf16.gmra.mxu0 %v6044
    %v6130 = vpop.f32.mrf.mxu0
    %v6131 = vadd.f32 %v6047, %v6130
    %v6132 = vpop.f32.mrf.mxu0
    %v6133 = vadd.f32 %v6047, %v6132
    %6134 = vmatmul.bf16.gmra.mxu0 %v6045
    %v6135 = vpop.f32.mrf.mxu0
    %v6136 = vadd.f32 %v6047, %v6135
    %v6137 = vpop.f32.mrf.mxu0
    %v6138 = vadd.f32 %v6047, %v6137
    %6139 = vmatmul.bf16.gmra.mxu0 %v6046
    %v6140 = vpop.f32.mrf.mxu0
    %v6141 = vadd.f32 %v6047, %v6140
    %v6142 = vpop.f32.mrf.mxu0
    %v6143 = vadd.f32 %v6047, %v6142
    %6144 = vdwg.mxu0
    %v6145 = vadd.f32 %v5165, %v6106
    %v6146 = vadd.f32 %v5166, %v6108
    %v6147 = vadd.f32 %v5167, %v6111
    %v6148 = vadd.f32 %v5168, %v6113
    %v6149 = vadd.f32 %v5169, %v6116
    %v6150 = vadd.f32 %v5170, %v6118
    %v6151 = vadd.f32 %v5171, %v6121
    %v6152 = vadd.f32 %v5172, %v6123
    %v6153 = vadd.f32 %v5173, %v6126
    %v6154 = vadd.f32 %v5174, %v6128
    %v6155 = vadd.f32 %v5175, %v6131
    %v6156 = vadd.f32 %v5176, %v6133
    %v6157 = vadd.f32 %v5177, %v6136
    %v6158 = vadd.f32 %v5178, %v6138
    %v6159 = vadd.f32 %v5179, %v6141
    %v6160 = vadd.f32 %v5180, %v6143
    %6161 = vadd.xlane.f32.xlu0 %v6145
    %v6162 = vpop.xlane.xlu0 %6161
    %6163 = vadd.xlane.f32.xlu0 %v6146
    %v6164 = vpop.xlane.xlu0 %6163
    %6165 = vadd.xlane.f32.xlu0 %v6147
    %v6166 = vpop.xlane.xlu0 %6165
    %6167 = vadd.xlane.f32.xlu0 %v6148
    %v6168 = vpop.xlane.xlu0 %6167
    %6169 = vadd.xlane.f32.xlu0 %v6149
    %v6170 = vpop.xlane.xlu0 %6169
    %6171 = vadd.xlane.f32.xlu0 %v6150
    %v6172 = vpop.xlane.xlu0 %6171
    %6173 = vadd.xlane.f32.xlu0 %v6151
    %v6174 = vpop.xlane.xlu0 %6173
    %6175 = vadd.xlane.f32.xlu0 %v6152
    %v6176 = vpop.xlane.xlu0 %6175
    %6177 = vadd.xlane.f32.xlu0 %v6153
    %v6178 = vpop.xlane.xlu0 %6177
    %6179 = vadd.xlane.f32.xlu0 %v6154
    %v6180 = vpop.xlane.xlu0 %6179
    %6181 = vadd.xlane.f32.xlu0 %v6155
    %v6182 = vpop.xlane.xlu0 %6181
    %6183 = vadd.xlane.f32.xlu0 %v6156
    %v6184 = vpop.xlane.xlu0 %6183
    %6185 = vadd.xlane.f32.xlu0 %v6157
    %v6186 = vpop.xlane.xlu0 %6185
    %6187 = vadd.xlane.f32.xlu0 %v6158
    %v6188 = vpop.xlane.xlu0 %6187
    %6189 = vadd.xlane.f32.xlu0 %v6159
    %v6190 = vpop.xlane.xlu0 %6189
    %6191 = vadd.xlane.f32.xlu0 %v6160
    %v6192 = vpop.xlane.xlu0 %6191
    %v6193 = vmul.f32 %v6145, %v6145
    %v6194 = vmul.f32 %v6146, %v6146
    %v6195 = vmul.f32 %v6147, %v6147
    %v6196 = vmul.f32 %v6148, %v6148
    %v6197 = vmul.f32 %v6149, %v6149
    %v6198 = vmul.f32 %v6150, %v6150
    %v6199 = vmul.f32 %v6151, %v6151
    %v6200 = vmul.f32 %v6152, %v6152
    %v6201 = vmul.f32 %v6153, %v6153
    %v6202 = vmul.f32 %v6154, %v6154
    %v6203 = vmul.f32 %v6155, %v6155
    %v6204 = vmul.f32 %v6156, %v6156
    %v6205 = vmul.f32 %v6157, %v6157
    %v6206 = vmul.f32 %v6158, %v6158
    %v6207 = vmul.f32 %v6159, %v6159
    %v6208 = vmul.f32 %v6160, %v6160
    %6209 = vadd.xlane.f32.xlu0 %v6193
    %v6210 = vpop.xlane.xlu0 %6209
    %6211 = vadd.xlane.f32.xlu0 %v6194
    %v6212 = vpop.xlane.xlu0 %6211
    %6213 = vadd.xlane.f32.xlu0 %v6195
    %v6214 = vpop.xlane.xlu0 %6213
    %6215 = vadd.xlane.f32.xlu0 %v6196
    %v6216 = vpop.xlane.xlu0 %6215
    %6217 = vadd.xlane.f32.xlu0 %v6197
    %v6218 = vpop.xlane.xlu0 %6217
    %6219 = vadd.xlane.f32.xlu0 %v6198
    %v6220 = vpop.xlane.xlu0 %6219
    %6221 = vadd.xlane.f32.xlu0 %v6199
    %v6222 = vpop.xlane.xlu0 %6221
    %6223 = vadd.xlane.f32.xlu0 %v6200
    %v6224 = vpop.xlane.xlu0 %6223
    %6225 = vadd.xlane.f32.xlu0 %v6201
    %v6226 = vpop.xlane.xlu0 %6225
    %6227 = vadd.xlane.f32.xlu0 %v6202
    %v6228 = vpop.xlane.xlu0 %6227
    %6229 = vadd.xlane.f32.xlu0 %v6203
    %v6230 = vpop.xlane.xlu0 %6229
    %6231 = vadd.xlane.f32.xlu0 %v6204
    %v6232 = vpop.xlane.xlu0 %6231
    %6233 = vadd.xlane.f32.xlu0 %v6205
    %v6234 = vpop.xlane.xlu0 %6233
    %6235 = vadd.xlane.f32.xlu0 %v6206
    %v6236 = vpop.xlane.xlu0 %6235
    %6237 = vadd.xlane.f32.xlu0 %v6207
    %v6238 = vpop.xlane.xlu0 %6237
    %6239 = vadd.xlane.f32.xlu0 %v6208
    %v6240 = vpop.xlane.xlu0 %6239
    %v6241 = vmul.f32 %v6162, 0.0078125
    %v6242 = vmul.f32 %v6164, 0.0078125
    %v6243 = vmul.f32 %v6166, 0.0078125
    %v6244 = vmul.f32 %v6168, 0.0078125
    %v6245 = vmul.f32 %v6170, 0.0078125
    %v6246 = vmul.f32 %v6172, 0.0078125
    %v6247 = vmul.f32 %v6174, 0.0078125
    %v6248 = vmul.f32 %v6176, 0.0078125
    %v6249 = vmul.f32 %v6178, 0.0078125
    %v6250 = vmul.f32 %v6180, 0.0078125
    %v6251 = vmul.f32 %v6182, 0.0078125
    %v6252 = vmul.f32 %v6184, 0.0078125
    %v6253 = vmul.f32 %v6186, 0.0078125
    %v6254 = vmul.f32 %v6188, 0.0078125
    %v6255 = vmul.f32 %v6190, 0.0078125
    %v6256 = vmul.f32 %v6192, 0.0078125
    %v6257 = vmul.f32 %v6210, 0.0078125
    %v6258 = vmul.f32 %v6212, 0.0078125
    %v6259 = vmul.f32 %v6214, 0.0078125
    %v6260 = vmul.f32 %v6216, 0.0078125
    %v6261 = vmul.f32 %v6218, 0.0078125
    %v6262 = vmul.f32 %v6220, 0.0078125
    %v6263 = vmul.f32 %v6222, 0.0078125
    %v6264 = vmul.f32 %v6224, 0.0078125
    %v6265 = vmul.f32 %v6226, 0.0078125
    %v6266 = vmul.f32 %v6228, 0.0078125
    %v6267 = vmul.f32 %v6230, 0.0078125
    %v6268 = vmul.f32 %v6232, 0.0078125
    %v6269 = vmul.f32 %v6234, 0.0078125
    %v6270 = vmul.f32 %v6236, 0.0078125
    %v6271 = vmul.f32 %v6238, 0.0078125
    %v6272 = vmul.f32 %v6240, 0.0078125
    %v6273 = vmul.f32 %v6241, %v6241
    %v6274 = vmul.f32 %v6242, %v6242
    %v6275 = vmul.f32 %v6243, %v6243
    %v6276 = vmul.f32 %v6244, %v6244
    %v6277 = vmul.f32 %v6245, %v6245
    %v6278 = vmul.f32 %v6246, %v6246
    %v6279 = vmul.f32 %v6247, %v6247
    %v6280 = vmul.f32 %v6248, %v6248
    %v6281 = vmul.f32 %v6249, %v6249
    %v6282 = vmul.f32 %v6250, %v6250
    %v6283 = vmul.f32 %v6251, %v6251
    %v6284 = vmul.f32 %v6252, %v6252
    %v6285 = vmul.f32 %v6253, %v6253
    %v6286 = vmul.f32 %v6254, %v6254
    %v6287 = vmul.f32 %v6255, %v6255
    %v6288 = vmul.f32 %v6256, %v6256
    %v6289 = vsub.f32 %v6257, %v6273
    %v6290 = vsub.f32 %v6258, %v6274
    %v6291 = vsub.f32 %v6259, %v6275
    %v6292 = vsub.f32 %v6260, %v6276
    %v6293 = vsub.f32 %v6261, %v6277
    %v6294 = vsub.f32 %v6262, %v6278
    %v6295 = vsub.f32 %v6263, %v6279
    %v6296 = vsub.f32 %v6264, %v6280
    %v6297 = vsub.f32 %v6265, %v6281
    %v6298 = vsub.f32 %v6266, %v6282
    %v6299 = vsub.f32 %v6267, %v6283
    %v6300 = vsub.f32 %v6268, %v6284
    %v6301 = vsub.f32 %v6269, %v6285
    %v6302 = vsub.f32 %v6270, %v6286
    %v6303 = vsub.f32 %v6271, %v6287
    %v6304 = vsub.f32 %v6272, %v6288
    %v6305 = vmax.f32 %v6289, 0.0
    %v6306 = vmax.f32 %v6290, 0.0
    %v6307 = vmax.f32 %v6291, 0.0
    %v6308 = vmax.f32 %v6292, 0.0
    %v6309 = vmax.f32 %v6293, 0.0
    %v6310 = vmax.f32 %v6294, 0.0
    %v6311 = vmax.f32 %v6295, 0.0
    %v6312 = vmax.f32 %v6296, 0.0
    %v6313 = vmax.f32 %v6297, 0.0
    %v6314 = vmax.f32 %v6298, 0.0
    %v6315 = vmax.f32 %v6299, 0.0
    %v6316 = vmax.f32 %v6300, 0.0
    %v6317 = vmax.f32 %v6301, 0.0
    %v6318 = vmax.f32 %v6302, 0.0
    %v6319 = vmax.f32 %v6303, 0.0
    %v6320 = vmax.f32 %v6304, 0.0
    %v6321 = vadd.f32 %v6305, 1e-05
    %v6322 = vadd.f32 %v6306, 1e-05
    %v6323 = vadd.f32 %v6307, 1e-05
    %v6324 = vadd.f32 %v6308, 1e-05
    %v6325 = vadd.f32 %v6309, 1e-05
    %v6326 = vadd.f32 %v6310, 1e-05
    %v6327 = vadd.f32 %v6311, 1e-05
    %v6328 = vadd.f32 %v6312, 1e-05
    %v6329 = vadd.f32 %v6313, 1e-05
    %v6330 = vadd.f32 %v6314, 1e-05
    %v6331 = vadd.f32 %v6315, 1e-05
    %v6332 = vadd.f32 %v6316, 1e-05
    %v6333 = vadd.f32 %v6317, 1e-05
    %v6334 = vadd.f32 %v6318, 1e-05
    %v6335 = vadd.f32 %v6319, 1e-05
    %v6336 = vadd.f32 %v6320, 1e-05
    %v6337 = vrsqrt.pop %v6321
    %v6338 = vmul.f32 %v6337, %v6321
    %v6339 = vmul.f32 %v6338, %v6337
    %v6340 = vmul.f32 0.5, %v6339
    %v6341 = vsub.f32 1.5, %v6340
    %v6342 = vmul.f32 %v6337, %v6341
    %vm6343 = vweird.f32 %v6321
    %vm6344 = vweird.f32 %v6337
    %vm6345 = vmor %vm6343, %vm6344
    %v6346 = vsel %vm6345, %v6337, %v6342
    %v6347 = vrsqrt.pop %v6322
    %v6348 = vmul.f32 %v6347, %v6322
    %v6349 = vmul.f32 %v6348, %v6347
    %v6350 = vmul.f32 0.5, %v6349
    %v6351 = vsub.f32 1.5, %v6350
    %v6352 = vmul.f32 %v6347, %v6351
    %vm6353 = vweird.f32 %v6322
    %vm6354 = vweird.f32 %v6347
    %vm6355 = vmor %vm6353, %vm6354
    %v6356 = vsel %vm6355, %v6347, %v6352
    %v6357 = vrsqrt.pop %v6323
    %v6358 = vmul.f32 %v6357, %v6323
    %v6359 = vmul.f32 %v6358, %v6357
    %v6360 = vmul.f32 0.5, %v6359
    %v6361 = vsub.f32 1.5, %v6360
    %v6362 = vmul.f32 %v6357, %v6361
    %vm6363 = vweird.f32 %v6323
    %vm6364 = vweird.f32 %v6357
    %vm6365 = vmor %vm6363, %vm6364
    %v6366 = vsel %vm6365, %v6357, %v6362
    %v6367 = vrsqrt.pop %v6324
    %v6368 = vmul.f32 %v6367, %v6324
    %v6369 = vmul.f32 %v6368, %v6367
    %v6370 = vmul.f32 0.5, %v6369
    %v6371 = vsub.f32 1.5, %v6370
    %v6372 = vmul.f32 %v6367, %v6371
    %vm6373 = vweird.f32 %v6324
    %vm6374 = vweird.f32 %v6367
    %vm6375 = vmor %vm6373, %vm6374
    %v6376 = vsel %vm6375, %v6367, %v6372
    %v6377 = vrsqrt.pop %v6325
    %v6378 = vmul.f32 %v6377, %v6325
    %v6379 = vmul.f32 %v6378, %v6377
    %v6380 = vmul.f32 0.5, %v6379
    %v6381 = vsub.f32 1.5, %v6380
    %v6382 = vmul.f32 %v6377, %v6381
    %vm6383 = vweird.f32 %v6325
    %vm6384 = vweird.f32 %v6377
    %vm6385 = vmor %vm6383, %vm6384
    %v6386 = vsel %vm6385, %v6377, %v6382
    %v6387 = vrsqrt.pop %v6326
    %v6388 = vmul.f32 %v6387, %v6326
    %v6389 = vmul.f32 %v6388, %v6387
    %v6390 = vmul.f32 0.5, %v6389
    %v6391 = vsub.f32 1.5, %v6390
    %v6392 = vmul.f32 %v6387, %v6391
    %vm6393 = vweird.f32 %v6326
    %vm6394 = vweird.f32 %v6387
    %vm6395 = vmor %vm6393, %vm6394
    %v6396 = vsel %vm6395, %v6387, %v6392
    %v6397 = vrsqrt.pop %v6327
    %v6398 = vmul.f32 %v6397, %v6327
    %v6399 = vmul.f32 %v6398, %v6397
    %v6400 = vmul.f32 0.5, %v6399
    %v6401 = vsub.f32 1.5, %v6400
    %v6402 = vmul.f32 %v6397, %v6401
    %vm6403 = vweird.f32 %v6327
    %vm6404 = vweird.f32 %v6397
    %vm6405 = vmor %vm6403, %vm6404
    %v6406 = vsel %vm6405, %v6397, %v6402
    %v6407 = vrsqrt.pop %v6328
    %v6408 = vmul.f32 %v6407, %v6328
    %v6409 = vmul.f32 %v6408, %v6407
    %v6410 = vmul.f32 0.5, %v6409
    %v6411 = vsub.f32 1.5, %v6410
    %v6412 = vmul.f32 %v6407, %v6411
    %vm6413 = vweird.f32 %v6328
    %vm6414 = vweird.f32 %v6407
    %vm6415 = vmor %vm6413, %vm6414
    %v6416 = vsel %vm6415, %v6407, %v6412
    %v6417 = vrsqrt.pop %v6329
    %v6418 = vmul.f32 %v6417, %v6329
    %v6419 = vmul.f32 %v6418, %v6417
    %v6420 = vmul.f32 0.5, %v6419
    %v6421 = vsub.f32 1.5, %v6420
    %v6422 = vmul.f32 %v6417, %v6421
    %vm6423 = vweird.f32 %v6329
    %vm6424 = vweird.f32 %v6417
    %vm6425 = vmor %vm6423, %vm6424
    %v6426 = vsel %vm6425, %v6417, %v6422
    %v6427 = vrsqrt.pop %v6330
    %v6428 = vmul.f32 %v6427, %v6330
    %v6429 = vmul.f32 %v6428, %v6427
    %v6430 = vmul.f32 0.5, %v6429
    %v6431 = vsub.f32 1.5, %v6430
    %v6432 = vmul.f32 %v6427, %v6431
    %vm6433 = vweird.f32 %v6330
    %vm6434 = vweird.f32 %v6427
    %vm6435 = vmor %vm6433, %vm6434
    %v6436 = vsel %vm6435, %v6427, %v6432
    %v6437 = vrsqrt.pop %v6331
    %v6438 = vmul.f32 %v6437, %v6331
    %v6439 = vmul.f32 %v6438, %v6437
    %v6440 = vmul.f32 0.5, %v6439
    %v6441 = vsub.f32 1.5, %v6440
    %v6442 = vmul.f32 %v6437, %v6441
    %vm6443 = vweird.f32 %v6331
    %vm6444 = vweird.f32 %v6437
    %vm6445 = vmor %vm6443, %vm6444
    %v6446 = vsel %vm6445, %v6437, %v6442
    %v6447 = vrsqrt.pop %v6332
    %v6448 = vmul.f32 %v6447, %v6332
    %v6449 = vmul.f32 %v6448, %v6447
    %v6450 = vmul.f32 0.5, %v6449
    %v6451 = vsub.f32 1.5, %v6450
    %v6452 = vmul.f32 %v6447, %v6451
    %vm6453 = vweird.f32 %v6332
    %vm6454 = vweird.f32 %v6447
    %vm6455 = vmor %vm6453, %vm6454
    %v6456 = vsel %vm6455, %v6447, %v6452
    %v6457 = vrsqrt.pop %v6333
    %v6458 = vmul.f32 %v6457, %v6333
    %v6459 = vmul.f32 %v6458, %v6457
    %v6460 = vmul.f32 0.5, %v6459
    %v6461 = vsub.f32 1.5, %v6460
    %v6462 = vmul.f32 %v6457, %v6461
    %vm6463 = vweird.f32 %v6333
    %vm6464 = vweird.f32 %v6457
    %vm6465 = vmor %vm6463, %vm6464
    %v6466 = vsel %vm6465, %v6457, %v6462
    %v6467 = vrsqrt.pop %v6334
    %v6468 = vmul.f32 %v6467, %v6334
    %v6469 = vmul.f32 %v6468, %v6467
    %v6470 = vmul.f32 0.5, %v6469
    %v6471 = vsub.f32 1.5, %v6470
    %v6472 = vmul.f32 %v6467, %v6471
    %vm6473 = vweird.f32 %v6334
    %vm6474 = vweird.f32 %v6467
    %vm6475 = vmor %vm6473, %vm6474
    %v6476 = vsel %vm6475, %v6467, %v6472
    %v6477 = vrsqrt.pop %v6335
    %v6478 = vmul.f32 %v6477, %v6335
    %v6479 = vmul.f32 %v6478, %v6477
    %v6480 = vmul.f32 0.5, %v6479
    %v6481 = vsub.f32 1.5, %v6480
    %v6482 = vmul.f32 %v6477, %v6481
    %vm6483 = vweird.f32 %v6335
    %vm6484 = vweird.f32 %v6477
    %vm6485 = vmor %vm6483, %vm6484
    %v6486 = vsel %vm6485, %v6477, %v6482
    %v6487 = vrsqrt.pop %v6336
    %v6488 = vmul.f32 %v6487, %v6336
    %v6489 = vmul.f32 %v6488, %v6487
    %v6490 = vmul.f32 0.5, %v6489
    %v6491 = vsub.f32 1.5, %v6490
    %v6492 = vmul.f32 %v6487, %v6491
    %vm6493 = vweird.f32 %v6336
    %vm6494 = vweird.f32 %v6487
    %vm6495 = vmor %vm6493, %vm6494
    %v6496 = vsel %vm6495, %v6487, %v6492
    %v6497 = vsub.f32 %v6145, %v6241
    %v6498 = vsub.f32 %v6146, %v6242
    %v6499 = vsub.f32 %v6147, %v6243
    %v6500 = vsub.f32 %v6148, %v6244
    %v6501 = vsub.f32 %v6149, %v6245
    %v6502 = vsub.f32 %v6150, %v6246
    %v6503 = vsub.f32 %v6151, %v6247
    %v6504 = vsub.f32 %v6152, %v6248
    %v6505 = vsub.f32 %v6153, %v6249
    %v6506 = vsub.f32 %v6154, %v6250
    %v6507 = vsub.f32 %v6155, %v6251
    %v6508 = vsub.f32 %v6156, %v6252
    %v6509 = vsub.f32 %v6157, %v6253
    %v6510 = vsub.f32 %v6158, %v6254
    %v6511 = vsub.f32 %v6159, %v6255
    %v6512 = vsub.f32 %v6160, %v6256
    %v6513 = vmul.f32 %v6497, %v6346
    %v6514 = vmul.f32 %v6498, %v6356
    %v6515 = vmul.f32 %v6499, %v6366
    %v6516 = vmul.f32 %v6500, %v6376
    %v6517 = vmul.f32 %v6501, %v6386
    %v6518 = vmul.f32 %v6502, %v6396
    %v6519 = vmul.f32 %v6503, %v6406
    %v6520 = vmul.f32 %v6504, %v6416
    %v6521 = vmul.f32 %v6505, %v6426
    %v6522 = vmul.f32 %v6506, %v6436
    %v6523 = vmul.f32 %v6507, %v6446
    %v6524 = vmul.f32 %v6508, %v6456
    %v6525 = vmul.f32 %v6509, %v6466
    %v6526 = vmul.f32 %v6510, %v6476
    %v6527 = vmul.f32 %v6511, %v6486
    %v6528 = vmul.f32 %v6512, %v6496
    %v6529 = vperm.slane %v68, 0
    %v6530 = vmul.f32 %v6513, %v6529
    %v6531 = vmul.f32 %v6514, %v6529
    %v6532 = vmul.f32 %v6515, %v6529
    %v6533 = vmul.f32 %v6516, %v6529
    %v6534 = vmul.f32 %v6517, %v6529
    %v6535 = vmul.f32 %v6518, %v6529
    %v6536 = vmul.f32 %v6519, %v6529
    %v6537 = vmul.f32 %v6520, %v6529
    %v6538 = vmul.f32 %v6521, %v6529
    %v6539 = vmul.f32 %v6522, %v6529
    %v6540 = vmul.f32 %v6523, %v6529
    %v6541 = vmul.f32 %v6524, %v6529
    %v6542 = vmul.f32 %v6525, %v6529
    %v6543 = vmul.f32 %v6526, %v6529
    %v6544 = vmul.f32 %v6527, %v6529
    %v6545 = vmul.f32 %v6528, %v6529
    %v6546 = vperm.slane %v69, 0
    %v6547 = vadd.f32 %v6530, %v6546
    %v6548 = vadd.f32 %v6531, %v6546
    %v6549 = vadd.f32 %v6532, %v6546
    %v6550 = vadd.f32 %v6533, %v6546
    %v6551 = vadd.f32 %v6534, %v6546
    %v6552 = vadd.f32 %v6535, %v6546
    %v6553 = vadd.f32 %v6536, %v6546
    %v6554 = vadd.f32 %v6537, %v6546
    %v6555 = vadd.f32 %v6538, %v6546
    %v6556 = vadd.f32 %v6539, %v6546
    %v6557 = vadd.f32 %v6540, %v6546
    %v6558 = vadd.f32 %v6541, %v6546
    %v6559 = vadd.f32 %v6542, %v6546
    %v6560 = vadd.f32 %v6543, %v6546
    %v6561 = vadd.f32 %v6544, %v6546
    %v6562 = vadd.f32 %v6545, %v6546
    %6563 = vst [vmem:[#allocation8] sm:$0xff] %v6547
    %6564 = vst [vmem:[#allocation8 + $0x8] sm:$0xff] %v6548
    %6565 = vst [vmem:[#allocation8 + $0x10] sm:$0xff] %v6549
    %6566 = vst [vmem:[#allocation8 + $0x18] sm:$0xff] %v6550
    %6567 = vst [vmem:[#allocation8 + $0x20] sm:$0xff] %v6551
    %6568 = vst [vmem:[#allocation8 + $0x28] sm:$0xff] %v6552
    %6569 = vst [vmem:[#allocation8 + $0x30] sm:$0xff] %v6553
    %6570 = vst [vmem:[#allocation8 + $0x38] sm:$0xff] %v6554
    %6571 = vst [vmem:[#allocation8 + $0x40] sm:$0xff] %v6555
    %6572 = vst [vmem:[#allocation8 + $0x48] sm:$0xff] %v6556
    %6573 = vst [vmem:[#allocation8 + $0x50] sm:$0xff] %v6557
    %6574 = vst [vmem:[#allocation8 + $0x58] sm:$0xff] %v6558
    %6575 = vst [vmem:[#allocation8 + $0x60] sm:$0xff] %v6559
    %6576 = vst [vmem:[#allocation8 + $0x68] sm:$0xff] %v6560
    %6577 = vst [vmem:[#allocation8 + $0x70] sm:$0xff] %v6561
    %6578 = vst [vmem:[#allocation8 + $0x78] sm:$0xff] %v6562
    // Predicated region
    $region34: #{tpu_custom_call.1} parent=1 // pred_check
      _
    $region35: #{tpu_custom_call.1} parent=1 // pred_check_branch
      %6580 = sbr.rel (0) target = $region37
    $region36: #{tpu_custom_call.1} parent=1 // pred_region
      %6582 = vsyncadd [#allocation4], 0
      %s6583 = sshll.u32 [#allocation8], 4
      %s6584 = int_to_ptr.vmem [resolvable:$true] %s6583
      %s6585 = sshll.u32 %s5, 4
      %s6586 = int_to_ptr.hbm [resolvable:$true] %s6585
      %6591 = dma.vmem_to_hbm [thread:$0]  %s6584, 2048, %s6586, [#allocation4], 128, 128, 8
    $region37: #{tpu_custom_call.1} parent=1 // pred_fallthru
      _
    // Predicated region
    $region38: #{tpu_custom_call.1} parent=1 // pred_check
      _
    $region39: #{tpu_custom_call.1} parent=1 // pred_check_branch
      %6593 = sbr.rel (0) target = $region41
    $region40: #{tpu_custom_call.1} parent=1 // pred_region
      %6595 = dma.done [#allocation4], 2048
    $region41: #{tpu_custom_call.1} parent=1 // pred_fallthru
      _
    %6596 = vsyncpa [#allocation3], 1
    %6597 = vsyncpa [#allocation6], 1
    %6598 = vsyncpa [#allocation4], 1

</llo_original>
